<compile_context>
chip_gen: v7x
topology: tpu7x:2x2x1
jax: 0.10.0
libtpu: 0.0.40
codegen_flags: <defaults>
</compile_context>

<pallas_src>
import numpy as np
import jax
import jax.numpy as jnp
from jax import lax
from jax.experimental import pallas as pl
from jax.experimental.pallas import tpu as pltpu


# ---------------------------------------------------------------------------
# One LSTM layer over the whole sequence, fully unrolled inside the kernel.
# ---------------------------------------------------------------------------
def _lstm_layer(x, w, b_row, h0, c0, g_mask, seq_scr, BP):
    """x: (T*BP, In) value, rows t-major / padded-batch-minor.
    w: (In+H, 4H) combined [W_ih^T ; W_hh^T] (PyTorch gate order i,f,g,o),
       g-gate columns pre-scaled by 2 (see init_params).
    b_row: (1, 4H) combined bias (g columns pre-scaled by 2).
    h0/c0: (BP, H).  g_mask: (BP, 4H) bool, True on the g-gate lanes.
    seq_scr: (T*BP, H) VMEM scratch for the per-step hidden states."""
    N, in_dim = x.shape
    H = h0.shape[-1]
    T = N // BP
    wx = w[:in_dim, :]                      # (In, 4H)  -- hoisted slices
    wh = w[in_dim:, :]                      # (H, 4H)
    # Input contribution for ALL timesteps in one MXU matmul, bias folded in.
    xw = jnp.dot(x, wx, preferred_element_type=jnp.float32) + b_row   # (N, 4H)
    h, c = h0, c0
    for t in range(T):                      # T static & small -> unrolled
        gates = xw[t * BP:(t + 1) * BP, :] + jnp.dot(
            h, wh, preferred_element_type=jnp.float32)                # (BP, 4H)
        # Single full-width sigmoid (one EUP push); tanh on the g lanes is
        # 2*sigmoid(2x) - 1, with the 2x folded into the weights at init.
        sig = jax.nn.sigmoid(gates)
        act = jnp.where(g_mask, 2.0 * sig - 1.0, sig)
        i = act[:, 0 * H:1 * H]
        f = act[:, 1 * H:2 * H]
        g = act[:, 2 * H:3 * H]
        o = act[:, 3 * H:4 * H]
        c = f * c + i * g
        h = o * jnp.tanh(c)
        seq_scr[t * BP:(t + 1) * BP, :] = h   # sublane-aligned (8, H) store
    return seq_scr[...], h, c


# ---------------------------------------------------------------------------
# Fused forward kernel.
# ---------------------------------------------------------------------------
def _rnn_model_kernel(tok_ref, emb_ref, embT_ref, lstm_w_ref, bias_ref,
                      attn_w_ref, state0_ref, logp_ref, stateN_ref,
                      enc_seq, attn_seq, dec_seq):
    N = tok_ref.shape[0]
    V, E = emb_ref.shape
    BP = state0_ref.shape[1]
    H = state0_ref.shape[2]
    A = (attn_w_ref.shape[1] - H) // 2       # align_size

    bias = bias_ref[...]                     # (4, 4H) packed bias buffer

    # tanh-lane mask for the g gate, shared by all three LSTMs (hoisted).
    lane4h = lax.broadcasted_iota(jnp.int32, (BP, 4 * H), 1)
    g_mask = (lane4h >= 2 * H) & (lane4h < 3 * H)

    # ----- embedding gather as one-hot MXU matmul (sentinel -1 -> zero row) --
    tok = tok_ref[...]                                            # (N, 1) i32
    onehot = (tok == lax.broadcasted_iota(jnp.int32, (N, V), 1)
              ).astype(jnp.float32)                               # (N, V)
    emb_rows = jnp.dot(onehot, emb_ref[...],
                       preferred_element_type=jnp.float32)        # (N, E)
    # embeddings * sqrt(E), ReLU; dropout == identity in eval mode.
    enc_in = jnp.maximum(emb_rows * jnp.float32(np.sqrt(E)), 0.0)

    # ----- encoder LSTM ------------------------------------------------------
    enc_out, enc_h, enc_c = _lstm_layer(
        enc_in, lstm_w_ref[0], bias[0:1, :], state0_ref[0], state0_ref[3],
        g_mask, enc_seq, BP)

    # ----- recurrent attention -----------------------------------------------
    h_seq, attn_h, attn_c = _lstm_layer(
        enc_out, lstm_w_ref[1], bias[1:2, :], state0_ref[1], state0_ref[4],
        g_mask, attn_seq, BP)

    attn_w = attn_w_ref[...]                 # (2H, 2A + DEC)
    qk_w = attn_w[:, :2 * A]                 # block-diag [[Wq, 0], [0, Wk]]
    wo_h = attn_w[:H, 2 * A:]                # (H, DEC)
    wo_c = attn_w[H:, 2 * A:]                # (H, DEC)

    # fused q/k projection: [h_seq | enc_out] @ block-diag -> [q | k]
    hk = jnp.concatenate([h_seq, enc_out], axis=-1)               # (N, 2H)
    qk = jnp.dot(hk, qk_w,
                 preferred_element_type=jnp.float32) + bias[3:4, :2 * A]
    q = qk[:, :A]
    k = qk[:, A:2 * A]

    # Flat (N, N) scores with a "same batch element" mask: one MXU matmul.
    s = lax.dot_general(q, k, (((1,), (1,)), ((), ())),
                        preferred_element_type=jnp.float32)       # (N, N)
    row = lax.broadcasted_iota(jnp.int32, (N, N), 0)
    col = lax.broadcasted_iota(jnp.int32, (N, N), 1)
    if (BP & (BP - 1)) == 0:                 # batch id = row index mod BP
        same = (row & (BP - 1)) == (col & (BP - 1))
    else:
        same = (row % BP) == (col % BP)
    s = jnp.where(same, s, jnp.float32(-1e30))
    m = jnp.max(s, axis=-1, keepdims=True)
    p = jnp.exp(s - m)
    p = p * pl.reciprocal(jnp.sum(p, axis=-1, keepdims=True), approx=True)
    ctx = jnp.dot(p, enc_out, preferred_element_type=jnp.float32)  # (N, H)
    # split matmul-sum instead of a lane concat before the output projection
    attn_out = jnp.maximum(
        jnp.dot(h_seq, wo_h, preferred_element_type=jnp.float32)
        + jnp.dot(ctx, wo_c, preferred_element_type=jnp.float32)
        + bias[3:4, 2 * A:2 * A + H], 0.0)                         # (N, DEC)

    # ----- decoder LSTM ------------------------------------------------------
    dec_out, dec_h, dec_c = _lstm_layer(
        attn_out, lstm_w_ref[2], bias[2:3, :], state0_ref[2], state0_ref[5],
        g_mask, dec_seq, BP)

    # ----- tied projection (pre-transposed, lane-padded emb) + log_softmax ---
    logits = jnp.dot(dec_out, embT_ref[...],
                     preferred_element_type=jnp.float32)           # (N, VP)
    VP = logits.shape[1]
    vlane = lax.broadcasted_iota(jnp.int32, (N, VP), 1)
    logits = jnp.where(vlane < V, logits, jnp.float32(-1e30))
    z = logits - jnp.max(logits, axis=-1, keepdims=True)
    logp_ref[...] = z - jnp.log(jnp.sum(jnp.exp(z), axis=-1, keepdims=True))

    # packed final states: rows 0..2 = h (enc, attn, dec), rows 3..5 = c
    stateN_ref[0] = enc_h
    stateN_ref[1] = attn_h
    stateN_ref[2] = dec_h
    stateN_ref[3] = enc_c
    stateN_ref[4] = attn_c
    stateN_ref[5] = dec_c


# ---------------------------------------------------------------------------
# Wrapper: pads batch to a sublane multiple, packs states, slices outputs.
# ---------------------------------------------------------------------------
def rnn_model_forward(tokens, params, state_h, state_c):
    """tokens: (T, B) int32 (time-major, like nn.LSTM).
    state_h / state_c: (3, B, H) packed [encoder, attention RNN, decoder]."""
    T, B = tokens.shape
    V, E = params["emb"].shape
    H = state_h.shape[-1]
    BP = max(8, ((B + 7) // 8) * 8)          # pad batch to sublane multiple
    N = T * BP
    v_pad = params["emb_T_pad"].shape[1]

    tok_pad = jnp.full((T, BP), -1, jnp.int32).at[:, :B].set(tokens)
    tok_pad = tok_pad.reshape(N, 1)

    state0 = jnp.zeros((6, BP, H), jnp.float32)
    state0 = state0.at[0:3, :B, :].set(state_h).at[3:6, :B, :].set(state_c)

    logp_pad, stateN = pl.pallas_call(
        _rnn_model_kernel,
        out_shape=(jax.ShapeDtypeStruct((N, v_pad), jnp.float32),
                   jax.ShapeDtypeStruct((6, BP, H), jnp.float32)),
        scratch_shapes=[pltpu.VMEM((N, H), jnp.float32)] * 3,
    )(tok_pad, params["emb"], params["emb_T_pad"], params["lstm_w"],
      params["bias"], params["attn_w"], state0)

    logp = logp_pad.reshape(T, BP, v_pad)[:, :B, :V]
    new_h = stateN[0:3, :B, :]
    new_c = stateN[3:6, :B, :]
    return logp, (new_h, new_c)


# ---------------------------------------------------------------------------
# Deterministic parameter initialization (orthogonal/xavier replaced by scaled
# normal; biases zero, matching the reference's bias fill_(0)).  All packing /
# transposing / g-gate scaling happens here, once, not at call time.
# ---------------------------------------------------------------------------
def init_params(key, V, E, ENC, HS, AL, DEC, DOUT):
    # Packed layouts require equal stage widths; true for this config (32).
    assert E == ENC == HS == DEC == DOUT
    H = ENC
    keys = jax.random.split(key, 7)

    def w(k, shape, scale=0.1):
        return (scale * jax.random.normal(k, shape)).astype(jnp.float32)

    # g-gate column scale: tanh(x) = 2*sigmoid(2x) - 1 -> fold the 2x into W,b.
    g2 = jnp.concatenate([jnp.ones((1, 2 * H), jnp.float32),
                          2.0 * jnp.ones((1, H), jnp.float32),
                          jnp.ones((1, H), jnp.float32)], axis=1)     # (1, 4H)

    lstm_w = jnp.stack([            # combined [W_ih^T ; W_hh^T], gates i,f,g,o
        w(keys[1], (E + ENC, 4 * ENC)) * g2,        # encoder LSTM
        w(keys[2], (ENC + HS, 4 * HS)) * g2,        # attention RNN
        w(keys[3], (DEC + DOUT, 4 * DOUT)) * g2,    # decoder LSTM
    ])

    emb = w(keys[0], (V, E))        # embedding == tied projection weight
    v_pad = pl.cdiv(V, 128) * 128
    emb_T_pad = jnp.zeros((E, v_pad), jnp.float32).at[:, :V].set(emb.T)

    # Packed bias buffer (4, 4H): rows 0-2 = LSTM biases (g-cols x2),
    # row 3 = [bq (AL) | bk (AL) | bo (DEC) | 0].  Reference init is all-zero.
    bias = jnp.zeros((4, 4 * H), jnp.float32)

    wq = w(keys[4], (HS, AL))                       # alignment query proj
    wk = w(keys[5], (ENC, AL))                      # alignment key proj
    wo = w(keys[6], (HS + ENC, DEC))                # attention output proj
    qk_blockdiag = jnp.zeros((HS + ENC, 2 * AL), jnp.float32)
    qk_blockdiag = qk_blockdiag.at[:HS, :AL].set(wq).at[HS:, AL:].set(wk)
    attn_w = jnp.concatenate([qk_blockdiag, wo], axis=1)    # (2H, 2A + DEC)

    return {"emb": emb, "emb_T_pad": emb_T_pad, "lstm_w": lstm_w,
            "bias": bias, "attn_w": attn_w}


if __name__ == "__main__":
    V = 64      # src_vocab == tgt_vocab
    E = 32      # embed_size
    ENC = 32    # encode_size
    HS = 32     # h_size
    AL = 32     # align_size
    DEC = 32    # decode_size
    DOUT = 32   # decode_out_size
    T, B = 8, 2  # seq len, batch (nn.LSTM time-major: inputs are (T, B))

    key = jax.random.PRNGKey(0)
    kp, kt = jax.random.split(key)
    params = init_params(kp, V, E, ENC, HS, AL, DEC, DOUT)
    tokens = jax.random.randint(kt, (T, B), 0, V, dtype=jnp.int32)

    # states packed as (3, B, H): [encoder, attention RNN, decoder], zeros.
    state_h = jnp.zeros((3, B, ENC), jnp.float32)
    state_c = jnp.zeros((3, B, ENC), jnp.float32)

    fwd = jax.jit(rnn_model_forward)
    logp, (new_h, new_c) = fwd(tokens, params, state_h, state_c)
    jax.block_until_ready(logp)

    assert logp.shape == (T, B, V)
    assert new_h.shape == (3, B, ENC) and new_c.shape == (3, B, ENC)
    assert bool(jnp.all(jnp.isfinite(logp)))
    # rows of log_softmax must sum to ~1 in prob space
    assert bool(jnp.allclose(jnp.sum(jnp.exp(logp), axis=-1), 1.0, atol=1e-4))
    print("KERNEL_OK")
</pallas_src>

<mosaic_0001>
module attributes {stable_mosaic.version = 11 : i64} {
  func.func @_rnn_model_kernel(%arg0: memref<64x1xi32, #tpu.memory_space<vmem>>, %arg1: memref<64x32xf32, #tpu.memory_space<vmem>>, %arg2: memref<32x128xf32, #tpu.memory_space<vmem>>, %arg3: memref<3x64x128xf32, #tpu.memory_space<vmem>>, %arg4: memref<4x128xf32, #tpu.memory_space<vmem>>, %arg5: memref<64x96xf32, #tpu.memory_space<vmem>>, %arg6: memref<6x8x32xf32, #tpu.memory_space<vmem>>, %arg7: memref<64x128xf32, #tpu.memory_space<vmem>>, %arg8: memref<6x8x32xf32, #tpu.memory_space<vmem>>, %arg9: memref<64x32xf32, #tpu.memory_space<vmem>>, %arg10: memref<64x32xf32, #tpu.memory_space<vmem>>, %arg11: memref<64x32xf32, #tpu.memory_space<vmem>>) attributes {dimension_semantics = [], scalar_prefetch = 0 : i64, scratch_operands = 3 : i64, tpu.core_type = #tpu.core_type<tc>} {
    %c0 = arith.constant 0 : index
    %c0_0 = arith.constant 0 : index
    %0 = vector.load %arg4[%c0, %c0_0] : memref<4x128xf32, #tpu.memory_space<vmem>>, vector<4x128xf32>
    %1 = tpu.iota {dimensions = array<i32: 1>} : vector<8x128xi32>
    %c64_i32 = arith.constant 64 : i32
    %2 = vector.broadcast %c64_i32 : i32 to vector<8x128xi32>
    %3 = arith.cmpi sge, %1, %2 : vector<8x128xi32>
    %c96_i32 = arith.constant 96 : i32
    %4 = vector.broadcast %c96_i32 : i32 to vector<8x128xi32>
    %5 = arith.cmpi slt, %1, %4 : vector<8x128xi32>
    %6 = arith.andi %3, %5 : vector<8x128xi1>
    %c0_1 = arith.constant 0 : index
    %c0_2 = arith.constant 0 : index
    %7 = vector.load %arg0[%c0_1, %c0_2] : memref<64x1xi32, #tpu.memory_space<vmem>>, vector<64x1xi32>
    %8 = tpu.iota {dimensions = array<i32: 1>} : vector<64x64xi32>
    %9 = vector.broadcast %7 : vector<64x1xi32> to vector<64x64xi32>
    %10 = arith.cmpi eq, %9, %8 : vector<64x64xi32>
    %11 = arith.extui %10 : vector<64x64xi1> to vector<64x64xi32>
    %12 = arith.sitofp %11 : vector<64x64xi32> to vector<64x64xf32>
    %c0_3 = arith.constant 0 : index
    %c0_4 = arith.constant 0 : index
    %13 = vector.load %arg1[%c0_3, %c0_4] : memref<64x32xf32, #tpu.memory_space<vmem>>, vector<64x32xf32>
    %cst = arith.constant dense<0.000000e+00> : vector<64x32xf32>
    %14 = tpu.matmul %12, %13, %cst {dimension_numbers = #tpu.dot_dimension_numbers<[1], [0], [0], [1], [0, 0, 1, 1], [], []>} : vector<64x64xf32>, vector<64x32xf32>, vector<64x32xf32> -> vector<64x32xf32>
    %cst_5 = arith.constant 5.65685415 : f32
    %15 = vector.broadcast %cst_5 : f32 to vector<64x32xf32>
    %16 = arith.mulf %14, %15 : vector<64x32xf32>
    %cst_6 = arith.constant 0.000000e+00 : f32
    %17 = vector.broadcast %cst_6 : f32 to vector<64x32xf32>
    %18 = arith.maximumf %16, %17 : vector<64x32xf32>
    %c0_7 = arith.constant 0 : index
    %c0_8 = arith.constant 0 : index
    %c0_9 = arith.constant 0 : index
    %19 = vector.load %arg3[%c0_7, %c0_8, %c0_9] : memref<3x64x128xf32, #tpu.memory_space<vmem>>, vector<1x64x128xf32>
    %20 = vector.shape_cast %19 : vector<1x64x128xf32> to vector<64x128xf32>
    %21 = vector.extract_strided_slice %0 {offsets = [0, 0], sizes = [1, 128], strides = [1, 1]} : vector<4x128xf32> to vector<1x128xf32>
    %c0_10 = arith.constant 0 : index
    %c0_11 = arith.constant 0 : index
    %c0_12 = arith.constant 0 : index
    %22 = vector.load %arg6[%c0_10, %c0_11, %c0_12] : memref<6x8x32xf32, #tpu.memory_space<vmem>>, vector<1x8x32xf32>
    %23 = vector.shape_cast %22 : vector<1x8x32xf32> to vector<8x32xf32>
    %c3 = arith.constant 3 : index
    %c0_13 = arith.constant 0 : index
    %c0_14 = arith.constant 0 : index
    %24 = vector.load %arg6[%c3, %c0_13, %c0_14] : memref<6x8x32xf32, #tpu.memory_space<vmem>>, vector<1x8x32xf32>
    %25 = vector.shape_cast %24 : vector<1x8x32xf32> to vector<8x32xf32>
    %26 = vector.extract_strided_slice %20 {offsets = [0, 0], sizes = [32, 128], strides = [1, 1]} : vector<64x128xf32> to vector<32x128xf32>
    %27 = vector.extract_strided_slice %20 {offsets = [32, 0], sizes = [32, 128], strides = [1, 1]} : vector<64x128xf32> to vector<32x128xf32>
    %cst_15 = arith.constant dense<0.000000e+00> : vector<64x128xf32>
    %28 = tpu.matmul %18, %26, %cst_15 {dimension_numbers = #tpu.dot_dimension_numbers<[1], [0], [0], [1], [0, 0, 1, 1], [], []>} : vector<64x32xf32>, vector<32x128xf32>, vector<64x128xf32> -> vector<64x128xf32>
    %29 = vector.broadcast %21 : vector<1x128xf32> to vector<64x128xf32>
    %30 = arith.addf %28, %29 : vector<64x128xf32>
    %31 = vector.extract_strided_slice %30 {offsets = [0, 0], sizes = [8, 128], strides = [1, 1]} : vector<64x128xf32> to vector<8x128xf32>
    %cst_16 = arith.constant dense<0.000000e+00> : vector<8x128xf32>
    %32 = tpu.matmul %23, %27, %cst_16 {dimension_numbers = #tpu.dot_dimension_numbers<[1], [0], [0], [1], [0, 0, 1, 1], [], []>} : vector<8x32xf32>, vector<32x128xf32>, vector<8x128xf32> -> vector<8x128xf32>
    %33 = arith.addf %31, %32 : vector<8x128xf32>
    %34 = arith.negf %33 : vector<8x128xf32>
    %35 = math.exp %34 : vector<8x128xf32>
    %cst_17 = arith.constant 1.000000e+00 : f32
    %36 = vector.broadcast %cst_17 : f32 to vector<8x128xf32>
    %37 = arith.addf %36, %35 : vector<8x128xf32>
    %38 = arith.divf %36, %37 : vector<8x128xf32>
    %cst_18 = arith.constant 2.000000e+00 : f32
    %39 = vector.broadcast %cst_18 : f32 to vector<8x128xf32>
    %40 = arith.mulf %39, %38 : vector<8x128xf32>
    %cst_19 = arith.constant 1.000000e+00 : f32
    %41 = vector.broadcast %cst_19 : f32 to vector<8x128xf32>
    %42 = arith.subf %40, %41 : vector<8x128xf32>
    %43 = arith.select %6, %42, %38 : vector<8x128xi1>, vector<8x128xf32>
    %44 = vector.extract_strided_slice %43 {offsets = [0, 0], sizes = [8, 32], strides = [1, 1]} : vector<8x128xf32> to vector<8x32xf32>
    %45 = vector.extract_strided_slice %43 {offsets = [0, 32], sizes = [8, 32], strides = [1, 1]} : vector<8x128xf32> to vector<8x32xf32>
    %46 = vector.extract_strided_slice %43 {offsets = [0, 64], sizes = [8, 32], strides = [1, 1]} : vector<8x128xf32> to vector<8x32xf32>
    %47 = vector.extract_strided_slice %43 {offsets = [0, 96], sizes = [8, 32], strides = [1, 1]} : vector<8x128xf32> to vector<8x32xf32>
    %48 = arith.mulf %45, %25 : vector<8x32xf32>
    %49 = arith.mulf %44, %46 : vector<8x32xf32>
    %50 = arith.addf %48, %49 : vector<8x32xf32>
    %51 = math.tanh %50 : vector<8x32xf32>
    %52 = arith.mulf %47, %51 : vector<8x32xf32>
    %c0_20 = arith.constant 0 : index
    %c0_21 = arith.constant 0 : index
    %53 = vector.load %arg9[%c0_20, %c0_21] : memref<64x32xf32, #tpu.memory_space<vmem>>, vector<8x32xf32>
    tpu.vector_store %arg9[%c0_20, %c0_21], %52 {strides = array<i32>} : memref<64x32xf32, #tpu.memory_space<vmem>>, vector<8x32xf32>,
    %54 = vector.extract_strided_slice %30 {offsets = [8, 0], sizes = [8, 128], strides = [1, 1]} : vector<64x128xf32> to vector<8x128xf32>
    %cst_22 = arith.constant dense<0.000000e+00> : vector<8x128xf32>
    %55 = tpu.matmul %52, %27, %cst_22 {dimension_numbers = #tpu.dot_dimension_numbers<[1], [0], [0], [1], [0, 0, 1, 1], [], []>} : vector<8x32xf32>, vector<32x128xf32>, vector<8x128xf32> -> vector<8x128xf32>
    %56 = arith.addf %54, %55 : vector<8x128xf32>
    %57 = arith.negf %56 : vector<8x128xf32>
    %58 = math.exp %57 : vector<8x128xf32>
    %cst_23 = arith.constant 1.000000e+00 : f32
    %59 = vector.broadcast %cst_23 : f32 to vector<8x128xf32>
    %60 = arith.addf %59, %58 : vector<8x128xf32>
    %61 = arith.divf %59, %60 : vector<8x128xf32>
    %cst_24 = arith.constant 2.000000e+00 : f32
    %62 = vector.broadcast %cst_24 : f32 to vector<8x128xf32>
    %63 = arith.mulf %62, %61 : vector<8x128xf32>
    %cst_25 = arith.constant 1.000000e+00 : f32
    %64 = vector.broadcast %cst_25 : f32 to vector<8x128xf32>
    %65 = arith.subf %63, %64 : vector<8x128xf32>
    %66 = arith.select %6, %65, %61 : vector<8x128xi1>, vector<8x128xf32>
    %67 = vector.extract_strided_slice %66 {offsets = [0, 0], sizes = [8, 32], strides = [1, 1]} : vector<8x128xf32> to vector<8x32xf32>
    %68 = vector.extract_strided_slice %66 {offsets = [0, 32], sizes = [8, 32], strides = [1, 1]} : vector<8x128xf32> to vector<8x32xf32>
    %69 = vector.extract_strided_slice %66 {offsets = [0, 64], sizes = [8, 32], strides = [1, 1]} : vector<8x128xf32> to vector<8x32xf32>
    %70 = vector.extract_strided_slice %66 {offsets = [0, 96], sizes = [8, 32], strides = [1, 1]} : vector<8x128xf32> to vector<8x32xf32>
    %71 = arith.mulf %68, %50 : vector<8x32xf32>
    %72 = arith.mulf %67, %69 : vector<8x32xf32>
    %73 = arith.addf %71, %72 : vector<8x32xf32>
    %74 = math.tanh %73 : vector<8x32xf32>
    %75 = arith.mulf %70, %74 : vector<8x32xf32>
    %c8 = arith.constant 8 : index
    %c0_26 = arith.constant 0 : index
    %76 = vector.load %arg9[%c8, %c0_26] : memref<64x32xf32, #tpu.memory_space<vmem>>, vector<8x32xf32>
    tpu.vector_store %arg9[%c8, %c0_26], %75 {strides = array<i32>} : memref<64x32xf32, #tpu.memory_space<vmem>>, vector<8x32xf32>,
    %77 = vector.extract_strided_slice %30 {offsets = [16, 0], sizes = [8, 128], strides = [1, 1]} : vector<64x128xf32> to vector<8x128xf32>
    %cst_27 = arith.constant dense<0.000000e+00> : vector<8x128xf32>
    %78 = tpu.matmul %75, %27, %cst_27 {dimension_numbers = #tpu.dot_dimension_numbers<[1], [0], [0], [1], [0, 0, 1, 1], [], []>} : vector<8x32xf32>, vector<32x128xf32>, vector<8x128xf32> -> vector<8x128xf32>
    %79 = arith.addf %77, %78 : vector<8x128xf32>
    %80 = arith.negf %79 : vector<8x128xf32>
    %81 = math.exp %80 : vector<8x128xf32>
    %cst_28 = arith.constant 1.000000e+00 : f32
    %82 = vector.broadcast %cst_28 : f32 to vector<8x128xf32>
    %83 = arith.addf %82, %81 : vector<8x128xf32>
    %84 = arith.divf %82, %83 : vector<8x128xf32>
    %cst_29 = arith.constant 2.000000e+00 : f32
    %85 = vector.broadcast %cst_29 : f32 to vector<8x128xf32>
    %86 = arith.mulf %85, %84 : vector<8x128xf32>
    %cst_30 = arith.constant 1.000000e+00 : f32
    %87 = vector.broadcast %cst_30 : f32 to vector<8x128xf32>
    %88 = arith.subf %86, %87 : vector<8x128xf32>
    %89 = arith.select %6, %88, %84 : vector<8x128xi1>, vector<8x128xf32>
    %90 = vector.extract_strided_slice %89 {offsets = [0, 0], sizes = [8, 32], strides = [1, 1]} : vector<8x128xf32> to vector<8x32xf32>
    %91 = vector.extract_strided_slice %89 {offsets = [0, 32], sizes = [8, 32], strides = [1, 1]} : vector<8x128xf32> to vector<8x32xf32>
    %92 = vector.extract_strided_slice %89 {offsets = [0, 64], sizes = [8, 32], strides = [1, 1]} : vector<8x128xf32> to vector<8x32xf32>
    %93 = vector.extract_strided_slice %89 {offsets = [0, 96], sizes = [8, 32], strides = [1, 1]} : vector<8x128xf32> to vector<8x32xf32>
    %94 = arith.mulf %91, %73 : vector<8x32xf32>
    %95 = arith.mulf %90, %92 : vector<8x32xf32>
    %96 = arith.addf %94, %95 : vector<8x32xf32>
    %97 = math.tanh %96 : vector<8x32xf32>
    %98 = arith.mulf %93, %97 : vector<8x32xf32>
    %c16 = arith.constant 16 : index
    %c0_31 = arith.constant 0 : index
    %99 = vector.load %arg9[%c16, %c0_31] : memref<64x32xf32, #tpu.memory_space<vmem>>, vector<8x32xf32>
    tpu.vector_store %arg9[%c16, %c0_31], %98 {strides = array<i32>} : memref<64x32xf32, #tpu.memory_space<vmem>>, vector<8x32xf32>,
    %100 = vector.extract_strided_slice %30 {offsets = [24, 0], sizes = [8, 128], strides = [1, 1]} : vector<64x128xf32> to vector<8x128xf32>
    %cst_32 = arith.constant dense<0.000000e+00> : vector<8x128xf32>
    %101 = tpu.matmul %98, %27, %cst_32 {dimension_numbers = #tpu.dot_dimension_numbers<[1], [0], [0], [1], [0, 0, 1, 1], [], []>} : vector<8x32xf32>, vector<32x128xf32>, vector<8x128xf32> -> vector<8x128xf32>
    %102 = arith.addf %100, %101 : vector<8x128xf32>
    %103 = arith.negf %102 : vector<8x128xf32>
    %104 = math.exp %103 : vector<8x128xf32>
    %cst_33 = arith.constant 1.000000e+00 : f32
    %105 = vector.broadcast %cst_33 : f32 to vector<8x128xf32>
    %106 = arith.addf %105, %104 : vector<8x128xf32>
    %107 = arith.divf %105, %106 : vector<8x128xf32>
    %cst_34 = arith.constant 2.000000e+00 : f32
    %108 = vector.broadcast %cst_34 : f32 to vector<8x128xf32>
    %109 = arith.mulf %108, %107 : vector<8x128xf32>
    %cst_35 = arith.constant 1.000000e+00 : f32
    %110 = vector.broadcast %cst_35 : f32 to vector<8x128xf32>
    %111 = arith.subf %109, %110 : vector<8x128xf32>
    %112 = arith.select %6, %111, %107 : vector<8x128xi1>, vector<8x128xf32>
    %113 = vector.extract_strided_slice %112 {offsets = [0, 0], sizes = [8, 32], strides = [1, 1]} : vector<8x128xf32> to vector<8x32xf32>
    %114 = vector.extract_strided_slice %112 {offsets = [0, 32], sizes = [8, 32], strides = [1, 1]} : vector<8x128xf32> to vector<8x32xf32>
    %115 = vector.extract_strided_slice %112 {offsets = [0, 64], sizes = [8, 32], strides = [1, 1]} : vector<8x128xf32> to vector<8x32xf32>
    %116 = vector.extract_strided_slice %112 {offsets = [0, 96], sizes = [8, 32], strides = [1, 1]} : vector<8x128xf32> to vector<8x32xf32>
    %117 = arith.mulf %114, %96 : vector<8x32xf32>
    %118 = arith.mulf %113, %115 : vector<8x32xf32>
    %119 = arith.addf %117, %118 : vector<8x32xf32>
    %120 = math.tanh %119 : vector<8x32xf32>
    %121 = arith.mulf %116, %120 : vector<8x32xf32>
    %c24 = arith.constant 24 : index
    %c0_36 = arith.constant 0 : index
    %122 = vector.load %arg9[%c24, %c0_36] : memref<64x32xf32, #tpu.memory_space<vmem>>, vector<8x32xf32>
    tpu.vector_store %arg9[%c24, %c0_36], %121 {strides = array<i32>} : memref<64x32xf32, #tpu.memory_space<vmem>>, vector<8x32xf32>,
    %123 = vector.extract_strided_slice %30 {offsets = [32, 0], sizes = [8, 128], strides = [1, 1]} : vector<64x128xf32> to vector<8x128xf32>
    %cst_37 = arith.constant dense<0.000000e+00> : vector<8x128xf32>
    %124 = tpu.matmul %121, %27, %cst_37 {dimension_numbers = #tpu.dot_dimension_numbers<[1], [0], [0], [1], [0, 0, 1, 1], [], []>} : vector<8x32xf32>, vector<32x128xf32>, vector<8x128xf32> -> vector<8x128xf32>
    %125 = arith.addf %123, %124 : vector<8x128xf32>
    %126 = arith.negf %125 : vector<8x128xf32>
    %127 = math.exp %126 : vector<8x128xf32>
    %cst_38 = arith.constant 1.000000e+00 : f32
    %128 = vector.broadcast %cst_38 : f32 to vector<8x128xf32>
    %129 = arith.addf %128, %127 : vector<8x128xf32>
    %130 = arith.divf %128, %129 : vector<8x128xf32>
    %cst_39 = arith.constant 2.000000e+00 : f32
    %131 = vector.broadcast %cst_39 : f32 to vector<8x128xf32>
    %132 = arith.mulf %131, %130 : vector<8x128xf32>
    %cst_40 = arith.constant 1.000000e+00 : f32
    %133 = vector.broadcast %cst_40 : f32 to vector<8x128xf32>
    %134 = arith.subf %132, %133 : vector<8x128xf32>
    %135 = arith.select %6, %134, %130 : vector<8x128xi1>, vector<8x128xf32>
    %136 = vector.extract_strided_slice %135 {offsets = [0, 0], sizes = [8, 32], strides = [1, 1]} : vector<8x128xf32> to vector<8x32xf32>
    %137 = vector.extract_strided_slice %135 {offsets = [0, 32], sizes = [8, 32], strides = [1, 1]} : vector<8x128xf32> to vector<8x32xf32>
    %138 = vector.extract_strided_slice %135 {offsets = [0, 64], sizes = [8, 32], strides = [1, 1]} : vector<8x128xf32> to vector<8x32xf32>
    %139 = vector.extract_strided_slice %135 {offsets = [0, 96], sizes = [8, 32], strides = [1, 1]} : vector<8x128xf32> to vector<8x32xf32>
    %140 = arith.mulf %137, %119 : vector<8x32xf32>
    %141 = arith.mulf %136, %138 : vector<8x32xf32>
    %142 = arith.addf %140, %141 : vector<8x32xf32>
    %143 = math.tanh %142 : vector<8x32xf32>
    %144 = arith.mulf %139, %143 : vector<8x32xf32>
    %c32 = arith.constant 32 : index
    %c0_41 = arith.constant 0 : index
    %145 = vector.load %arg9[%c32, %c0_41] : memref<64x32xf32, #tpu.memory_space<vmem>>, vector<8x32xf32>
    tpu.vector_store %arg9[%c32, %c0_41], %144 {strides = array<i32>} : memref<64x32xf32, #tpu.memory_space<vmem>>, vector<8x32xf32>,
    %146 = vector.extract_strided_slice %30 {offsets = [40, 0], sizes = [8, 128], strides = [1, 1]} : vector<64x128xf32> to vector<8x128xf32>
    %cst_42 = arith.constant dense<0.000000e+00> : vector<8x128xf32>
    %147 = tpu.matmul %144, %27, %cst_42 {dimension_numbers = #tpu.dot_dimension_numbers<[1], [0], [0], [1], [0, 0, 1, 1], [], []>} : vector<8x32xf32>, vector<32x128xf32>, vector<8x128xf32> -> vector<8x128xf32>
    %148 = arith.addf %146, %147 : vector<8x128xf32>
    %149 = arith.negf %148 : vector<8x128xf32>
    %150 = math.exp %149 : vector<8x128xf32>
    %cst_43 = arith.constant 1.000000e+00 : f32
    %151 = vector.broadcast %cst_43 : f32 to vector<8x128xf32>
    %152 = arith.addf %151, %150 : vector<8x128xf32>
    %153 = arith.divf %151, %152 : vector<8x128xf32>
    %cst_44 = arith.constant 2.000000e+00 : f32
    %154 = vector.broadcast %cst_44 : f32 to vector<8x128xf32>
    %155 = arith.mulf %154, %153 : vector<8x128xf32>
    %cst_45 = arith.constant 1.000000e+00 : f32
    %156 = vector.broadcast %cst_45 : f32 to vector<8x128xf32>
    %157 = arith.subf %155, %156 : vector<8x128xf32>
    %158 = arith.select %6, %157, %153 : vector<8x128xi1>, vector<8x128xf32>
    %159 = vector.extract_strided_slice %158 {offsets = [0, 0], sizes = [8, 32], strides = [1, 1]} : vector<8x128xf32> to vector<8x32xf32>
    %160 = vector.extract_strided_slice %158 {offsets = [0, 32], sizes = [8, 32], strides = [1, 1]} : vector<8x128xf32> to vector<8x32xf32>
    %161 = vector.extract_strided_slice %158 {offsets = [0, 64], sizes = [8, 32], strides = [1, 1]} : vector<8x128xf32> to vector<8x32xf32>
    %162 = vector.extract_strided_slice %158 {offsets = [0, 96], sizes = [8, 32], strides = [1, 1]} : vector<8x128xf32> to vector<8x32xf32>
    %163 = arith.mulf %160, %142 : vector<8x32xf32>
    %164 = arith.mulf %159, %161 : vector<8x32xf32>
    %165 = arith.addf %163, %164 : vector<8x32xf32>
    %166 = math.tanh %165 : vector<8x32xf32>
    %167 = arith.mulf %162, %166 : vector<8x32xf32>
    %c40 = arith.constant 40 : index
    %c0_46 = arith.constant 0 : index
    %168 = vector.load %arg9[%c40, %c0_46] : memref<64x32xf32, #tpu.memory_space<vmem>>, vector<8x32xf32>
    tpu.vector_store %arg9[%c40, %c0_46], %167 {strides = array<i32>} : memref<64x32xf32, #tpu.memory_space<vmem>>, vector<8x32xf32>,
    %169 = vector.extract_strided_slice %30 {offsets = [48, 0], sizes = [8, 128], strides = [1, 1]} : vector<64x128xf32> to vector<8x128xf32>
    %cst_47 = arith.constant dense<0.000000e+00> : vector<8x128xf32>
    %170 = tpu.matmul %167, %27, %cst_47 {dimension_numbers = #tpu.dot_dimension_numbers<[1], [0], [0], [1], [0, 0, 1, 1], [], []>} : vector<8x32xf32>, vector<32x128xf32>, vector<8x128xf32> -> vector<8x128xf32>
    %171 = arith.addf %169, %170 : vector<8x128xf32>
    %172 = arith.negf %171 : vector<8x128xf32>
    %173 = math.exp %172 : vector<8x128xf32>
    %cst_48 = arith.constant 1.000000e+00 : f32
    %174 = vector.broadcast %cst_48 : f32 to vector<8x128xf32>
    %175 = arith.addf %174, %173 : vector<8x128xf32>
    %176 = arith.divf %174, %175 : vector<8x128xf32>
    %cst_49 = arith.constant 2.000000e+00 : f32
    %177 = vector.broadcast %cst_49 : f32 to vector<8x128xf32>
    %178 = arith.mulf %177, %176 : vector<8x128xf32>
    %cst_50 = arith.constant 1.000000e+00 : f32
    %179 = vector.broadcast %cst_50 : f32 to vector<8x128xf32>
    %180 = arith.subf %178, %179 : vector<8x128xf32>
    %181 = arith.select %6, %180, %176 : vector<8x128xi1>, vector<8x128xf32>
    %182 = vector.extract_strided_slice %181 {offsets = [0, 0], sizes = [8, 32], strides = [1, 1]} : vector<8x128xf32> to vector<8x32xf32>
    %183 = vector.extract_strided_slice %181 {offsets = [0, 32], sizes = [8, 32], strides = [1, 1]} : vector<8x128xf32> to vector<8x32xf32>
    %184 = vector.extract_strided_slice %181 {offsets = [0, 64], sizes = [8, 32], strides = [1, 1]} : vector<8x128xf32> to vector<8x32xf32>
    %185 = vector.extract_strided_slice %181 {offsets = [0, 96], sizes = [8, 32], strides = [1, 1]} : vector<8x128xf32> to vector<8x32xf32>
    %186 = arith.mulf %183, %165 : vector<8x32xf32>
    %187 = arith.mulf %182, %184 : vector<8x32xf32>
    %188 = arith.addf %186, %187 : vector<8x32xf32>
    %189 = math.tanh %188 : vector<8x32xf32>
    %190 = arith.mulf %185, %189 : vector<8x32xf32>
    %c48 = arith.constant 48 : index
    %c0_51 = arith.constant 0 : index
    %191 = vector.load %arg9[%c48, %c0_51] : memref<64x32xf32, #tpu.memory_space<vmem>>, vector<8x32xf32>
    tpu.vector_store %arg9[%c48, %c0_51], %190 {strides = array<i32>} : memref<64x32xf32, #tpu.memory_space<vmem>>, vector<8x32xf32>,
    %192 = vector.extract_strided_slice %30 {offsets = [56, 0], sizes = [8, 128], strides = [1, 1]} : vector<64x128xf32> to vector<8x128xf32>
    %cst_52 = arith.constant dense<0.000000e+00> : vector<8x128xf32>
    %193 = tpu.matmul %190, %27, %cst_52 {dimension_numbers = #tpu.dot_dimension_numbers<[1], [0], [0], [1], [0, 0, 1, 1], [], []>} : vector<8x32xf32>, vector<32x128xf32>, vector<8x128xf32> -> vector<8x128xf32>
    %194 = arith.addf %192, %193 : vector<8x128xf32>
    %195 = arith.negf %194 : vector<8x128xf32>
    %196 = math.exp %195 : vector<8x128xf32>
    %cst_53 = arith.constant 1.000000e+00 : f32
    %197 = vector.broadcast %cst_53 : f32 to vector<8x128xf32>
    %198 = arith.addf %197, %196 : vector<8x128xf32>
    %199 = arith.divf %197, %198 : vector<8x128xf32>
    %cst_54 = arith.constant 2.000000e+00 : f32
    %200 = vector.broadcast %cst_54 : f32 to vector<8x128xf32>
    %201 = arith.mulf %200, %199 : vector<8x128xf32>
    %cst_55 = arith.constant 1.000000e+00 : f32
    %202 = vector.broadcast %cst_55 : f32 to vector<8x128xf32>
    %203 = arith.subf %201, %202 : vector<8x128xf32>
    %204 = arith.select %6, %203, %199 : vector<8x128xi1>, vector<8x128xf32>
    %205 = vector.extract_strided_slice %204 {offsets = [0, 0], sizes = [8, 32], strides = [1, 1]} : vector<8x128xf32> to vector<8x32xf32>
    %206 = vector.extract_strided_slice %204 {offsets = [0, 32], sizes = [8, 32], strides = [1, 1]} : vector<8x128xf32> to vector<8x32xf32>
    %207 = vector.extract_strided_slice %204 {offsets = [0, 64], sizes = [8, 32], strides = [1, 1]} : vector<8x128xf32> to vector<8x32xf32>
    %208 = vector.extract_strided_slice %204 {offsets = [0, 96], sizes = [8, 32], strides = [1, 1]} : vector<8x128xf32> to vector<8x32xf32>
    %209 = arith.mulf %206, %188 : vector<8x32xf32>
    %210 = arith.mulf %205, %207 : vector<8x32xf32>
    %211 = arith.addf %209, %210 : vector<8x32xf32>
    %212 = math.tanh %211 : vector<8x32xf32>
    %213 = arith.mulf %208, %212 : vector<8x32xf32>
    %c56 = arith.constant 56 : index
    %c0_56 = arith.constant 0 : index
    %214 = vector.load %arg9[%c56, %c0_56] : memref<64x32xf32, #tpu.memory_space<vmem>>, vector<8x32xf32>
    tpu.vector_store %arg9[%c56, %c0_56], %213 {strides = array<i32>} : memref<64x32xf32, #tpu.memory_space<vmem>>, vector<8x32xf32>,
    %c0_57 = arith.constant 0 : index
    %c0_58 = arith.constant 0 : index
    %215 = vector.load %arg9[%c0_57, %c0_58] : memref<64x32xf32, #tpu.memory_space<vmem>>, vector<64x32xf32>
    %c1 = arith.constant 1 : index
    %c0_59 = arith.constant 0 : index
    %c0_60 = arith.constant 0 : index
    %216 = vector.load %arg3[%c1, %c0_59, %c0_60] : memref<3x64x128xf32, #tpu.memory_space<vmem>>, vector<1x64x128xf32>
    %217 = vector.shape_cast %216 : vector<1x64x128xf32> to vector<64x128xf32>
    %218 = vector.extract_strided_slice %0 {offsets = [1, 0], sizes = [1, 128], strides = [1, 1]} : vector<4x128xf32> to vector<1x128xf32>
    %c1_61 = arith.constant 1 : index
    %c0_62 = arith.constant 0 : index
    %c0_63 = arith.constant 0 : index
    %219 = vector.load %arg6[%c1_61, %c0_62, %c0_63] : memref<6x8x32xf32, #tpu.memory_space<vmem>>, vector<1x8x32xf32>
    %220 = vector.shape_cast %219 : vector<1x8x32xf32> to vector<8x32xf32>
    %c4 = arith.constant 4 : index
    %c0_64 = arith.constant 0 : index
    %c0_65 = arith.constant 0 : index
    %221 = vector.load %arg6[%c4, %c0_64, %c0_65] : memref<6x8x32xf32, #tpu.memory_space<vmem>>, vector<1x8x32xf32>
    %222 = vector.shape_cast %221 : vector<1x8x32xf32> to vector<8x32xf32>
    %223 = vector.extract_strided_slice %217 {offsets = [0, 0], sizes = [32, 128], strides = [1, 1]} : vector<64x128xf32> to vector<32x128xf32>
    %224 = vector.extract_strided_slice %217 {offsets = [32, 0], sizes = [32, 128], strides = [1, 1]} : vector<64x128xf32> to vector<32x128xf32>
    %cst_66 = arith.constant dense<0.000000e+00> : vector<64x128xf32>
    %225 = tpu.matmul %215, %223, %cst_66 {dimension_numbers = #tpu.dot_dimension_numbers<[1], [0], [0], [1], [0, 0, 1, 1], [], []>} : vector<64x32xf32>, vector<32x128xf32>, vector<64x128xf32> -> vector<64x128xf32>
    %226 = vector.broadcast %218 : vector<1x128xf32> to vector<64x128xf32>
    %227 = arith.addf %225, %226 : vector<64x128xf32>
    %228 = vector.extract_strided_slice %227 {offsets = [0, 0], sizes = [8, 128], strides = [1, 1]} : vector<64x128xf32> to vector<8x128xf32>
    %cst_67 = arith.constant dense<0.000000e+00> : vector<8x128xf32>
    %229 = tpu.matmul %220, %224, %cst_67 {dimension_numbers = #tpu.dot_dimension_numbers<[1], [0], [0], [1], [0, 0, 1, 1], [], []>} : vector<8x32xf32>, vector<32x128xf32>, vector<8x128xf32> -> vector<8x128xf32>
    %230 = arith.addf %228, %229 : vector<8x128xf32>
    %231 = arith.negf %230 : vector<8x128xf32>
    %232 = math.exp %231 : vector<8x128xf32>
    %cst_68 = arith.constant 1.000000e+00 : f32
    %233 = vector.broadcast %cst_68 : f32 to vector<8x128xf32>
    %234 = arith.addf %233, %232 : vector<8x128xf32>
    %235 = arith.divf %233, %234 : vector<8x128xf32>
    %cst_69 = arith.constant 2.000000e+00 : f32
    %236 = vector.broadcast %cst_69 : f32 to vector<8x128xf32>
    %237 = arith.mulf %236, %235 : vector<8x128xf32>
    %cst_70 = arith.constant 1.000000e+00 : f32
    %238 = vector.broadcast %cst_70 : f32 to vector<8x128xf32>
    %239 = arith.subf %237, %238 : vector<8x128xf32>
    %240 = arith.select %6, %239, %235 : vector<8x128xi1>, vector<8x128xf32>
    %241 = vector.extract_strided_slice %240 {offsets = [0, 0], sizes = [8, 32], strides = [1, 1]} : vector<8x128xf32> to vector<8x32xf32>
    %242 = vector.extract_strided_slice %240 {offsets = [0, 32], sizes = [8, 32], strides = [1, 1]} : vector<8x128xf32> to vector<8x32xf32>
    %243 = vector.extract_strided_slice %240 {offsets = [0, 64], sizes = [8, 32], strides = [1, 1]} : vector<8x128xf32> to vector<8x32xf32>
    %244 = vector.extract_strided_slice %240 {offsets = [0, 96], sizes = [8, 32], strides = [1, 1]} : vector<8x128xf32> to vector<8x32xf32>
    %245 = arith.mulf %242, %222 : vector<8x32xf32>
    %246 = arith.mulf %241, %243 : vector<8x32xf32>
    %247 = arith.addf %245, %246 : vector<8x32xf32>
    %248 = math.tanh %247 : vector<8x32xf32>
    %249 = arith.mulf %244, %248 : vector<8x32xf32>
    %c0_71 = arith.constant 0 : index
    %c0_72 = arith.constant 0 : index
    %250 = vector.load %arg10[%c0_71, %c0_72] : memref<64x32xf32, #tpu.memory_space<vmem>>, vector<8x32xf32>
    tpu.vector_store %arg10[%c0_71, %c0_72], %249 {strides = array<i32>} : memref<64x32xf32, #tpu.memory_space<vmem>>, vector<8x32xf32>,
    %251 = vector.extract_strided_slice %227 {offsets = [8, 0], sizes = [8, 128], strides = [1, 1]} : vector<64x128xf32> to vector<8x128xf32>
    %cst_73 = arith.constant dense<0.000000e+00> : vector<8x128xf32>
    %252 = tpu.matmul %249, %224, %cst_73 {dimension_numbers = #tpu.dot_dimension_numbers<[1], [0], [0], [1], [0, 0, 1, 1], [], []>} : vector<8x32xf32>, vector<32x128xf32>, vector<8x128xf32> -> vector<8x128xf32>
    %253 = arith.addf %251, %252 : vector<8x128xf32>
    %254 = arith.negf %253 : vector<8x128xf32>
    %255 = math.exp %254 : vector<8x128xf32>
    %cst_74 = arith.constant 1.000000e+00 : f32
    %256 = vector.broadcast %cst_74 : f32 to vector<8x128xf32>
    %257 = arith.addf %256, %255 : vector<8x128xf32>
    %258 = arith.divf %256, %257 : vector<8x128xf32>
    %cst_75 = arith.constant 2.000000e+00 : f32
    %259 = vector.broadcast %cst_75 : f32 to vector<8x128xf32>
    %260 = arith.mulf %259, %258 : vector<8x128xf32>
    %cst_76 = arith.constant 1.000000e+00 : f32
    %261 = vector.broadcast %cst_76 : f32 to vector<8x128xf32>
    %262 = arith.subf %260, %261 : vector<8x128xf32>
    %263 = arith.select %6, %262, %258 : vector<8x128xi1>, vector<8x128xf32>
    %264 = vector.extract_strided_slice %263 {offsets = [0, 0], sizes = [8, 32], strides = [1, 1]} : vector<8x128xf32> to vector<8x32xf32>
    %265 = vector.extract_strided_slice %263 {offsets = [0, 32], sizes = [8, 32], strides = [1, 1]} : vector<8x128xf32> to vector<8x32xf32>
    %266 = vector.extract_strided_slice %263 {offsets = [0, 64], sizes = [8, 32], strides = [1, 1]} : vector<8x128xf32> to vector<8x32xf32>
    %267 = vector.extract_strided_slice %263 {offsets = [0, 96], sizes = [8, 32], strides = [1, 1]} : vector<8x128xf32> to vector<8x32xf32>
    %268 = arith.mulf %265, %247 : vector<8x32xf32>
    %269 = arith.mulf %264, %266 : vector<8x32xf32>
    %270 = arith.addf %268, %269 : vector<8x32xf32>
    %271 = math.tanh %270 : vector<8x32xf32>
    %272 = arith.mulf %267, %271 : vector<8x32xf32>
    %c8_77 = arith.constant 8 : index
    %c0_78 = arith.constant 0 : index
    %273 = vector.load %arg10[%c8_77, %c0_78] : memref<64x32xf32, #tpu.memory_space<vmem>>, vector<8x32xf32>
    tpu.vector_store %arg10[%c8_77, %c0_78], %272 {strides = array<i32>} : memref<64x32xf32, #tpu.memory_space<vmem>>, vector<8x32xf32>,
    %274 = vector.extract_strided_slice %227 {offsets = [16, 0], sizes = [8, 128], strides = [1, 1]} : vector<64x128xf32> to vector<8x128xf32>
    %cst_79 = arith.constant dense<0.000000e+00> : vector<8x128xf32>
    %275 = tpu.matmul %272, %224, %cst_79 {dimension_numbers = #tpu.dot_dimension_numbers<[1], [0], [0], [1], [0, 0, 1, 1], [], []>} : vector<8x32xf32>, vector<32x128xf32>, vector<8x128xf32> -> vector<8x128xf32>
    %276 = arith.addf %274, %275 : vector<8x128xf32>
    %277 = arith.negf %276 : vector<8x128xf32>
    %278 = math.exp %277 : vector<8x128xf32>
    %cst_80 = arith.constant 1.000000e+00 : f32
    %279 = vector.broadcast %cst_80 : f32 to vector<8x128xf32>
    %280 = arith.addf %279, %278 : vector<8x128xf32>
    %281 = arith.divf %279, %280 : vector<8x128xf32>
    %cst_81 = arith.constant 2.000000e+00 : f32
    %282 = vector.broadcast %cst_81 : f32 to vector<8x128xf32>
    %283 = arith.mulf %282, %281 : vector<8x128xf32>
    %cst_82 = arith.constant 1.000000e+00 : f32
    %284 = vector.broadcast %cst_82 : f32 to vector<8x128xf32>
    %285 = arith.subf %283, %284 : vector<8x128xf32>
    %286 = arith.select %6, %285, %281 : vector<8x128xi1>, vector<8x128xf32>
    %287 = vector.extract_strided_slice %286 {offsets = [0, 0], sizes = [8, 32], strides = [1, 1]} : vector<8x128xf32> to vector<8x32xf32>
    %288 = vector.extract_strided_slice %286 {offsets = [0, 32], sizes = [8, 32], strides = [1, 1]} : vector<8x128xf32> to vector<8x32xf32>
    %289 = vector.extract_strided_slice %286 {offsets = [0, 64], sizes = [8, 32], strides = [1, 1]} : vector<8x128xf32> to vector<8x32xf32>
    %290 = vector.extract_strided_slice %286 {offsets = [0, 96], sizes = [8, 32], strides = [1, 1]} : vector<8x128xf32> to vector<8x32xf32>
    %291 = arith.mulf %288, %270 : vector<8x32xf32>
    %292 = arith.mulf %287, %289 : vector<8x32xf32>
    %293 = arith.addf %291, %292 : vector<8x32xf32>
    %294 = math.tanh %293 : vector<8x32xf32>
    %295 = arith.mulf %290, %294 : vector<8x32xf32>
    %c16_83 = arith.constant 16 : index
    %c0_84 = arith.constant 0 : index
    %296 = vector.load %arg10[%c16_83, %c0_84] : memref<64x32xf32, #tpu.memory_space<vmem>>, vector<8x32xf32>
    tpu.vector_store %arg10[%c16_83, %c0_84], %295 {strides = array<i32>} : memref<64x32xf32, #tpu.memory_space<vmem>>, vector<8x32xf32>,
    %297 = vector.extract_strided_slice %227 {offsets = [24, 0], sizes = [8, 128], strides = [1, 1]} : vector<64x128xf32> to vector<8x128xf32>
    %cst_85 = arith.constant dense<0.000000e+00> : vector<8x128xf32>
    %298 = tpu.matmul %295, %224, %cst_85 {dimension_numbers = #tpu.dot_dimension_numbers<[1], [0], [0], [1], [0, 0, 1, 1], [], []>} : vector<8x32xf32>, vector<32x128xf32>, vector<8x128xf32> -> vector<8x128xf32>
    %299 = arith.addf %297, %298 : vector<8x128xf32>
    %300 = arith.negf %299 : vector<8x128xf32>
    %301 = math.exp %300 : vector<8x128xf32>
    %cst_86 = arith.constant 1.000000e+00 : f32
    %302 = vector.broadcast %cst_86 : f32 to vector<8x128xf32>
    %303 = arith.addf %302, %301 : vector<8x128xf32>
    %304 = arith.divf %302, %303 : vector<8x128xf32>
    %cst_87 = arith.constant 2.000000e+00 : f32
    %305 = vector.broadcast %cst_87 : f32 to vector<8x128xf32>
    %306 = arith.mulf %305, %304 : vector<8x128xf32>
    %cst_88 = arith.constant 1.000000e+00 : f32
    %307 = vector.broadcast %cst_88 : f32 to vector<8x128xf32>
    %308 = arith.subf %306, %307 : vector<8x128xf32>
    %309 = arith.select %6, %308, %304 : vector<8x128xi1>, vector<8x128xf32>
    %310 = vector.extract_strided_slice %309 {offsets = [0, 0], sizes = [8, 32], strides = [1, 1]} : vector<8x128xf32> to vector<8x32xf32>
    %311 = vector.extract_strided_slice %309 {offsets = [0, 32], sizes = [8, 32], strides = [1, 1]} : vector<8x128xf32> to vector<8x32xf32>
    %312 = vector.extract_strided_slice %309 {offsets = [0, 64], sizes = [8, 32], strides = [1, 1]} : vector<8x128xf32> to vector<8x32xf32>
    %313 = vector.extract_strided_slice %309 {offsets = [0, 96], sizes = [8, 32], strides = [1, 1]} : vector<8x128xf32> to vector<8x32xf32>
    %314 = arith.mulf %311, %293 : vector<8x32xf32>
    %315 = arith.mulf %310, %312 : vector<8x32xf32>
    %316 = arith.addf %314, %315 : vector<8x32xf32>
    %317 = math.tanh %316 : vector<8x32xf32>
    %318 = arith.mulf %313, %317 : vector<8x32xf32>
    %c24_89 = arith.constant 24 : index
    %c0_90 = arith.constant 0 : index
    %319 = vector.load %arg10[%c24_89, %c0_90] : memref<64x32xf32, #tpu.memory_space<vmem>>, vector<8x32xf32>
    tpu.vector_store %arg10[%c24_89, %c0_90], %318 {strides = array<i32>} : memref<64x32xf32, #tpu.memory_space<vmem>>, vector<8x32xf32>,
    %320 = vector.extract_strided_slice %227 {offsets = [32, 0], sizes = [8, 128], strides = [1, 1]} : vector<64x128xf32> to vector<8x128xf32>
    %cst_91 = arith.constant dense<0.000000e+00> : vector<8x128xf32>
    %321 = tpu.matmul %318, %224, %cst_91 {dimension_numbers = #tpu.dot_dimension_numbers<[1], [0], [0], [1], [0, 0, 1, 1], [], []>} : vector<8x32xf32>, vector<32x128xf32>, vector<8x128xf32> -> vector<8x128xf32>
    %322 = arith.addf %320, %321 : vector<8x128xf32>
    %323 = arith.negf %322 : vector<8x128xf32>
    %324 = math.exp %323 : vector<8x128xf32>
    %cst_92 = arith.constant 1.000000e+00 : f32
    %325 = vector.broadcast %cst_92 : f32 to vector<8x128xf32>
    %326 = arith.addf %325, %324 : vector<8x128xf32>
    %327 = arith.divf %325, %326 : vector<8x128xf32>
    %cst_93 = arith.constant 2.000000e+00 : f32
    %328 = vector.broadcast %cst_93 : f32 to vector<8x128xf32>
    %329 = arith.mulf %328, %327 : vector<8x128xf32>
    %cst_94 = arith.constant 1.000000e+00 : f32
    %330 = vector.broadcast %cst_94 : f32 to vector<8x128xf32>
    %331 = arith.subf %329, %330 : vector<8x128xf32>
    %332 = arith.select %6, %331, %327 : vector<8x128xi1>, vector<8x128xf32>
    %333 = vector.extract_strided_slice %332 {offsets = [0, 0], sizes = [8, 32], strides = [1, 1]} : vector<8x128xf32> to vector<8x32xf32>
    %334 = vector.extract_strided_slice %332 {offsets = [0, 32], sizes = [8, 32], strides = [1, 1]} : vector<8x128xf32> to vector<8x32xf32>
    %335 = vector.extract_strided_slice %332 {offsets = [0, 64], sizes = [8, 32], strides = [1, 1]} : vector<8x128xf32> to vector<8x32xf32>
    %336 = vector.extract_strided_slice %332 {offsets = [0, 96], sizes = [8, 32], strides = [1, 1]} : vector<8x128xf32> to vector<8x32xf32>
    %337 = arith.mulf %334, %316 : vector<8x32xf32>
    %338 = arith.mulf %333, %335 : vector<8x32xf32>
    %339 = arith.addf %337, %338 : vector<8x32xf32>
    %340 = math.tanh %339 : vector<8x32xf32>
    %341 = arith.mulf %336, %340 : vector<8x32xf32>
    %c32_95 = arith.constant 32 : index
    %c0_96 = arith.constant 0 : index
    %342 = vector.load %arg10[%c32_95, %c0_96] : memref<64x32xf32, #tpu.memory_space<vmem>>, vector<8x32xf32>
    tpu.vector_store %arg10[%c32_95, %c0_96], %341 {strides = array<i32>} : memref<64x32xf32, #tpu.memory_space<vmem>>, vector<8x32xf32>,
    %343 = vector.extract_strided_slice %227 {offsets = [40, 0], sizes = [8, 128], strides = [1, 1]} : vector<64x128xf32> to vector<8x128xf32>
    %cst_97 = arith.constant dense<0.000000e+00> : vector<8x128xf32>
    %344 = tpu.matmul %341, %224, %cst_97 {dimension_numbers = #tpu.dot_dimension_numbers<[1], [0], [0], [1], [0, 0, 1, 1], [], []>} : vector<8x32xf32>, vector<32x128xf32>, vector<8x128xf32> -> vector<8x128xf32>
    %345 = arith.addf %343, %344 : vector<8x128xf32>
    %346 = arith.negf %345 : vector<8x128xf32>
    %347 = math.exp %346 : vector<8x128xf32>
    %cst_98 = arith.constant 1.000000e+00 : f32
    %348 = vector.broadcast %cst_98 : f32 to vector<8x128xf32>
    %349 = arith.addf %348, %347 : vector<8x128xf32>
    %350 = arith.divf %348, %349 : vector<8x128xf32>
    %cst_99 = arith.constant 2.000000e+00 : f32
    %351 = vector.broadcast %cst_99 : f32 to vector<8x128xf32>
    %352 = arith.mulf %351, %350 : vector<8x128xf32>
    %cst_100 = arith.constant 1.000000e+00 : f32
    %353 = vector.broadcast %cst_100 : f32 to vector<8x128xf32>
    %354 = arith.subf %352, %353 : vector<8x128xf32>
    %355 = arith.select %6, %354, %350 : vector<8x128xi1>, vector<8x128xf32>
    %356 = vector.extract_strided_slice %355 {offsets = [0, 0], sizes = [8, 32], strides = [1, 1]} : vector<8x128xf32> to vector<8x32xf32>
    %357 = vector.extract_strided_slice %355 {offsets = [0, 32], sizes = [8, 32], strides = [1, 1]} : vector<8x128xf32> to vector<8x32xf32>
    %358 = vector.extract_strided_slice %355 {offsets = [0, 64], sizes = [8, 32], strides = [1, 1]} : vector<8x128xf32> to vector<8x32xf32>
    %359 = vector.extract_strided_slice %355 {offsets = [0, 96], sizes = [8, 32], strides = [1, 1]} : vector<8x128xf32> to vector<8x32xf32>
    %360 = arith.mulf %357, %339 : vector<8x32xf32>
    %361 = arith.mulf %356, %358 : vector<8x32xf32>
    %362 = arith.addf %360, %361 : vector<8x32xf32>
    %363 = math.tanh %362 : vector<8x32xf32>
    %364 = arith.mulf %359, %363 : vector<8x32xf32>
    %c40_101 = arith.constant 40 : index
    %c0_102 = arith.constant 0 : index
    %365 = vector.load %arg10[%c40_101, %c0_102] : memref<64x32xf32, #tpu.memory_space<vmem>>, vector<8x32xf32>
    tpu.vector_store %arg10[%c40_101, %c0_102], %364 {strides = array<i32>} : memref<64x32xf32, #tpu.memory_space<vmem>>, vector<8x32xf32>,
    %366 = vector.extract_strided_slice %227 {offsets = [48, 0], sizes = [8, 128], strides = [1, 1]} : vector<64x128xf32> to vector<8x128xf32>
    %cst_103 = arith.constant dense<0.000000e+00> : vector<8x128xf32>
    %367 = tpu.matmul %364, %224, %cst_103 {dimension_numbers = #tpu.dot_dimension_numbers<[1], [0], [0], [1], [0, 0, 1, 1], [], []>} : vector<8x32xf32>, vector<32x128xf32>, vector<8x128xf32> -> vector<8x128xf32>
    %368 = arith.addf %366, %367 : vector<8x128xf32>
    %369 = arith.negf %368 : vector<8x128xf32>
    %370 = math.exp %369 : vector<8x128xf32>
    %cst_104 = arith.constant 1.000000e+00 : f32
    %371 = vector.broadcast %cst_104 : f32 to vector<8x128xf32>
    %372 = arith.addf %371, %370 : vector<8x128xf32>
    %373 = arith.divf %371, %372 : vector<8x128xf32>
    %cst_105 = arith.constant 2.000000e+00 : f32
    %374 = vector.broadcast %cst_105 : f32 to vector<8x128xf32>
    %375 = arith.mulf %374, %373 : vector<8x128xf32>
    %cst_106 = arith.constant 1.000000e+00 : f32
    %376 = vector.broadcast %cst_106 : f32 to vector<8x128xf32>
    %377 = arith.subf %375, %376 : vector<8x128xf32>
    %378 = arith.select %6, %377, %373 : vector<8x128xi1>, vector<8x128xf32>
    %379 = vector.extract_strided_slice %378 {offsets = [0, 0], sizes = [8, 32], strides = [1, 1]} : vector<8x128xf32> to vector<8x32xf32>
    %380 = vector.extract_strided_slice %378 {offsets = [0, 32], sizes = [8, 32], strides = [1, 1]} : vector<8x128xf32> to vector<8x32xf32>
    %381 = vector.extract_strided_slice %378 {offsets = [0, 64], sizes = [8, 32], strides = [1, 1]} : vector<8x128xf32> to vector<8x32xf32>
    %382 = vector.extract_strided_slice %378 {offsets = [0, 96], sizes = [8, 32], strides = [1, 1]} : vector<8x128xf32> to vector<8x32xf32>
    %383 = arith.mulf %380, %362 : vector<8x32xf32>
    %384 = arith.mulf %379, %381 : vector<8x32xf32>
    %385 = arith.addf %383, %384 : vector<8x32xf32>
    %386 = math.tanh %385 : vector<8x32xf32>
    %387 = arith.mulf %382, %386 : vector<8x32xf32>
    %c48_107 = arith.constant 48 : index
    %c0_108 = arith.constant 0 : index
    %388 = vector.load %arg10[%c48_107, %c0_108] : memref<64x32xf32, #tpu.memory_space<vmem>>, vector<8x32xf32>
    tpu.vector_store %arg10[%c48_107, %c0_108], %387 {strides = array<i32>} : memref<64x32xf32, #tpu.memory_space<vmem>>, vector<8x32xf32>,
    %389 = vector.extract_strided_slice %227 {offsets = [56, 0], sizes = [8, 128], strides = [1, 1]} : vector<64x128xf32> to vector<8x128xf32>
    %cst_109 = arith.constant dense<0.000000e+00> : vector<8x128xf32>
    %390 = tpu.matmul %387, %224, %cst_109 {dimension_numbers = #tpu.dot_dimension_numbers<[1], [0], [0], [1], [0, 0, 1, 1], [], []>} : vector<8x32xf32>, vector<32x128xf32>, vector<8x128xf32> -> vector<8x128xf32>
    %391 = arith.addf %389, %390 : vector<8x128xf32>
    %392 = arith.negf %391 : vector<8x128xf32>
    %393 = math.exp %392 : vector<8x128xf32>
    %cst_110 = arith.constant 1.000000e+00 : f32
    %394 = vector.broadcast %cst_110 : f32 to vector<8x128xf32>
    %395 = arith.addf %394, %393 : vector<8x128xf32>
    %396 = arith.divf %394, %395 : vector<8x128xf32>
    %cst_111 = arith.constant 2.000000e+00 : f32
    %397 = vector.broadcast %cst_111 : f32 to vector<8x128xf32>
    %398 = arith.mulf %397, %396 : vector<8x128xf32>
    %cst_112 = arith.constant 1.000000e+00 : f32
    %399 = vector.broadcast %cst_112 : f32 to vector<8x128xf32>
    %400 = arith.subf %398, %399 : vector<8x128xf32>
    %401 = arith.select %6, %400, %396 : vector<8x128xi1>, vector<8x128xf32>
    %402 = vector.extract_strided_slice %401 {offsets = [0, 0], sizes = [8, 32], strides = [1, 1]} : vector<8x128xf32> to vector<8x32xf32>
    %403 = vector.extract_strided_slice %401 {offsets = [0, 32], sizes = [8, 32], strides = [1, 1]} : vector<8x128xf32> to vector<8x32xf32>
    %404 = vector.extract_strided_slice %401 {offsets = [0, 64], sizes = [8, 32], strides = [1, 1]} : vector<8x128xf32> to vector<8x32xf32>
    %405 = vector.extract_strided_slice %401 {offsets = [0, 96], sizes = [8, 32], strides = [1, 1]} : vector<8x128xf32> to vector<8x32xf32>
    %406 = arith.mulf %403, %385 : vector<8x32xf32>
    %407 = arith.mulf %402, %404 : vector<8x32xf32>
    %408 = arith.addf %406, %407 : vector<8x32xf32>
    %409 = math.tanh %408 : vector<8x32xf32>
    %410 = arith.mulf %405, %409 : vector<8x32xf32>
    %c56_113 = arith.constant 56 : index
    %c0_114 = arith.constant 0 : index
    %411 = vector.load %arg10[%c56_113, %c0_114] : memref<64x32xf32, #tpu.memory_space<vmem>>, vector<8x32xf32>
    tpu.vector_store %arg10[%c56_113, %c0_114], %410 {strides = array<i32>} : memref<64x32xf32, #tpu.memory_space<vmem>>, vector<8x32xf32>,
    %c0_115 = arith.constant 0 : index
    %c0_116 = arith.constant 0 : index
    %412 = vector.load %arg10[%c0_115, %c0_116] : memref<64x32xf32, #tpu.memory_space<vmem>>, vector<64x32xf32>
    %c0_117 = arith.constant 0 : index
    %c0_118 = arith.constant 0 : index
    %413 = vector.load %arg5[%c0_117, %c0_118] : memref<64x96xf32, #tpu.memory_space<vmem>>, vector<64x96xf32>
    %414 = vector.extract_strided_slice %413 {offsets = [0, 0], sizes = [64, 64], strides = [1, 1]} : vector<64x96xf32> to vector<64x64xf32>
    %415 = vector.extract_strided_slice %413 {offsets = [0, 64], sizes = [32, 32], strides = [1, 1]} : vector<64x96xf32> to vector<32x32xf32>
    %416 = vector.extract_strided_slice %413 {offsets = [32, 64], sizes = [32, 32], strides = [1, 1]} : vector<64x96xf32> to vector<32x32xf32>
    %417 = tpu.concatenate %412, %215 in 1 : vector<64x32xf32>, vector<64x32xf32> -> vector<64x64xf32>
    %cst_119 = arith.constant dense<0.000000e+00> : vector<64x64xf32>
    %418 = tpu.matmul %417, %414, %cst_119 {dimension_numbers = #tpu.dot_dimension_numbers<[1], [0], [0], [1], [0, 0, 1, 1], [], []>} : vector<64x64xf32>, vector<64x64xf32>, vector<64x64xf32> -> vector<64x64xf32>
    %419 = vector.extract_strided_slice %0 {offsets = [3, 0], sizes = [1, 64], strides = [1, 1]} : vector<4x128xf32> to vector<1x64xf32>
    %420 = vector.broadcast %419 : vector<1x64xf32> to vector<64x64xf32>
    %421 = arith.addf %418, %420 : vector<64x64xf32>
    %422 = vector.extract_strided_slice %421 {offsets = [0, 0], sizes = [64, 32], strides = [1, 1]} : vector<64x64xf32> to vector<64x32xf32>
    %423 = vector.extract_strided_slice %421 {offsets = [0, 32], sizes = [64, 32], strides = [1, 1]} : vector<64x64xf32> to vector<64x32xf32>
    %cst_120 = arith.constant dense<0.000000e+00> : vector<64x64xf32>
    %424 = tpu.matmul %422, %423, %cst_120 {dimension_numbers = #tpu.dot_dimension_numbers<[1], [1], [0], [0], [0, 0, 1, 0], [], []>} : vector<64x32xf32>, vector<64x32xf32>, vector<64x64xf32> -> vector<64x64xf32>
    %425 = tpu.iota {dimensions = array<i32: 0>} : vector<64x64xi32>
    %426 = tpu.iota {dimensions = array<i32: 1>} : vector<64x64xi32>
    %c7_i32 = arith.constant 7 : i32
    %427 = vector.broadcast %c7_i32 : i32 to vector<64x64xi32>
    %428 = arith.andi %425, %427 : vector<64x64xi32>
    %c7_i32_121 = arith.constant 7 : i32
    %429 = vector.broadcast %c7_i32_121 : i32 to vector<64x64xi32>
    %430 = arith.andi %426, %429 : vector<64x64xi32>
    %431 = arith.cmpi eq, %428, %430 : vector<64x64xi32>
    %cst_122 = arith.constant -1.000000e+30 : f32
    %432 = vector.broadcast %cst_122 : f32 to vector<64x64xf32>
    %433 = arith.select %431, %424, %432 : vector<64x64xi1>, vector<64x64xf32>
    %cst_123 = arith.constant dense<0xFF800000> : vector<64xf32>
    %434 = vector.multi_reduction <maximumf>, %433, %cst_123 [1] : vector<64x64xf32> to vector<64xf32>
    %435 = vector.shape_cast %434 : vector<64xf32> to vector<64x1xf32>
    %436 = vector.broadcast %435 : vector<64x1xf32> to vector<64x64xf32>
    %437 = arith.subf %433, %436 : vector<64x64xf32>
    %438 = math.exp %437 : vector<64x64xf32>
    %cst_124 = arith.constant dense<0.000000e+00> : vector<64xf32>
    %439 = vector.multi_reduction <add>, %438, %cst_124 [1] : vector<64x64xf32> to vector<64xf32>
    %440 = vector.shape_cast %439 : vector<64xf32> to vector<64x1xf32>
    %441 = tpu.reciprocal %440 {approx = true} : vector<64x1xf32> -> vector<64x1xf32>
    %442 = vector.broadcast %441 : vector<64x1xf32> to vector<64x64xf32>
    %443 = arith.mulf %438, %442 : vector<64x64xf32>
    %cst_125 = arith.constant dense<0.000000e+00> : vector<64x32xf32>
    %444 = tpu.matmul %443, %215, %cst_125 {dimension_numbers = #tpu.dot_dimension_numbers<[1], [0], [0], [1], [0, 0, 1, 1], [], []>} : vector<64x64xf32>, vector<64x32xf32>, vector<64x32xf32> -> vector<64x32xf32>
    %cst_126 = arith.constant dense<0.000000e+00> : vector<64x32xf32>
    %445 = tpu.matmul %412, %415, %cst_126 {dimension_numbers = #tpu.dot_dimension_numbers<[1], [0], [0], [1], [0, 0, 1, 1], [], []>} : vector<64x32xf32>, vector<32x32xf32>, vector<64x32xf32> -> vector<64x32xf32>
    %cst_127 = arith.constant dense<0.000000e+00> : vector<64x32xf32>
    %446 = tpu.matmul %444, %416, %cst_127 {dimension_numbers = #tpu.dot_dimension_numbers<[1], [0], [0], [1], [0, 0, 1, 1], [], []>} : vector<64x32xf32>, vector<32x32xf32>, vector<64x32xf32> -> vector<64x32xf32>
    %447 = arith.addf %445, %446 : vector<64x32xf32>
    %448 = vector.extract_strided_slice %0 {offsets = [3, 64], sizes = [1, 32], strides = [1, 1]} : vector<4x128xf32> to vector<1x32xf32>
    %449 = vector.broadcast %448 : vector<1x32xf32> to vector<64x32xf32>
    %450 = arith.addf %447, %449 : vector<64x32xf32>
    %cst_128 = arith.constant 0.000000e+00 : f32
    %451 = vector.broadcast %cst_128 : f32 to vector<64x32xf32>
    %452 = arith.maximumf %450, %451 : vector<64x32xf32>
    %c2 = arith.constant 2 : index
    %c0_129 = arith.constant 0 : index
    %c0_130 = arith.constant 0 : index
    %453 = vector.load %arg3[%c2, %c0_129, %c0_130] : memref<3x64x128xf32, #tpu.memory_space<vmem>>, vector<1x64x128xf32>
    %454 = vector.shape_cast %453 : vector<1x64x128xf32> to vector<64x128xf32>
    %455 = vector.extract_strided_slice %0 {offsets = [2, 0], sizes = [1, 128], strides = [1, 1]} : vector<4x128xf32> to vector<1x128xf32>
    %c2_131 = arith.constant 2 : index
    %c0_132 = arith.constant 0 : index
    %c0_133 = arith.constant 0 : index
    %456 = vector.load %arg6[%c2_131, %c0_132, %c0_133] : memref<6x8x32xf32, #tpu.memory_space<vmem>>, vector<1x8x32xf32>
    %457 = vector.shape_cast %456 : vector<1x8x32xf32> to vector<8x32xf32>
    %c5 = arith.constant 5 : index
    %c0_134 = arith.constant 0 : index
    %c0_135 = arith.constant 0 : index
    %458 = vector.load %arg6[%c5, %c0_134, %c0_135] : memref<6x8x32xf32, #tpu.memory_space<vmem>>, vector<1x8x32xf32>
    %459 = vector.shape_cast %458 : vector<1x8x32xf32> to vector<8x32xf32>
    %460 = vector.extract_strided_slice %454 {offsets = [0, 0], sizes = [32, 128], strides = [1, 1]} : vector<64x128xf32> to vector<32x128xf32>
    %461 = vector.extract_strided_slice %454 {offsets = [32, 0], sizes = [32, 128], strides = [1, 1]} : vector<64x128xf32> to vector<32x128xf32>
    %cst_136 = arith.constant dense<0.000000e+00> : vector<64x128xf32>
    %462 = tpu.matmul %452, %460, %cst_136 {dimension_numbers = #tpu.dot_dimension_numbers<[1], [0], [0], [1], [0, 0, 1, 1], [], []>} : vector<64x32xf32>, vector<32x128xf32>, vector<64x128xf32> -> vector<64x128xf32>
    %463 = vector.broadcast %455 : vector<1x128xf32> to vector<64x128xf32>
    %464 = arith.addf %462, %463 : vector<64x128xf32>
    %465 = vector.extract_strided_slice %464 {offsets = [0, 0], sizes = [8, 128], strides = [1, 1]} : vector<64x128xf32> to vector<8x128xf32>
    %cst_137 = arith.constant dense<0.000000e+00> : vector<8x128xf32>
    %466 = tpu.matmul %457, %461, %cst_137 {dimension_numbers = #tpu.dot_dimension_numbers<[1], [0], [0], [1], [0, 0, 1, 1], [], []>} : vector<8x32xf32>, vector<32x128xf32>, vector<8x128xf32> -> vector<8x128xf32>
    %467 = arith.addf %465, %466 : vector<8x128xf32>
    %468 = arith.negf %467 : vector<8x128xf32>
    %469 = math.exp %468 : vector<8x128xf32>
    %cst_138 = arith.constant 1.000000e+00 : f32
    %470 = vector.broadcast %cst_138 : f32 to vector<8x128xf32>
    %471 = arith.addf %470, %469 : vector<8x128xf32>
    %472 = arith.divf %470, %471 : vector<8x128xf32>
    %cst_139 = arith.constant 2.000000e+00 : f32
    %473 = vector.broadcast %cst_139 : f32 to vector<8x128xf32>
    %474 = arith.mulf %473, %472 : vector<8x128xf32>
    %cst_140 = arith.constant 1.000000e+00 : f32
    %475 = vector.broadcast %cst_140 : f32 to vector<8x128xf32>
    %476 = arith.subf %474, %475 : vector<8x128xf32>
    %477 = arith.select %6, %476, %472 : vector<8x128xi1>, vector<8x128xf32>
    %478 = vector.extract_strided_slice %477 {offsets = [0, 0], sizes = [8, 32], strides = [1, 1]} : vector<8x128xf32> to vector<8x32xf32>
    %479 = vector.extract_strided_slice %477 {offsets = [0, 32], sizes = [8, 32], strides = [1, 1]} : vector<8x128xf32> to vector<8x32xf32>
    %480 = vector.extract_strided_slice %477 {offsets = [0, 64], sizes = [8, 32], strides = [1, 1]} : vector<8x128xf32> to vector<8x32xf32>
    %481 = vector.extract_strided_slice %477 {offsets = [0, 96], sizes = [8, 32], strides = [1, 1]} : vector<8x128xf32> to vector<8x32xf32>
    %482 = arith.mulf %479, %459 : vector<8x32xf32>
    %483 = arith.mulf %478, %480 : vector<8x32xf32>
    %484 = arith.addf %482, %483 : vector<8x32xf32>
    %485 = math.tanh %484 : vector<8x32xf32>
    %486 = arith.mulf %481, %485 : vector<8x32xf32>
    %c0_141 = arith.constant 0 : index
    %c0_142 = arith.constant 0 : index
    %487 = vector.load %arg11[%c0_141, %c0_142] : memref<64x32xf32, #tpu.memory_space<vmem>>, vector<8x32xf32>
    tpu.vector_store %arg11[%c0_141, %c0_142], %486 {strides = array<i32>} : memref<64x32xf32, #tpu.memory_space<vmem>>, vector<8x32xf32>,
    %488 = vector.extract_strided_slice %464 {offsets = [8, 0], sizes = [8, 128], strides = [1, 1]} : vector<64x128xf32> to vector<8x128xf32>
    %cst_143 = arith.constant dense<0.000000e+00> : vector<8x128xf32>
    %489 = tpu.matmul %486, %461, %cst_143 {dimension_numbers = #tpu.dot_dimension_numbers<[1], [0], [0], [1], [0, 0, 1, 1], [], []>} : vector<8x32xf32>, vector<32x128xf32>, vector<8x128xf32> -> vector<8x128xf32>
    %490 = arith.addf %488, %489 : vector<8x128xf32>
    %491 = arith.negf %490 : vector<8x128xf32>
    %492 = math.exp %491 : vector<8x128xf32>
    %cst_144 = arith.constant 1.000000e+00 : f32
    %493 = vector.broadcast %cst_144 : f32 to vector<8x128xf32>
    %494 = arith.addf %493, %492 : vector<8x128xf32>
    %495 = arith.divf %493, %494 : vector<8x128xf32>
    %cst_145 = arith.constant 2.000000e+00 : f32
    %496 = vector.broadcast %cst_145 : f32 to vector<8x128xf32>
    %497 = arith.mulf %496, %495 : vector<8x128xf32>
    %cst_146 = arith.constant 1.000000e+00 : f32
    %498 = vector.broadcast %cst_146 : f32 to vector<8x128xf32>
    %499 = arith.subf %497, %498 : vector<8x128xf32>
    %500 = arith.select %6, %499, %495 : vector<8x128xi1>, vector<8x128xf32>
    %501 = vector.extract_strided_slice %500 {offsets = [0, 0], sizes = [8, 32], strides = [1, 1]} : vector<8x128xf32> to vector<8x32xf32>
    %502 = vector.extract_strided_slice %500 {offsets = [0, 32], sizes = [8, 32], strides = [1, 1]} : vector<8x128xf32> to vector<8x32xf32>
    %503 = vector.extract_strided_slice %500 {offsets = [0, 64], sizes = [8, 32], strides = [1, 1]} : vector<8x128xf32> to vector<8x32xf32>
    %504 = vector.extract_strided_slice %500 {offsets = [0, 96], sizes = [8, 32], strides = [1, 1]} : vector<8x128xf32> to vector<8x32xf32>
    %505 = arith.mulf %502, %484 : vector<8x32xf32>
    %506 = arith.mulf %501, %503 : vector<8x32xf32>
    %507 = arith.addf %505, %506 : vector<8x32xf32>
    %508 = math.tanh %507 : vector<8x32xf32>
    %509 = arith.mulf %504, %508 : vector<8x32xf32>
    %c8_147 = arith.constant 8 : index
    %c0_148 = arith.constant 0 : index
    %510 = vector.load %arg11[%c8_147, %c0_148] : memref<64x32xf32, #tpu.memory_space<vmem>>, vector<8x32xf32>
    tpu.vector_store %arg11[%c8_147, %c0_148], %509 {strides = array<i32>} : memref<64x32xf32, #tpu.memory_space<vmem>>, vector<8x32xf32>,
    %511 = vector.extract_strided_slice %464 {offsets = [16, 0], sizes = [8, 128], strides = [1, 1]} : vector<64x128xf32> to vector<8x128xf32>
    %cst_149 = arith.constant dense<0.000000e+00> : vector<8x128xf32>
    %512 = tpu.matmul %509, %461, %cst_149 {dimension_numbers = #tpu.dot_dimension_numbers<[1], [0], [0], [1], [0, 0, 1, 1], [], []>} : vector<8x32xf32>, vector<32x128xf32>, vector<8x128xf32> -> vector<8x128xf32>
    %513 = arith.addf %511, %512 : vector<8x128xf32>
    %514 = arith.negf %513 : vector<8x128xf32>
    %515 = math.exp %514 : vector<8x128xf32>
    %cst_150 = arith.constant 1.000000e+00 : f32
    %516 = vector.broadcast %cst_150 : f32 to vector<8x128xf32>
    %517 = arith.addf %516, %515 : vector<8x128xf32>
    %518 = arith.divf %516, %517 : vector<8x128xf32>
    %cst_151 = arith.constant 2.000000e+00 : f32
    %519 = vector.broadcast %cst_151 : f32 to vector<8x128xf32>
    %520 = arith.mulf %519, %518 : vector<8x128xf32>
    %cst_152 = arith.constant 1.000000e+00 : f32
    %521 = vector.broadcast %cst_152 : f32 to vector<8x128xf32>
    %522 = arith.subf %520, %521 : vector<8x128xf32>
    %523 = arith.select %6, %522, %518 : vector<8x128xi1>, vector<8x128xf32>
    %524 = vector.extract_strided_slice %523 {offsets = [0, 0], sizes = [8, 32], strides = [1, 1]} : vector<8x128xf32> to vector<8x32xf32>
    %525 = vector.extract_strided_slice %523 {offsets = [0, 32], sizes = [8, 32], strides = [1, 1]} : vector<8x128xf32> to vector<8x32xf32>
    %526 = vector.extract_strided_slice %523 {offsets = [0, 64], sizes = [8, 32], strides = [1, 1]} : vector<8x128xf32> to vector<8x32xf32>
    %527 = vector.extract_strided_slice %523 {offsets = [0, 96], sizes = [8, 32], strides = [1, 1]} : vector<8x128xf32> to vector<8x32xf32>
    %528 = arith.mulf %525, %507 : vector<8x32xf32>
    %529 = arith.mulf %524, %526 : vector<8x32xf32>
    %530 = arith.addf %528, %529 : vector<8x32xf32>
    %531 = math.tanh %530 : vector<8x32xf32>
    %532 = arith.mulf %527, %531 : vector<8x32xf32>
    %c16_153 = arith.constant 16 : index
    %c0_154 = arith.constant 0 : index
    %533 = vector.load %arg11[%c16_153, %c0_154] : memref<64x32xf32, #tpu.memory_space<vmem>>, vector<8x32xf32>
    tpu.vector_store %arg11[%c16_153, %c0_154], %532 {strides = array<i32>} : memref<64x32xf32, #tpu.memory_space<vmem>>, vector<8x32xf32>,
    %534 = vector.extract_strided_slice %464 {offsets = [24, 0], sizes = [8, 128], strides = [1, 1]} : vector<64x128xf32> to vector<8x128xf32>
    %cst_155 = arith.constant dense<0.000000e+00> : vector<8x128xf32>
    %535 = tpu.matmul %532, %461, %cst_155 {dimension_numbers = #tpu.dot_dimension_numbers<[1], [0], [0], [1], [0, 0, 1, 1], [], []>} : vector<8x32xf32>, vector<32x128xf32>, vector<8x128xf32> -> vector<8x128xf32>
    %536 = arith.addf %534, %535 : vector<8x128xf32>
    %537 = arith.negf %536 : vector<8x128xf32>
    %538 = math.exp %537 : vector<8x128xf32>
    %cst_156 = arith.constant 1.000000e+00 : f32
    %539 = vector.broadcast %cst_156 : f32 to vector<8x128xf32>
    %540 = arith.addf %539, %538 : vector<8x128xf32>
    %541 = arith.divf %539, %540 : vector<8x128xf32>
    %cst_157 = arith.constant 2.000000e+00 : f32
    %542 = vector.broadcast %cst_157 : f32 to vector<8x128xf32>
    %543 = arith.mulf %542, %541 : vector<8x128xf32>
    %cst_158 = arith.constant 1.000000e+00 : f32
    %544 = vector.broadcast %cst_158 : f32 to vector<8x128xf32>
    %545 = arith.subf %543, %544 : vector<8x128xf32>
    %546 = arith.select %6, %545, %541 : vector<8x128xi1>, vector<8x128xf32>
    %547 = vector.extract_strided_slice %546 {offsets = [0, 0], sizes = [8, 32], strides = [1, 1]} : vector<8x128xf32> to vector<8x32xf32>
    %548 = vector.extract_strided_slice %546 {offsets = [0, 32], sizes = [8, 32], strides = [1, 1]} : vector<8x128xf32> to vector<8x32xf32>
    %549 = vector.extract_strided_slice %546 {offsets = [0, 64], sizes = [8, 32], strides = [1, 1]} : vector<8x128xf32> to vector<8x32xf32>
    %550 = vector.extract_strided_slice %546 {offsets = [0, 96], sizes = [8, 32], strides = [1, 1]} : vector<8x128xf32> to vector<8x32xf32>
    %551 = arith.mulf %548, %530 : vector<8x32xf32>
    %552 = arith.mulf %547, %549 : vector<8x32xf32>
    %553 = arith.addf %551, %552 : vector<8x32xf32>
    %554 = math.tanh %553 : vector<8x32xf32>
    %555 = arith.mulf %550, %554 : vector<8x32xf32>
    %c24_159 = arith.constant 24 : index
    %c0_160 = arith.constant 0 : index
    %556 = vector.load %arg11[%c24_159, %c0_160] : memref<64x32xf32, #tpu.memory_space<vmem>>, vector<8x32xf32>
    tpu.vector_store %arg11[%c24_159, %c0_160], %555 {strides = array<i32>} : memref<64x32xf32, #tpu.memory_space<vmem>>, vector<8x32xf32>,
    %557 = vector.extract_strided_slice %464 {offsets = [32, 0], sizes = [8, 128], strides = [1, 1]} : vector<64x128xf32> to vector<8x128xf32>
    %cst_161 = arith.constant dense<0.000000e+00> : vector<8x128xf32>
    %558 = tpu.matmul %555, %461, %cst_161 {dimension_numbers = #tpu.dot_dimension_numbers<[1], [0], [0], [1], [0, 0, 1, 1], [], []>} : vector<8x32xf32>, vector<32x128xf32>, vector<8x128xf32> -> vector<8x128xf32>
    %559 = arith.addf %557, %558 : vector<8x128xf32>
    %560 = arith.negf %559 : vector<8x128xf32>
    %561 = math.exp %560 : vector<8x128xf32>
    %cst_162 = arith.constant 1.000000e+00 : f32
    %562 = vector.broadcast %cst_162 : f32 to vector<8x128xf32>
    %563 = arith.addf %562, %561 : vector<8x128xf32>
    %564 = arith.divf %562, %563 : vector<8x128xf32>
    %cst_163 = arith.constant 2.000000e+00 : f32
    %565 = vector.broadcast %cst_163 : f32 to vector<8x128xf32>
    %566 = arith.mulf %565, %564 : vector<8x128xf32>
    %cst_164 = arith.constant 1.000000e+00 : f32
    %567 = vector.broadcast %cst_164 : f32 to vector<8x128xf32>
    %568 = arith.subf %566, %567 : vector<8x128xf32>
    %569 = arith.select %6, %568, %564 : vector<8x128xi1>, vector<8x128xf32>
    %570 = vector.extract_strided_slice %569 {offsets = [0, 0], sizes = [8, 32], strides = [1, 1]} : vector<8x128xf32> to vector<8x32xf32>
    %571 = vector.extract_strided_slice %569 {offsets = [0, 32], sizes = [8, 32], strides = [1, 1]} : vector<8x128xf32> to vector<8x32xf32>
    %572 = vector.extract_strided_slice %569 {offsets = [0, 64], sizes = [8, 32], strides = [1, 1]} : vector<8x128xf32> to vector<8x32xf32>
    %573 = vector.extract_strided_slice %569 {offsets = [0, 96], sizes = [8, 32], strides = [1, 1]} : vector<8x128xf32> to vector<8x32xf32>
    %574 = arith.mulf %571, %553 : vector<8x32xf32>
    %575 = arith.mulf %570, %572 : vector<8x32xf32>
    %576 = arith.addf %574, %575 : vector<8x32xf32>
    %577 = math.tanh %576 : vector<8x32xf32>
    %578 = arith.mulf %573, %577 : vector<8x32xf32>
    %c32_165 = arith.constant 32 : index
    %c0_166 = arith.constant 0 : index
    %579 = vector.load %arg11[%c32_165, %c0_166] : memref<64x32xf32, #tpu.memory_space<vmem>>, vector<8x32xf32>
    tpu.vector_store %arg11[%c32_165, %c0_166], %578 {strides = array<i32>} : memref<64x32xf32, #tpu.memory_space<vmem>>, vector<8x32xf32>,
    %580 = vector.extract_strided_slice %464 {offsets = [40, 0], sizes = [8, 128], strides = [1, 1]} : vector<64x128xf32> to vector<8x128xf32>
    %cst_167 = arith.constant dense<0.000000e+00> : vector<8x128xf32>
    %581 = tpu.matmul %578, %461, %cst_167 {dimension_numbers = #tpu.dot_dimension_numbers<[1], [0], [0], [1], [0, 0, 1, 1], [], []>} : vector<8x32xf32>, vector<32x128xf32>, vector<8x128xf32> -> vector<8x128xf32>
    %582 = arith.addf %580, %581 : vector<8x128xf32>
    %583 = arith.negf %582 : vector<8x128xf32>
    %584 = math.exp %583 : vector<8x128xf32>
    %cst_168 = arith.constant 1.000000e+00 : f32
    %585 = vector.broadcast %cst_168 : f32 to vector<8x128xf32>
    %586 = arith.addf %585, %584 : vector<8x128xf32>
    %587 = arith.divf %585, %586 : vector<8x128xf32>
    %cst_169 = arith.constant 2.000000e+00 : f32
    %588 = vector.broadcast %cst_169 : f32 to vector<8x128xf32>
    %589 = arith.mulf %588, %587 : vector<8x128xf32>
    %cst_170 = arith.constant 1.000000e+00 : f32
    %590 = vector.broadcast %cst_170 : f32 to vector<8x128xf32>
    %591 = arith.subf %589, %590 : vector<8x128xf32>
    %592 = arith.select %6, %591, %587 : vector<8x128xi1>, vector<8x128xf32>
    %593 = vector.extract_strided_slice %592 {offsets = [0, 0], sizes = [8, 32], strides = [1, 1]} : vector<8x128xf32> to vector<8x32xf32>
    %594 = vector.extract_strided_slice %592 {offsets = [0, 32], sizes = [8, 32], strides = [1, 1]} : vector<8x128xf32> to vector<8x32xf32>
    %595 = vector.extract_strided_slice %592 {offsets = [0, 64], sizes = [8, 32], strides = [1, 1]} : vector<8x128xf32> to vector<8x32xf32>
    %596 = vector.extract_strided_slice %592 {offsets = [0, 96], sizes = [8, 32], strides = [1, 1]} : vector<8x128xf32> to vector<8x32xf32>
    %597 = arith.mulf %594, %576 : vector<8x32xf32>
    %598 = arith.mulf %593, %595 : vector<8x32xf32>
    %599 = arith.addf %597, %598 : vector<8x32xf32>
    %600 = math.tanh %599 : vector<8x32xf32>
    %601 = arith.mulf %596, %600 : vector<8x32xf32>
    %c40_171 = arith.constant 40 : index
    %c0_172 = arith.constant 0 : index
    %602 = vector.load %arg11[%c40_171, %c0_172] : memref<64x32xf32, #tpu.memory_space<vmem>>, vector<8x32xf32>
    tpu.vector_store %arg11[%c40_171, %c0_172], %601 {strides = array<i32>} : memref<64x32xf32, #tpu.memory_space<vmem>>, vector<8x32xf32>,
    %603 = vector.extract_strided_slice %464 {offsets = [48, 0], sizes = [8, 128], strides = [1, 1]} : vector<64x128xf32> to vector<8x128xf32>
    %cst_173 = arith.constant dense<0.000000e+00> : vector<8x128xf32>
    %604 = tpu.matmul %601, %461, %cst_173 {dimension_numbers = #tpu.dot_dimension_numbers<[1], [0], [0], [1], [0, 0, 1, 1], [], []>} : vector<8x32xf32>, vector<32x128xf32>, vector<8x128xf32> -> vector<8x128xf32>
    %605 = arith.addf %603, %604 : vector<8x128xf32>
    %606 = arith.negf %605 : vector<8x128xf32>
    %607 = math.exp %606 : vector<8x128xf32>
    %cst_174 = arith.constant 1.000000e+00 : f32
    %608 = vector.broadcast %cst_174 : f32 to vector<8x128xf32>
    %609 = arith.addf %608, %607 : vector<8x128xf32>
    %610 = arith.divf %608, %609 : vector<8x128xf32>
    %cst_175 = arith.constant 2.000000e+00 : f32
    %611 = vector.broadcast %cst_175 : f32 to vector<8x128xf32>
    %612 = arith.mulf %611, %610 : vector<8x128xf32>
    %cst_176 = arith.constant 1.000000e+00 : f32
    %613 = vector.broadcast %cst_176 : f32 to vector<8x128xf32>
    %614 = arith.subf %612, %613 : vector<8x128xf32>
    %615 = arith.select %6, %614, %610 : vector<8x128xi1>, vector<8x128xf32>
    %616 = vector.extract_strided_slice %615 {offsets = [0, 0], sizes = [8, 32], strides = [1, 1]} : vector<8x128xf32> to vector<8x32xf32>
    %617 = vector.extract_strided_slice %615 {offsets = [0, 32], sizes = [8, 32], strides = [1, 1]} : vector<8x128xf32> to vector<8x32xf32>
    %618 = vector.extract_strided_slice %615 {offsets = [0, 64], sizes = [8, 32], strides = [1, 1]} : vector<8x128xf32> to vector<8x32xf32>
    %619 = vector.extract_strided_slice %615 {offsets = [0, 96], sizes = [8, 32], strides = [1, 1]} : vector<8x128xf32> to vector<8x32xf32>
    %620 = arith.mulf %617, %599 : vector<8x32xf32>
    %621 = arith.mulf %616, %618 : vector<8x32xf32>
    %622 = arith.addf %620, %621 : vector<8x32xf32>
    %623 = math.tanh %622 : vector<8x32xf32>
    %624 = arith.mulf %619, %623 : vector<8x32xf32>
    %c48_177 = arith.constant 48 : index
    %c0_178 = arith.constant 0 : index
    %625 = vector.load %arg11[%c48_177, %c0_178] : memref<64x32xf32, #tpu.memory_space<vmem>>, vector<8x32xf32>
    tpu.vector_store %arg11[%c48_177, %c0_178], %624 {strides = array<i32>} : memref<64x32xf32, #tpu.memory_space<vmem>>, vector<8x32xf32>,
    %626 = vector.extract_strided_slice %464 {offsets = [56, 0], sizes = [8, 128], strides = [1, 1]} : vector<64x128xf32> to vector<8x128xf32>
    %cst_179 = arith.constant dense<0.000000e+00> : vector<8x128xf32>
    %627 = tpu.matmul %624, %461, %cst_179 {dimension_numbers = #tpu.dot_dimension_numbers<[1], [0], [0], [1], [0, 0, 1, 1], [], []>} : vector<8x32xf32>, vector<32x128xf32>, vector<8x128xf32> -> vector<8x128xf32>
    %628 = arith.addf %626, %627 : vector<8x128xf32>
    %629 = arith.negf %628 : vector<8x128xf32>
    %630 = math.exp %629 : vector<8x128xf32>
    %cst_180 = arith.constant 1.000000e+00 : f32
    %631 = vector.broadcast %cst_180 : f32 to vector<8x128xf32>
    %632 = arith.addf %631, %630 : vector<8x128xf32>
    %633 = arith.divf %631, %632 : vector<8x128xf32>
    %cst_181 = arith.constant 2.000000e+00 : f32
    %634 = vector.broadcast %cst_181 : f32 to vector<8x128xf32>
    %635 = arith.mulf %634, %633 : vector<8x128xf32>
    %cst_182 = arith.constant 1.000000e+00 : f32
    %636 = vector.broadcast %cst_182 : f32 to vector<8x128xf32>
    %637 = arith.subf %635, %636 : vector<8x128xf32>
    %638 = arith.select %6, %637, %633 : vector<8x128xi1>, vector<8x128xf32>
    %639 = vector.extract_strided_slice %638 {offsets = [0, 0], sizes = [8, 32], strides = [1, 1]} : vector<8x128xf32> to vector<8x32xf32>
    %640 = vector.extract_strided_slice %638 {offsets = [0, 32], sizes = [8, 32], strides = [1, 1]} : vector<8x128xf32> to vector<8x32xf32>
    %641 = vector.extract_strided_slice %638 {offsets = [0, 64], sizes = [8, 32], strides = [1, 1]} : vector<8x128xf32> to vector<8x32xf32>
    %642 = vector.extract_strided_slice %638 {offsets = [0, 96], sizes = [8, 32], strides = [1, 1]} : vector<8x128xf32> to vector<8x32xf32>
    %643 = arith.mulf %640, %622 : vector<8x32xf32>
    %644 = arith.mulf %639, %641 : vector<8x32xf32>
    %645 = arith.addf %643, %644 : vector<8x32xf32>
    %646 = math.tanh %645 : vector<8x32xf32>
    %647 = arith.mulf %642, %646 : vector<8x32xf32>
    %c56_183 = arith.constant 56 : index
    %c0_184 = arith.constant 0 : index
    %648 = vector.load %arg11[%c56_183, %c0_184] : memref<64x32xf32, #tpu.memory_space<vmem>>, vector<8x32xf32>
    tpu.vector_store %arg11[%c56_183, %c0_184], %647 {strides = array<i32>} : memref<64x32xf32, #tpu.memory_space<vmem>>, vector<8x32xf32>,
    %c0_185 = arith.constant 0 : index
    %c0_186 = arith.constant 0 : index
    %649 = vector.load %arg11[%c0_185, %c0_186] : memref<64x32xf32, #tpu.memory_space<vmem>>, vector<64x32xf32>
    %c0_187 = arith.constant 0 : index
    %c0_188 = arith.constant 0 : index
    %650 = vector.load %arg2[%c0_187, %c0_188] : memref<32x128xf32, #tpu.memory_space<vmem>>, vector<32x128xf32>
    %cst_189 = arith.constant dense<0.000000e+00> : vector<64x128xf32>
    %651 = tpu.matmul %649, %650, %cst_189 {dimension_numbers = #tpu.dot_dimension_numbers<[1], [0], [0], [1], [0, 0, 1, 1], [], []>} : vector<64x32xf32>, vector<32x128xf32>, vector<64x128xf32> -> vector<64x128xf32>
    %652 = tpu.iota {dimensions = array<i32: 1>} : vector<64x128xi32>
    %c64_i32_190 = arith.constant 64 : i32
    %653 = vector.broadcast %c64_i32_190 : i32 to vector<64x128xi32>
    %654 = arith.cmpi slt, %652, %653 : vector<64x128xi32>
    %cst_191 = arith.constant -1.000000e+30 : f32
    %655 = vector.broadcast %cst_191 : f32 to vector<64x128xf32>
    %656 = arith.select %654, %651, %655 : vector<64x128xi1>, vector<64x128xf32>
    %cst_192 = arith.constant dense<0xFF800000> : vector<64xf32>
    %657 = vector.multi_reduction <maximumf>, %656, %cst_192 [1] : vector<64x128xf32> to vector<64xf32>
    %658 = vector.shape_cast %657 : vector<64xf32> to vector<64x1xf32>
    %659 = vector.broadcast %658 : vector<64x1xf32> to vector<64x128xf32>
    %660 = arith.subf %656, %659 : vector<64x128xf32>
    %661 = math.exp %660 : vector<64x128xf32>
    %cst_193 = arith.constant dense<0.000000e+00> : vector<64xf32>
    %662 = vector.multi_reduction <add>, %661, %cst_193 [1] : vector<64x128xf32> to vector<64xf32>
    %663 = vector.shape_cast %662 : vector<64xf32> to vector<64x1xf32>
    %664 = math.log %663 : vector<64x1xf32>
    %665 = vector.broadcast %664 : vector<64x1xf32> to vector<64x128xf32>
    %666 = arith.subf %660, %665 : vector<64x128xf32>
    %c0_194 = arith.constant 0 : index
    %c0_195 = arith.constant 0 : index
    %667 = vector.load %arg7[%c0_194, %c0_195] : memref<64x128xf32, #tpu.memory_space<vmem>>, vector<64x128xf32>
    tpu.vector_store %arg7[%c0_194, %c0_195], %666 {strides = array<i32>} : memref<64x128xf32, #tpu.memory_space<vmem>>, vector<64x128xf32>,
    %c0_196 = arith.constant 0 : index
    %c0_197 = arith.constant 0 : index
    %c0_198 = arith.constant 0 : index
    %668 = vector.load %arg8[%c0_196, %c0_197, %c0_198] : memref<6x8x32xf32, #tpu.memory_space<vmem>>, vector<1x8x32xf32>
    %669 = vector.shape_cast %668 : vector<1x8x32xf32> to vector<8x32xf32>
    %670 = vector.shape_cast %213 : vector<8x32xf32> to vector<1x8x32xf32>
    tpu.vector_store %arg8[%c0_196, %c0_197, %c0_198], %670 {strides = array<i32>} : memref<6x8x32xf32, #tpu.memory_space<vmem>>, vector<1x8x32xf32>,
    %c1_199 = arith.constant 1 : index
    %c0_200 = arith.constant 0 : index
    %c0_201 = arith.constant 0 : index
    %671 = vector.load %arg8[%c1_199, %c0_200, %c0_201] : memref<6x8x32xf32, #tpu.memory_space<vmem>>, vector<1x8x32xf32>
    %672 = vector.shape_cast %671 : vector<1x8x32xf32> to vector<8x32xf32>
    %673 = vector.shape_cast %410 : vector<8x32xf32> to vector<1x8x32xf32>
    tpu.vector_store %arg8[%c1_199, %c0_200, %c0_201], %673 {strides = array<i32>} : memref<6x8x32xf32, #tpu.memory_space<vmem>>, vector<1x8x32xf32>,
    %c2_202 = arith.constant 2 : index
    %c0_203 = arith.constant 0 : index
    %c0_204 = arith.constant 0 : index
    %674 = vector.load %arg8[%c2_202, %c0_203, %c0_204] : memref<6x8x32xf32, #tpu.memory_space<vmem>>, vector<1x8x32xf32>
    %675 = vector.shape_cast %674 : vector<1x8x32xf32> to vector<8x32xf32>
    %676 = vector.shape_cast %647 : vector<8x32xf32> to vector<1x8x32xf32>
    tpu.vector_store %arg8[%c2_202, %c0_203, %c0_204], %676 {strides = array<i32>} : memref<6x8x32xf32, #tpu.memory_space<vmem>>, vector<1x8x32xf32>,
    %c3_205 = arith.constant 3 : index
    %c0_206 = arith.constant 0 : index
    %c0_207 = arith.constant 0 : index
    %677 = vector.load %arg8[%c3_205, %c0_206, %c0_207] : memref<6x8x32xf32, #tpu.memory_space<vmem>>, vector<1x8x32xf32>
    %678 = vector.shape_cast %677 : vector<1x8x32xf32> to vector<8x32xf32>
    %679 = vector.shape_cast %211 : vector<8x32xf32> to vector<1x8x32xf32>
    tpu.vector_store %arg8[%c3_205, %c0_206, %c0_207], %679 {strides = array<i32>} : memref<6x8x32xf32, #tpu.memory_space<vmem>>, vector<1x8x32xf32>,
    %c4_208 = arith.constant 4 : index
    %c0_209 = arith.constant 0 : index
    %c0_210 = arith.constant 0 : index
    %680 = vector.load %arg8[%c4_208, %c0_209, %c0_210] : memref<6x8x32xf32, #tpu.memory_space<vmem>>, vector<1x8x32xf32>
    %681 = vector.shape_cast %680 : vector<1x8x32xf32> to vector<8x32xf32>
    %682 = vector.shape_cast %408 : vector<8x32xf32> to vector<1x8x32xf32>
    tpu.vector_store %arg8[%c4_208, %c0_209, %c0_210], %682 {strides = array<i32>} : memref<6x8x32xf32, #tpu.memory_space<vmem>>, vector<1x8x32xf32>,
    %c5_211 = arith.constant 5 : index
    %c0_212 = arith.constant 0 : index
    %c0_213 = arith.constant 0 : index
    %683 = vector.load %arg8[%c5_211, %c0_212, %c0_213] : memref<6x8x32xf32, #tpu.memory_space<vmem>>, vector<1x8x32xf32>
    %684 = vector.shape_cast %683 : vector<1x8x32xf32> to vector<8x32xf32>
    %685 = vector.shape_cast %645 : vector<8x32xf32> to vector<1x8x32xf32>
    tpu.vector_store %arg8[%c5_211, %c0_212, %c0_213], %685 {strides = array<i32>} : memref<6x8x32xf32, #tpu.memory_space<vmem>>, vector<1x8x32xf32>,
    return
  }
}

</mosaic_0001>

<llo_original>
// kernel: rnn_model_forward.1
$region0: #{rnn_model_forward.1}
  #allocation0 [shape = 'u32[]', space=smem, size = 0x4, offset = 0x4, fixed_abs, tag = 'smem constant byte address 0x4 - core index']
  #allocation1 [shape = 'u32[144,128]{1,0:T(1,128)}', space=vmem, size = 0x12000, scoped, tag = 'internal scratch']
  #allocation2 [shape = 'f32[64,32]{1,0:T(8,128)}', space=vmem, size = 0x8000, scoped, tag = 'scratch operand']
  #allocation3 [shape = 'f32[64,32]{1,0:T(8,128)}', space=vmem, size = 0x8000, scoped, tag = 'scratch operand']
  #allocation4 [shape = 'f32[64,32]{1,0:T(8,128)}', space=vmem, size = 0x8000, scoped, tag = 'scratch operand']
  %s0 = inlined_call_operand.vmem [shape: s32[64,1], index: 0, kind: input, shape index: {}]
  %s1 = inlined_call_operand.vmem [shape: f32[64,32], index: 1, kind: input, shape index: {}]
  %s2 = inlined_call_operand.vmem [shape: f32[32,128], index: 2, kind: input, shape index: {}]
  %s3 = inlined_call_operand.vmem [shape: f32[3,64,128], index: 3, kind: input, shape index: {}]
  %s4 = inlined_call_operand.hbm [shape: f32[4,128], index: 4, kind: input, shape index: {}]
  %s5 = inlined_call_operand.vmem [shape: f32[64,96], index: 5, kind: input, shape index: {}]
  %s6 = inlined_call_operand.vmem [shape: f32[6,8,32], index: 6, kind: input, shape index: {}]
  %s7 = inlined_call_operand.vmem [shape: f32[64,128], index: 7, kind: output, shape index: {0}]
  %s8 = inlined_call_operand.vmem [shape: f32[6,8,32], index: 8, kind: output, shape index: {1}]
  %9 = xla_tuple %s7, %s8
  %s10 = sld [smem:[#allocation0]]
  $region50: #{rnn_model_forward.1} parent=0
    _
  %s12 = ssub.s32 1, %s10
  %s13 = scalar_select 0, %s12, %s10
  $region1: #{rnn_model_forward.1} parent=0
    #allocation5 [shape = 'u8[2048]{0}', space=vmem, size = 0x800, scoped, tag = 'input window, operand 4, single buffered']
    #allocation6 [shape = 's32[1]{0}', space=sflag, size = 0x4, scoped, tag = 'scoped memory for rnn_model_forward.1']
    %14 = vsyncpa [#allocation6], 0
    // Predicated region
    $region2: #{rnn_model_forward.1} parent=1 // pred_check
      _
    $region3: #{rnn_model_forward.1} parent=1 // pred_check_branch
      %16 = sbr.rel (0) target = $region5
    $region4: #{rnn_model_forward.1} parent=1 // pred_region
      _
    $region5: #{rnn_model_forward.1} parent=1 // pred_fallthru
      _
    // Predicated region
    $region6: #{rnn_model_forward.1} parent=1 // pred_check
      _
    $region7: #{rnn_model_forward.1} parent=1 // pred_check_branch
      %18 = sbr.rel (0) target = $region9
    $region8: #{rnn_model_forward.1} parent=1 // pred_region
      _
    $region9: #{rnn_model_forward.1} parent=1 // pred_fallthru
      _
    // Predicated region
    $region10: #{rnn_model_forward.1} parent=1 // pred_check
      _
    $region11: #{rnn_model_forward.1} parent=1 // pred_check_branch
      %20 = sbr.rel (0) target = $region13
    $region12: #{rnn_model_forward.1} parent=1 // pred_region
      _
    $region13: #{rnn_model_forward.1} parent=1 // pred_fallthru
      _
    // Predicated region
    $region14: #{rnn_model_forward.1} parent=1 // pred_check
      _
    $region15: #{rnn_model_forward.1} parent=1 // pred_check_branch
      %22 = sbr.rel (0) target = $region17
    $region16: #{rnn_model_forward.1} parent=1 // pred_region
      _
    $region17: #{rnn_model_forward.1} parent=1 // pred_fallthru
      _
    // Predicated region
    $region18: #{rnn_model_forward.1} parent=1 // pred_check
      _
    $region19: #{rnn_model_forward.1} parent=1 // pred_check_branch
      %24 = sbr.rel (0) target = $region21
    $region20: #{rnn_model_forward.1} parent=1 // pred_region
      %s26 = ssub.s32 64, 64
      %27 = vsyncadd [#allocation6], %s26
      %s29 = sshll.u32 [#allocation5], 4
      %s30 = int_to_ptr.vmem [resolvable:$true] %s29
      %32 = dma.hbm_to_vmem [thread:$0]  %s4, 64, %s30, [#allocation6]
    $region21: #{rnn_model_forward.1} parent=1 // pred_fallthru
      _
    // Predicated region
    $region22: #{rnn_model_forward.1} parent=1 // pred_check
      _
    $region23: #{rnn_model_forward.1} parent=1 // pred_check_branch
      %34 = sbr.rel (0) target = $region25
    $region24: #{rnn_model_forward.1} parent=1 // pred_region
      _
    $region25: #{rnn_model_forward.1} parent=1 // pred_fallthru
      _
    // Predicated region
    $region26: #{rnn_model_forward.1} parent=1 // pred_check
      _
    $region27: #{rnn_model_forward.1} parent=1 // pred_check_branch
      %36 = sbr.rel (0) target = $region29
    $region28: #{rnn_model_forward.1} parent=1 // pred_region
      _
    $region29: #{rnn_model_forward.1} parent=1 // pred_fallthru
      _
    // Predicated region
    $region30: #{rnn_model_forward.1} parent=1 // pred_check
      _
    $region31: #{rnn_model_forward.1} parent=1 // pred_check_branch
      %38 = sbr.rel (0) target = $region33
    $region32: #{rnn_model_forward.1} parent=1 // pred_region
      %39 = dma.done [#allocation6], 64
    $region33: #{rnn_model_forward.1} parent=1 // pred_fallthru
      _
    %v40 = vld [vmem:[#allocation5] sm:$0xf]
    %v41 = vlaneseq
    %v42 = vand.u32 %v41, 127
    %vm43 = vcmp.ge.s32.totalorder %v42, 64
    %vm44 = vcmp.lt.s32.totalorder %v42, 96
    %vm45 = vmand %vm43, %vm44
    %v46 = vld [vmem:[%s0] sm:$0xff]
    %v47 = vld [vmem:[%s0 + $0x8] sm:$0xff]
    %v48 = vld [vmem:[%s0 + $0x10] sm:$0xff]
    %v49 = vld [vmem:[%s0 + $0x18] sm:$0xff]
    %v50 = vld [vmem:[%s0 + $0x20] sm:$0xff]
    %v51 = vld [vmem:[%s0 + $0x28] sm:$0xff]
    %v52 = vld [vmem:[%s0 + $0x30] sm:$0xff]
    %v53 = vld [vmem:[%s0 + $0x38] sm:$0xff]
    %54 = vset.pattern.permute.xlu0 0
    %55 = vperm.xlu0 %54, %v46
    %v56 = vpop.permute.xlu0 %55
    %57 = vset.pattern.permute.xlu0 0
    %58 = vperm.xlu0 %57, %v47
    %v59 = vpop.permute.xlu0 %58
    %60 = vset.pattern.permute.xlu0 0
    %61 = vperm.xlu0 %60, %v48
    %v62 = vpop.permute.xlu0 %61
    %63 = vset.pattern.permute.xlu0 0
    %64 = vperm.xlu0 %63, %v49
    %v65 = vpop.permute.xlu0 %64
    %66 = vset.pattern.permute.xlu0 0
    %67 = vperm.xlu0 %66, %v50
    %v68 = vpop.permute.xlu0 %67
    %69 = vset.pattern.permute.xlu0 0
    %70 = vperm.xlu0 %69, %v51
    %v71 = vpop.permute.xlu0 %70
    %72 = vset.pattern.permute.xlu0 0
    %73 = vperm.xlu0 %72, %v52
    %v74 = vpop.permute.xlu0 %73
    %75 = vset.pattern.permute.xlu0 0
    %76 = vperm.xlu0 %75, %v53
    %v77 = vpop.permute.xlu0 %76
    %vm78 = vcmp.eq.s32.totalorder %v56, %v42
    %vm79 = vcmp.eq.s32.totalorder %v59, %v42
    %vm80 = vcmp.eq.s32.totalorder %v62, %v42
    %vm81 = vcmp.eq.s32.totalorder %v65, %v42
    %vm82 = vcmp.eq.s32.totalorder %v68, %v42
    %vm83 = vcmp.eq.s32.totalorder %v71, %v42
    %vm84 = vcmp.eq.s32.totalorder %v74, %v42
    %vm85 = vcmp.eq.s32.totalorder %v77, %v42
    %v86 = vsel %vm78, 1, 0
    %v87 = vsel %vm79, 1, 0
    %v88 = vsel %vm80, 1, 0
    %v89 = vsel %vm81, 1, 0
    %v90 = vsel %vm82, 1, 0
    %v91 = vsel %vm83, 1, 0
    %v92 = vsel %vm84, 1, 0
    %v93 = vsel %vm85, 1, 0
    %v94 = vcvt.s32.f32 %v86
    %v95 = vcvt.s32.f32 %v87
    %v96 = vcvt.s32.f32 %v88
    %v97 = vcvt.s32.f32 %v89
    %v98 = vcvt.s32.f32 %v90
    %v99 = vcvt.s32.f32 %v91
    %v100 = vcvt.s32.f32 %v92
    %v101 = vcvt.s32.f32 %v93
    %v102 = vld [vmem:[%s1] sm:$0xff]
    %v103 = vld [vmem:[%s1 + $0x8] sm:$0xff]
    %v104 = vld [vmem:[%s1 + $0x10] sm:$0xff]
    %v105 = vld [vmem:[%s1 + $0x18] sm:$0xff]
    %v106 = vld [vmem:[%s1 + $0x20] sm:$0xff]
    %v107 = vld [vmem:[%s1 + $0x28] sm:$0xff]
    %v108 = vld [vmem:[%s1 + $0x30] sm:$0xff]
    %v109 = vld [vmem:[%s1 + $0x38] sm:$0xff]
    %vm110 = vcmask 523264
    %v112 = vsel %vm110, %v94, 0
    %v115 = vsel %vm110, %v95, 0
    %v118 = vsel %vm110, %v96, 0
    %v121 = vsel %vm110, %v97, 0
    %v124 = vsel %vm110, %v98, 0
    %v127 = vsel %vm110, %v99, 0
    %v130 = vsel %vm110, %v100, 0
    %v133 = vsel %vm110, %v101, 0
    %135 = vmatprep.subr.mxu0 0.0
    %136 = vmatpush1.msra.mxu0 %v102
    %137 = vmatprep.subr.mxu0 0.0
    %138 = vmatpush1.msra.mxu0 %v103
    %139 = vmatprep.subr.mxu0 0.0
    %140 = vmatpush1.msra.mxu0 %v104
    %141 = vmatprep.subr.mxu0 0.0
    %142 = vmatpush1.msra.mxu0 %v105
    %143 = vmatprep.subr.mxu0 0.0
    %144 = vmatpush1.msra.mxu0 %v106
    %145 = vmatprep.subr.mxu0 0.0
    %146 = vmatpush1.msra.mxu0 %v107
    %147 = vmatprep.subr.mxu0 0.0
    %148 = vmatpush1.msra.mxu0 %v108
    %149 = vmatprep.subr.mxu0 0.0
    %150 = vmatpush1.msra.mxu0 %v109
    %151 = vmatprep.subr.mxu0 0.0
    %152 = vmatpush1.msra.mxu0 0.0
    %153 = vmatprep.subr.mxu0 0.0
    %154 = vmatpush1.msra.mxu0 0.0
    %155 = vmatprep.subr.mxu0 0.0
    %156 = vmatpush1.msra.mxu0 0.0
    %157 = vmatprep.subr.mxu0 0.0
    %158 = vmatpush1.msra.mxu0 0.0
    %159 = vmatprep.subr.mxu0 0.0
    %160 = vmatpush1.msra.mxu0 0.0
    %161 = vmatprep.subr.mxu0 0.0
    %162 = vmatpush1.msra.mxu0 0.0
    %163 = vmatprep.subr.mxu0 0.0
    %164 = vmatpush1.msra.mxu0 0.0
    %165 = vmatprep.subr.mxu0 0.0
    %166 = vmatpush1.msra.mxu0 0.0
    %167 = vmatprep.subr.mxu0 0.0
    %168 = vmatpush1.msra.mxu0 0.0
    %169 = vmatprep.subr.mxu0 0.0
    %170 = vmatpush1.msra.mxu0 0.0
    %171 = vmatprep.subr.mxu0 0.0
    %172 = vmatpush1.msra.mxu0 0.0
    %173 = vmatprep.subr.mxu0 0.0
    %174 = vmatpush1.msra.mxu0 0.0
    %175 = vmatprep.subr.mxu0 0.0
    %176 = vmatpush1.msra.mxu0 0.0
    %177 = vmatprep.subr.mxu0 0.0
    %178 = vmatpush1.msra.mxu0 0.0
    %179 = vmatprep.subr.mxu0 0.0
    %180 = vmatpush1.msra.mxu0 0.0
    %181 = vmatprep.subr.mxu0 0.0
    %182 = vmatpush1.msra.mxu0 0.0
    %183 = vmatprep.subr.mxu0 0.0
    %184 = vmatpush1.msra.mxu0 0.0
    %185 = vmatprep.subr.mxu0 0.0
    %186 = vmatpush1.msra.mxu0 0.0
    %187 = vmatprep.subr.mxu0 0.0
    %188 = vmatpush1.msra.mxu0 0.0
    %189 = vmatprep.subr.mxu0 0.0
    %190 = vmatpush1.msra.mxu0 0.0
    %191 = vmatprep.subr.mxu0 0.0
    %192 = vmatpush1.msra.mxu0 0.0
    %193 = vmatprep.subr.mxu0 0.0
    %194 = vmatpush1.msra.mxu0 0.0
    %195 = vmatprep.subr.mxu0 0.0
    %196 = vmatpush1.msra.mxu0 0.0
    %197 = vmatprep.subr.mxu0 0.0
    %198 = vmatpush1.msra.mxu0 0.0
    %199 = vmatprep.mubr.f32.mxu0 0.0
    %200 = vmatmul.mubr.f32.gmra.mrb[0].mxu0 %v112
    %v201 = vpop.f32.mrb[0].mxu0
    %v202 = vadd.f32 0.0, %v201
    %v203 = vpop.f32.mrb[0].mxu0
    %204 = vmatprep.mubr.f32.mxu0 0.0
    %205 = vmatmul.mubr.f32.gmra.mrb[0].mxu0 %v115
    %v206 = vpop.f32.mrb[0].mxu0
    %v207 = vadd.f32 0.0, %v206
    %v208 = vpop.f32.mrb[0].mxu0
    %209 = vmatprep.mubr.f32.mxu0 0.0
    %210 = vmatmul.mubr.f32.gmra.mrb[0].mxu0 %v118
    %v211 = vpop.f32.mrb[0].mxu0
    %v212 = vadd.f32 0.0, %v211
    %v213 = vpop.f32.mrb[0].mxu0
    %214 = vmatprep.mubr.f32.mxu0 0.0
    %215 = vmatmul.mubr.f32.gmra.mrb[0].mxu0 %v121
    %v216 = vpop.f32.mrb[0].mxu0
    %v217 = vadd.f32 0.0, %v216
    %v218 = vpop.f32.mrb[0].mxu0
    %219 = vmatprep.mubr.f32.mxu0 0.0
    %220 = vmatmul.mubr.f32.gmra.mrb[0].mxu0 %v124
    %v221 = vpop.f32.mrb[0].mxu0
    %v222 = vadd.f32 0.0, %v221
    %v223 = vpop.f32.mrb[0].mxu0
    %224 = vmatprep.mubr.f32.mxu0 0.0
    %225 = vmatmul.mubr.f32.gmra.mrb[0].mxu0 %v127
    %v226 = vpop.f32.mrb[0].mxu0
    %v227 = vadd.f32 0.0, %v226
    %v228 = vpop.f32.mrb[0].mxu0
    %229 = vmatprep.mubr.f32.mxu0 0.0
    %230 = vmatmul.mubr.f32.gmra.mrb[0].mxu0 %v130
    %v231 = vpop.f32.mrb[0].mxu0
    %v232 = vadd.f32 0.0, %v231
    %v233 = vpop.f32.mrb[0].mxu0
    %234 = vmatprep.mubr.f32.mxu0 0.0
    %235 = vmatmul.mubr.f32.gmra.mrb[0].mxu0 %v133
    %v236 = vpop.f32.mrb[0].mxu0
    %v237 = vadd.f32 0.0, %v236
    %v238 = vpop.f32.mrb[0].mxu0
    %239 = vdwg.mxu0
    %v240 = vmul.f32 %v202, 5.656854
    %v241 = vmul.f32 %v207, 5.656854
    %v242 = vmul.f32 %v212, 5.656854
    %v243 = vmul.f32 %v217, 5.656854
    %v244 = vmul.f32 %v222, 5.656854
    %v245 = vmul.f32 %v227, 5.656854
    %v246 = vmul.f32 %v232, 5.656854
    %v247 = vmul.f32 %v237, 5.656854
    %v248 = vmax.f32 %v240, 0.0
    %v249 = vmax.f32 %v241, 0.0
    %v250 = vmax.f32 %v242, 0.0
    %v251 = vmax.f32 %v243, 0.0
    %v252 = vmax.f32 %v244, 0.0
    %v253 = vmax.f32 %v245, 0.0
    %v254 = vmax.f32 %v246, 0.0
    %v255 = vmax.f32 %v247, 0.0
    %v256 = vld [vmem:[%s3] sm:$0xff]
    %v257 = vld [vmem:[%s3 + $0x8] sm:$0xff]
    %v258 = vld [vmem:[%s3 + $0x10] sm:$0xff]
    %v259 = vld [vmem:[%s3 + $0x18] sm:$0xff]
    %v260 = vld [vmem:[%s3 + $0x20] sm:$0xff]
    %v261 = vld [vmem:[%s3 + $0x28] sm:$0xff]
    %v262 = vld [vmem:[%s3 + $0x30] sm:$0xff]
    %v263 = vld [vmem:[%s3 + $0x38] sm:$0xff]
    %v264 = vld [vmem:[%s6] sm:$0xff]
    %s265 = scalar_lea.vmem %s6, 24
    %v266 = vld [vmem:[%s265] sm:$0xff]
    %v267 = vlaneseq
    %v268 = vshrl.u32 %v267, 7
    %v269 = vsub.s32 0, %v268
    %v270 = vrot.slane %v40, %v269
    %vm271 = vcmask 261120
    %v273 = vsel %vm271, %v248, 0
    %v276 = vsel %vm271, %v249, 0
    %v279 = vsel %vm271, %v250, 0
    %v282 = vsel %vm271, %v251, 0
    %v285 = vsel %vm271, %v252, 0
    %v288 = vsel %vm271, %v253, 0
    %v291 = vsel %vm271, %v254, 0
    %v294 = vsel %vm271, %v255, 0
    %296 = vmatprep.subr.mxu0 0.0
    %297 = vmatpush1.msra.mxu0 %v256
    %298 = vmatprep.subr.mxu0 0.0
    %299 = vmatpush1.msra.mxu0 %v257
    %300 = vmatprep.subr.mxu0 0.0
    %301 = vmatpush1.msra.mxu0 %v258
    %302 = vmatprep.subr.mxu0 0.0
    %303 = vmatpush1.msra.mxu0 %v259
    %304 = vmatprep.subr.mxu0 0.0
    %305 = vmatpush1.msra.mxu0 0.0
    %306 = vmatprep.subr.mxu0 0.0
    %307 = vmatpush1.msra.mxu0 0.0
    %308 = vmatprep.subr.mxu0 0.0
    %309 = vmatpush1.msra.mxu0 0.0
    %310 = vmatprep.subr.mxu0 0.0
    %311 = vmatpush1.msra.mxu0 0.0
    %312 = vmatprep.subr.mxu0 0.0
    %313 = vmatpush1.msra.mxu0 0.0
    %314 = vmatprep.subr.mxu0 0.0
    %315 = vmatpush1.msra.mxu0 0.0
    %316 = vmatprep.subr.mxu0 0.0
    %317 = vmatpush1.msra.mxu0 0.0
    %318 = vmatprep.subr.mxu0 0.0
    %319 = vmatpush1.msra.mxu0 0.0
    %320 = vmatprep.subr.mxu0 0.0
    %321 = vmatpush1.msra.mxu0 0.0
    %322 = vmatprep.subr.mxu0 0.0
    %323 = vmatpush1.msra.mxu0 0.0
    %324 = vmatprep.subr.mxu0 0.0
    %325 = vmatpush1.msra.mxu0 0.0
    %326 = vmatprep.subr.mxu0 0.0
    %327 = vmatpush1.msra.mxu0 0.0
    %328 = vmatprep.subr.mxu0 0.0
    %329 = vmatpush1.msra.mxu0 0.0
    %330 = vmatprep.subr.mxu0 0.0
    %331 = vmatpush1.msra.mxu0 0.0
    %332 = vmatprep.subr.mxu0 0.0
    %333 = vmatpush1.msra.mxu0 0.0
    %334 = vmatprep.subr.mxu0 0.0
    %335 = vmatpush1.msra.mxu0 0.0
    %336 = vmatprep.subr.mxu0 0.0
    %337 = vmatpush1.msra.mxu0 0.0
    %338 = vmatprep.subr.mxu0 0.0
    %339 = vmatpush1.msra.mxu0 0.0
    %340 = vmatprep.subr.mxu0 0.0
    %341 = vmatpush1.msra.mxu0 0.0
    %342 = vmatprep.subr.mxu0 0.0
    %343 = vmatpush1.msra.mxu0 0.0
    %344 = vmatprep.subr.mxu0 0.0
    %345 = vmatpush1.msra.mxu0 0.0
    %346 = vmatprep.subr.mxu0 0.0
    %347 = vmatpush1.msra.mxu0 0.0
    %348 = vmatprep.subr.mxu0 0.0
    %349 = vmatpush1.msra.mxu0 0.0
    %350 = vmatprep.subr.mxu0 0.0
    %351 = vmatpush1.msra.mxu0 0.0
    %352 = vmatprep.subr.mxu0 0.0
    %353 = vmatpush1.msra.mxu0 0.0
    %354 = vmatprep.subr.mxu0 0.0
    %355 = vmatpush1.msra.mxu0 0.0
    %356 = vmatprep.subr.mxu0 0.0
    %357 = vmatpush1.msra.mxu0 0.0
    %358 = vmatprep.subr.mxu0 0.0
    %359 = vmatpush1.msra.mxu0 0.0
    %360 = vmatprep.mubr.f32.mxu0 0.0
    %361 = vmatmul.mubr.f32.gmra.mrb[0].mxu0 %v273
    %v362 = vpop.f32.mrb[0].mxu0
    %v363 = vadd.f32 %v270, %v362
    %v364 = vpop.f32.mrb[0].mxu0
    %365 = vmatprep.mubr.f32.mxu0 0.0
    %366 = vmatmul.mubr.f32.gmra.mrb[0].mxu0 %v276
    %v367 = vpop.f32.mrb[0].mxu0
    %v368 = vadd.f32 %v270, %v367
    %v369 = vpop.f32.mrb[0].mxu0
    %370 = vmatprep.mubr.f32.mxu0 0.0
    %371 = vmatmul.mubr.f32.gmra.mrb[0].mxu0 %v279
    %v372 = vpop.f32.mrb[0].mxu0
    %v373 = vadd.f32 %v270, %v372
    %v374 = vpop.f32.mrb[0].mxu0
    %375 = vmatprep.mubr.f32.mxu0 0.0
    %376 = vmatmul.mubr.f32.gmra.mrb[0].mxu0 %v282
    %v377 = vpop.f32.mrb[0].mxu0
    %v378 = vadd.f32 %v270, %v377
    %v379 = vpop.f32.mrb[0].mxu0
    %380 = vmatprep.mubr.f32.mxu0 0.0
    %381 = vmatmul.mubr.f32.gmra.mrb[0].mxu0 %v285
    %v382 = vpop.f32.mrb[0].mxu0
    %v383 = vadd.f32 %v270, %v382
    %v384 = vpop.f32.mrb[0].mxu0
    %385 = vmatprep.mubr.f32.mxu0 0.0
    %386 = vmatmul.mubr.f32.gmra.mrb[0].mxu0 %v288
    %v387 = vpop.f32.mrb[0].mxu0
    %v388 = vadd.f32 %v270, %v387
    %v389 = vpop.f32.mrb[0].mxu0
    %390 = vmatprep.mubr.f32.mxu0 0.0
    %391 = vmatmul.mubr.f32.gmra.mrb[0].mxu0 %v291
    %v392 = vpop.f32.mrb[0].mxu0
    %v393 = vadd.f32 %v270, %v392
    %v394 = vpop.f32.mrb[0].mxu0
    %395 = vmatprep.mubr.f32.mxu0 0.0
    %396 = vmatmul.mubr.f32.gmra.mrb[0].mxu0 %v294
    %v397 = vpop.f32.mrb[0].mxu0
    %v398 = vadd.f32 %v270, %v397
    %v399 = vpop.f32.mrb[0].mxu0
    %400 = vdwg.mxu0
    %v402 = vsel %vm271, %v264, 0
    %404 = vmatprep.subr.mxu0 0.0
    %405 = vmatpush1.msra.mxu0 %v260
    %406 = vmatprep.subr.mxu0 0.0
    %407 = vmatpush1.msra.mxu0 %v261
    %408 = vmatprep.subr.mxu0 0.0
    %409 = vmatpush1.msra.mxu0 %v262
    %410 = vmatprep.subr.mxu0 0.0
    %411 = vmatpush1.msra.mxu0 %v263
    %412 = vmatprep.subr.mxu0 0.0
    %413 = vmatpush1.msra.mxu0 0.0
    %414 = vmatprep.subr.mxu0 0.0
    %415 = vmatpush1.msra.mxu0 0.0
    %416 = vmatprep.subr.mxu0 0.0
    %417 = vmatpush1.msra.mxu0 0.0
    %418 = vmatprep.subr.mxu0 0.0
    %419 = vmatpush1.msra.mxu0 0.0
    %420 = vmatprep.subr.mxu0 0.0
    %421 = vmatpush1.msra.mxu0 0.0
    %422 = vmatprep.subr.mxu0 0.0
    %423 = vmatpush1.msra.mxu0 0.0
    %424 = vmatprep.subr.mxu0 0.0
    %425 = vmatpush1.msra.mxu0 0.0
    %426 = vmatprep.subr.mxu0 0.0
    %427 = vmatpush1.msra.mxu0 0.0
    %428 = vmatprep.subr.mxu0 0.0
    %429 = vmatpush1.msra.mxu0 0.0
    %430 = vmatprep.subr.mxu0 0.0
    %431 = vmatpush1.msra.mxu0 0.0
    %432 = vmatprep.subr.mxu0 0.0
    %433 = vmatpush1.msra.mxu0 0.0
    %434 = vmatprep.subr.mxu0 0.0
    %435 = vmatpush1.msra.mxu0 0.0
    %436 = vmatprep.subr.mxu0 0.0
    %437 = vmatpush1.msra.mxu0 0.0
    %438 = vmatprep.subr.mxu0 0.0
    %439 = vmatpush1.msra.mxu0 0.0
    %440 = vmatprep.subr.mxu0 0.0
    %441 = vmatpush1.msra.mxu0 0.0
    %442 = vmatprep.subr.mxu0 0.0
    %443 = vmatpush1.msra.mxu0 0.0
    %444 = vmatprep.subr.mxu0 0.0
    %445 = vmatpush1.msra.mxu0 0.0
    %446 = vmatprep.subr.mxu0 0.0
    %447 = vmatpush1.msra.mxu0 0.0
    %448 = vmatprep.subr.mxu0 0.0
    %449 = vmatpush1.msra.mxu0 0.0
    %450 = vmatprep.subr.mxu0 0.0
    %451 = vmatpush1.msra.mxu0 0.0
    %452 = vmatprep.subr.mxu0 0.0
    %453 = vmatpush1.msra.mxu0 0.0
    %454 = vmatprep.subr.mxu0 0.0
    %455 = vmatpush1.msra.mxu0 0.0
    %456 = vmatprep.subr.mxu0 0.0
    %457 = vmatpush1.msra.mxu0 0.0
    %458 = vmatprep.subr.mxu0 0.0
    %459 = vmatpush1.msra.mxu0 0.0
    %460 = vmatprep.subr.mxu0 0.0
    %461 = vmatpush1.msra.mxu0 0.0
    %462 = vmatprep.subr.mxu0 0.0
    %463 = vmatpush1.msra.mxu0 0.0
    %464 = vmatprep.subr.mxu0 0.0
    %465 = vmatpush1.msra.mxu0 0.0
    %466 = vmatprep.subr.mxu0 0.0
    %467 = vmatpush1.msra.mxu0 0.0
    %468 = vmatprep.mubr.f32.mxu0 0.0
    %469 = vmatmul.mubr.f32.gmra.mrb[0].mxu0 %v402
    %v470 = vpop.f32.mrb[0].mxu0
    %v471 = vadd.f32 0.0, %v470
    %v472 = vpop.f32.mrb[0].mxu0
    %473 = vdwg.mxu0
    %v474 = vadd.f32 %v363, %v471
    %v475 = vxor.u32 %v474, 2147483648
    %v476 = vmul.f32 %v475, 1.442695
    %v477 = vpow.pop %v476
    %v478 = vadd.f32 %v477, 1.0
    %v479 = vrcp.pop %v478
    %v480 = vmul.f32 1.0, %v479
    %v481 = vmul.f32 %v480, 2.0
    %v482 = vsub.f32 %v481, 1.0
    %v483 = vsel %vm45, %v482, %v480
    %485 = vrot.lane.b32.xlu0 %v266, 32
    %v486 = vpop.permute.xlu0 %485
    %v488 = vmul.f32 %v483, %v486
    %490 = vrot.lane.b32.xlu0 %v483, 64
    %v491 = vpop.permute.xlu0 %490
    %v493 = vmul.f32 %v483, %v491
    %495 = vrot.lane.b32.xlu0 %v493, 32
    %v496 = vpop.permute.xlu0 %495
    %v498 = vadd.f32 %v488, %v496
    %v499 = vtanh.pop %v498
    %501 = vrot.lane.b32.xlu0 %v499, 64
    %v502 = vpop.permute.xlu0 %501
    %v504 = vmul.f32 %v483, %v502
    %506 = vrot.lane.b32.xlu0 %v504, 32
    %v507 = vpop.permute.xlu0 %506
    %509 = vst.msk [vmem:[#allocation2] sm:$0xff] %vm271, %v507
    %v510 = vsel %vm271, %v507, 0
    %512 = vmatprep.subr.mxu0 0.0
    %513 = vmatpush1.msra.mxu0 %v260
    %514 = vmatprep.subr.mxu0 0.0
    %515 = vmatpush1.msra.mxu0 %v261
    %516 = vmatprep.subr.mxu0 0.0
    %517 = vmatpush1.msra.mxu0 %v262
    %518 = vmatprep.subr.mxu0 0.0
    %519 = vmatpush1.msra.mxu0 %v263
    %520 = vmatprep.subr.mxu0 0.0
    %521 = vmatpush1.msra.mxu0 0.0
    %522 = vmatprep.subr.mxu0 0.0
    %523 = vmatpush1.msra.mxu0 0.0
    %524 = vmatprep.subr.mxu0 0.0
    %525 = vmatpush1.msra.mxu0 0.0
    %526 = vmatprep.subr.mxu0 0.0
    %527 = vmatpush1.msra.mxu0 0.0
    %528 = vmatprep.subr.mxu0 0.0
    %529 = vmatpush1.msra.mxu0 0.0
    %530 = vmatprep.subr.mxu0 0.0
    %531 = vmatpush1.msra.mxu0 0.0
    %532 = vmatprep.subr.mxu0 0.0
    %533 = vmatpush1.msra.mxu0 0.0
    %534 = vmatprep.subr.mxu0 0.0
    %535 = vmatpush1.msra.mxu0 0.0
    %536 = vmatprep.subr.mxu0 0.0
    %537 = vmatpush1.msra.mxu0 0.0
    %538 = vmatprep.subr.mxu0 0.0
    %539 = vmatpush1.msra.mxu0 0.0
    %540 = vmatprep.subr.mxu0 0.0
    %541 = vmatpush1.msra.mxu0 0.0
    %542 = vmatprep.subr.mxu0 0.0
    %543 = vmatpush1.msra.mxu0 0.0
    %544 = vmatprep.subr.mxu0 0.0
    %545 = vmatpush1.msra.mxu0 0.0
    %546 = vmatprep.subr.mxu0 0.0
    %547 = vmatpush1.msra.mxu0 0.0
    %548 = vmatprep.subr.mxu0 0.0
    %549 = vmatpush1.msra.mxu0 0.0
    %550 = vmatprep.subr.mxu0 0.0
    %551 = vmatpush1.msra.mxu0 0.0
    %552 = vmatprep.subr.mxu0 0.0
    %553 = vmatpush1.msra.mxu0 0.0
    %554 = vmatprep.subr.mxu0 0.0
    %555 = vmatpush1.msra.mxu0 0.0
    %556 = vmatprep.subr.mxu0 0.0
    %557 = vmatpush1.msra.mxu0 0.0
    %558 = vmatprep.subr.mxu0 0.0
    %559 = vmatpush1.msra.mxu0 0.0
    %560 = vmatprep.subr.mxu0 0.0
    %561 = vmatpush1.msra.mxu0 0.0
    %562 = vmatprep.subr.mxu0 0.0
    %563 = vmatpush1.msra.mxu0 0.0
    %564 = vmatprep.subr.mxu0 0.0
    %565 = vmatpush1.msra.mxu0 0.0
    %566 = vmatprep.subr.mxu0 0.0
    %567 = vmatpush1.msra.mxu0 0.0
    %568 = vmatprep.subr.mxu0 0.0
    %569 = vmatpush1.msra.mxu0 0.0
    %570 = vmatprep.subr.mxu0 0.0
    %571 = vmatpush1.msra.mxu0 0.0
    %572 = vmatprep.subr.mxu0 0.0
    %573 = vmatpush1.msra.mxu0 0.0
    %574 = vmatprep.subr.mxu0 0.0
    %575 = vmatpush1.msra.mxu0 0.0
    %576 = vmatprep.mubr.f32.mxu0 0.0
    %577 = vmatmul.mubr.f32.gmra.mrb[0].mxu0 %v510
    %v578 = vpop.f32.mrb[0].mxu0
    %v579 = vadd.f32 0.0, %v578
    %v580 = vpop.f32.mrb[0].mxu0
    %581 = vdwg.mxu0
    %v582 = vadd.f32 %v368, %v579
    %v583 = vxor.u32 %v582, 2147483648
    %v584 = vmul.f32 %v583, 1.442695
    %v585 = vpow.pop %v584
    %v586 = vadd.f32 %v585, 1.0
    %v587 = vrcp.pop %v586
    %v588 = vmul.f32 1.0, %v587
    %v589 = vmul.f32 %v588, 2.0
    %v590 = vsub.f32 %v589, 1.0
    %v591 = vsel %vm45, %v590, %v588
    %v592 = vmul.f32 %v591, %v498
    %594 = vrot.lane.b32.xlu0 %v591, 64
    %v595 = vpop.permute.xlu0 %594
    %v597 = vmul.f32 %v591, %v595
    %599 = vrot.lane.b32.xlu0 %v597, 32
    %v600 = vpop.permute.xlu0 %599
    %v602 = vadd.f32 %v592, %v600
    %v603 = vtanh.pop %v602
    %605 = vrot.lane.b32.xlu0 %v603, 64
    %v606 = vpop.permute.xlu0 %605
    %v608 = vmul.f32 %v591, %v606
    %610 = vrot.lane.b32.xlu0 %v608, 32
    %v611 = vpop.permute.xlu0 %610
    %613 = vst.msk [vmem:[#allocation2 + $0x8] sm:$0xff] %vm271, %v611
    %v614 = vsel %vm271, %v611, 0
    %616 = vmatprep.subr.mxu0 0.0
    %617 = vmatpush1.msra.mxu0 %v260
    %618 = vmatprep.subr.mxu0 0.0
    %619 = vmatpush1.msra.mxu0 %v261
    %620 = vmatprep.subr.mxu0 0.0
    %621 = vmatpush1.msra.mxu0 %v262
    %622 = vmatprep.subr.mxu0 0.0
    %623 = vmatpush1.msra.mxu0 %v263
    %624 = vmatprep.subr.mxu0 0.0
    %625 = vmatpush1.msra.mxu0 0.0
    %626 = vmatprep.subr.mxu0 0.0
    %627 = vmatpush1.msra.mxu0 0.0
    %628 = vmatprep.subr.mxu0 0.0
    %629 = vmatpush1.msra.mxu0 0.0
    %630 = vmatprep.subr.mxu0 0.0
    %631 = vmatpush1.msra.mxu0 0.0
    %632 = vmatprep.subr.mxu0 0.0
    %633 = vmatpush1.msra.mxu0 0.0
    %634 = vmatprep.subr.mxu0 0.0
    %635 = vmatpush1.msra.mxu0 0.0
    %636 = vmatprep.subr.mxu0 0.0
    %637 = vmatpush1.msra.mxu0 0.0
    %638 = vmatprep.subr.mxu0 0.0
    %639 = vmatpush1.msra.mxu0 0.0
    %640 = vmatprep.subr.mxu0 0.0
    %641 = vmatpush1.msra.mxu0 0.0
    %642 = vmatprep.subr.mxu0 0.0
    %643 = vmatpush1.msra.mxu0 0.0
    %644 = vmatprep.subr.mxu0 0.0
    %645 = vmatpush1.msra.mxu0 0.0
    %646 = vmatprep.subr.mxu0 0.0
    %647 = vmatpush1.msra.mxu0 0.0
    %648 = vmatprep.subr.mxu0 0.0
    %649 = vmatpush1.msra.mxu0 0.0
    %650 = vmatprep.subr.mxu0 0.0
    %651 = vmatpush1.msra.mxu0 0.0
    %652 = vmatprep.subr.mxu0 0.0
    %653 = vmatpush1.msra.mxu0 0.0
    %654 = vmatprep.subr.mxu0 0.0
    %655 = vmatpush1.msra.mxu0 0.0
    %656 = vmatprep.subr.mxu0 0.0
    %657 = vmatpush1.msra.mxu0 0.0
    %658 = vmatprep.subr.mxu0 0.0
    %659 = vmatpush1.msra.mxu0 0.0
    %660 = vmatprep.subr.mxu0 0.0
    %661 = vmatpush1.msra.mxu0 0.0
    %662 = vmatprep.subr.mxu0 0.0
    %663 = vmatpush1.msra.mxu0 0.0
    %664 = vmatprep.subr.mxu0 0.0
    %665 = vmatpush1.msra.mxu0 0.0
    %666 = vmatprep.subr.mxu0 0.0
    %667 = vmatpush1.msra.mxu0 0.0
    %668 = vmatprep.subr.mxu0 0.0
    %669 = vmatpush1.msra.mxu0 0.0
    %670 = vmatprep.subr.mxu0 0.0
    %671 = vmatpush1.msra.mxu0 0.0
    %672 = vmatprep.subr.mxu0 0.0
    %673 = vmatpush1.msra.mxu0 0.0
    %674 = vmatprep.subr.mxu0 0.0
    %675 = vmatpush1.msra.mxu0 0.0
    %676 = vmatprep.subr.mxu0 0.0
    %677 = vmatpush1.msra.mxu0 0.0
    %678 = vmatprep.subr.mxu0 0.0
    %679 = vmatpush1.msra.mxu0 0.0
    %680 = vmatprep.mubr.f32.mxu0 0.0
    %681 = vmatmul.mubr.f32.gmra.mrb[0].mxu0 %v614
    %v682 = vpop.f32.mrb[0].mxu0
    %v683 = vadd.f32 0.0, %v682
    %v684 = vpop.f32.mrb[0].mxu0
    %685 = vdwg.mxu0
    %v686 = vadd.f32 %v373, %v683
    %v687 = vxor.u32 %v686, 2147483648
    %v688 = vmul.f32 %v687, 1.442695
    %v689 = vpow.pop %v688
    %v690 = vadd.f32 %v689, 1.0
    %v691 = vrcp.pop %v690
    %v692 = vmul.f32 1.0, %v691
    %v693 = vmul.f32 %v692, 2.0
    %v694 = vsub.f32 %v693, 1.0
    %v695 = vsel %vm45, %v694, %v692
    %v696 = vmul.f32 %v695, %v602
    %698 = vrot.lane.b32.xlu0 %v695, 64
    %v699 = vpop.permute.xlu0 %698
    %v701 = vmul.f32 %v695, %v699
    %703 = vrot.lane.b32.xlu0 %v701, 32
    %v704 = vpop.permute.xlu0 %703
    %v706 = vadd.f32 %v696, %v704
    %v707 = vtanh.pop %v706
    %709 = vrot.lane.b32.xlu0 %v707, 64
    %v710 = vpop.permute.xlu0 %709
    %v712 = vmul.f32 %v695, %v710
    %714 = vrot.lane.b32.xlu0 %v712, 32
    %v715 = vpop.permute.xlu0 %714
    %717 = vst.msk [vmem:[#allocation2 + $0x10] sm:$0xff] %vm271, %v715
    %v718 = vsel %vm271, %v715, 0
    %720 = vmatprep.subr.mxu0 0.0
    %721 = vmatpush1.msra.mxu0 %v260
    %722 = vmatprep.subr.mxu0 0.0
    %723 = vmatpush1.msra.mxu0 %v261
    %724 = vmatprep.subr.mxu0 0.0
    %725 = vmatpush1.msra.mxu0 %v262
    %726 = vmatprep.subr.mxu0 0.0
    %727 = vmatpush1.msra.mxu0 %v263
    %728 = vmatprep.subr.mxu0 0.0
    %729 = vmatpush1.msra.mxu0 0.0
    %730 = vmatprep.subr.mxu0 0.0
    %731 = vmatpush1.msra.mxu0 0.0
    %732 = vmatprep.subr.mxu0 0.0
    %733 = vmatpush1.msra.mxu0 0.0
    %734 = vmatprep.subr.mxu0 0.0
    %735 = vmatpush1.msra.mxu0 0.0
    %736 = vmatprep.subr.mxu0 0.0
    %737 = vmatpush1.msra.mxu0 0.0
    %738 = vmatprep.subr.mxu0 0.0
    %739 = vmatpush1.msra.mxu0 0.0
    %740 = vmatprep.subr.mxu0 0.0
    %741 = vmatpush1.msra.mxu0 0.0
    %742 = vmatprep.subr.mxu0 0.0
    %743 = vmatpush1.msra.mxu0 0.0
    %744 = vmatprep.subr.mxu0 0.0
    %745 = vmatpush1.msra.mxu0 0.0
    %746 = vmatprep.subr.mxu0 0.0
    %747 = vmatpush1.msra.mxu0 0.0
    %748 = vmatprep.subr.mxu0 0.0
    %749 = vmatpush1.msra.mxu0 0.0
    %750 = vmatprep.subr.mxu0 0.0
    %751 = vmatpush1.msra.mxu0 0.0
    %752 = vmatprep.subr.mxu0 0.0
    %753 = vmatpush1.msra.mxu0 0.0
    %754 = vmatprep.subr.mxu0 0.0
    %755 = vmatpush1.msra.mxu0 0.0
    %756 = vmatprep.subr.mxu0 0.0
    %757 = vmatpush1.msra.mxu0 0.0
    %758 = vmatprep.subr.mxu0 0.0
    %759 = vmatpush1.msra.mxu0 0.0
    %760 = vmatprep.subr.mxu0 0.0
    %761 = vmatpush1.msra.mxu0 0.0
    %762 = vmatprep.subr.mxu0 0.0
    %763 = vmatpush1.msra.mxu0 0.0
    %764 = vmatprep.subr.mxu0 0.0
    %765 = vmatpush1.msra.mxu0 0.0
    %766 = vmatprep.subr.mxu0 0.0
    %767 = vmatpush1.msra.mxu0 0.0
    %768 = vmatprep.subr.mxu0 0.0
    %769 = vmatpush1.msra.mxu0 0.0
    %770 = vmatprep.subr.mxu0 0.0
    %771 = vmatpush1.msra.mxu0 0.0
    %772 = vmatprep.subr.mxu0 0.0
    %773 = vmatpush1.msra.mxu0 0.0
    %774 = vmatprep.subr.mxu0 0.0
    %775 = vmatpush1.msra.mxu0 0.0
    %776 = vmatprep.subr.mxu0 0.0
    %777 = vmatpush1.msra.mxu0 0.0
    %778 = vmatprep.subr.mxu0 0.0
    %779 = vmatpush1.msra.mxu0 0.0
    %780 = vmatprep.subr.mxu0 0.0
    %781 = vmatpush1.msra.mxu0 0.0
    %782 = vmatprep.subr.mxu0 0.0
    %783 = vmatpush1.msra.mxu0 0.0
    %784 = vmatprep.mubr.f32.mxu0 0.0
    %785 = vmatmul.mubr.f32.gmra.mrb[0].mxu0 %v718
    %v786 = vpop.f32.mrb[0].mxu0
    %v787 = vadd.f32 0.0, %v786
    %v788 = vpop.f32.mrb[0].mxu0
    %789 = vdwg.mxu0
    %v790 = vadd.f32 %v378, %v787
    %v791 = vxor.u32 %v790, 2147483648
    %v792 = vmul.f32 %v791, 1.442695
    %v793 = vpow.pop %v792
    %v794 = vadd.f32 %v793, 1.0
    %v795 = vrcp.pop %v794
    %v796 = vmul.f32 1.0, %v795
    %v797 = vmul.f32 %v796, 2.0
    %v798 = vsub.f32 %v797, 1.0
    %v799 = vsel %vm45, %v798, %v796
    %v800 = vmul.f32 %v799, %v706
    %802 = vrot.lane.b32.xlu0 %v799, 64
    %v803 = vpop.permute.xlu0 %802
    %v805 = vmul.f32 %v799, %v803
    %807 = vrot.lane.b32.xlu0 %v805, 32
    %v808 = vpop.permute.xlu0 %807
    %v810 = vadd.f32 %v800, %v808
    %v811 = vtanh.pop %v810
    %813 = vrot.lane.b32.xlu0 %v811, 64
    %v814 = vpop.permute.xlu0 %813
    %v816 = vmul.f32 %v799, %v814
    %818 = vrot.lane.b32.xlu0 %v816, 32
    %v819 = vpop.permute.xlu0 %818
    %821 = vst.msk [vmem:[#allocation2 + $0x18] sm:$0xff] %vm271, %v819
    %v822 = vsel %vm271, %v819, 0
    %824 = vmatprep.subr.mxu0 0.0
    %825 = vmatpush1.msra.mxu0 %v260
    %826 = vmatprep.subr.mxu0 0.0
    %827 = vmatpush1.msra.mxu0 %v261
    %828 = vmatprep.subr.mxu0 0.0
    %829 = vmatpush1.msra.mxu0 %v262
    %830 = vmatprep.subr.mxu0 0.0
    %831 = vmatpush1.msra.mxu0 %v263
    %832 = vmatprep.subr.mxu0 0.0
    %833 = vmatpush1.msra.mxu0 0.0
    %834 = vmatprep.subr.mxu0 0.0
    %835 = vmatpush1.msra.mxu0 0.0
    %836 = vmatprep.subr.mxu0 0.0
    %837 = vmatpush1.msra.mxu0 0.0
    %838 = vmatprep.subr.mxu0 0.0
    %839 = vmatpush1.msra.mxu0 0.0
    %840 = vmatprep.subr.mxu0 0.0
    %841 = vmatpush1.msra.mxu0 0.0
    %842 = vmatprep.subr.mxu0 0.0
    %843 = vmatpush1.msra.mxu0 0.0
    %844 = vmatprep.subr.mxu0 0.0
    %845 = vmatpush1.msra.mxu0 0.0
    %846 = vmatprep.subr.mxu0 0.0
    %847 = vmatpush1.msra.mxu0 0.0
    %848 = vmatprep.subr.mxu0 0.0
    %849 = vmatpush1.msra.mxu0 0.0
    %850 = vmatprep.subr.mxu0 0.0
    %851 = vmatpush1.msra.mxu0 0.0
    %852 = vmatprep.subr.mxu0 0.0
    %853 = vmatpush1.msra.mxu0 0.0
    %854 = vmatprep.subr.mxu0 0.0
    %855 = vmatpush1.msra.mxu0 0.0
    %856 = vmatprep.subr.mxu0 0.0
    %857 = vmatpush1.msra.mxu0 0.0
    %858 = vmatprep.subr.mxu0 0.0
    %859 = vmatpush1.msra.mxu0 0.0
    %860 = vmatprep.subr.mxu0 0.0
    %861 = vmatpush1.msra.mxu0 0.0
    %862 = vmatprep.subr.mxu0 0.0
    %863 = vmatpush1.msra.mxu0 0.0
    %864 = vmatprep.subr.mxu0 0.0
    %865 = vmatpush1.msra.mxu0 0.0
    %866 = vmatprep.subr.mxu0 0.0
    %867 = vmatpush1.msra.mxu0 0.0
    %868 = vmatprep.subr.mxu0 0.0
    %869 = vmatpush1.msra.mxu0 0.0
    %870 = vmatprep.subr.mxu0 0.0
    %871 = vmatpush1.msra.mxu0 0.0
    %872 = vmatprep.subr.mxu0 0.0
    %873 = vmatpush1.msra.mxu0 0.0
    %874 = vmatprep.subr.mxu0 0.0
    %875 = vmatpush1.msra.mxu0 0.0
    %876 = vmatprep.subr.mxu0 0.0
    %877 = vmatpush1.msra.mxu0 0.0
    %878 = vmatprep.subr.mxu0 0.0
    %879 = vmatpush1.msra.mxu0 0.0
    %880 = vmatprep.subr.mxu0 0.0
    %881 = vmatpush1.msra.mxu0 0.0
    %882 = vmatprep.subr.mxu0 0.0
    %883 = vmatpush1.msra.mxu0 0.0
    %884 = vmatprep.subr.mxu0 0.0
    %885 = vmatpush1.msra.mxu0 0.0
    %886 = vmatprep.subr.mxu0 0.0
    %887 = vmatpush1.msra.mxu0 0.0
    %888 = vmatprep.mubr.f32.mxu0 0.0
    %889 = vmatmul.mubr.f32.gmra.mrb[0].mxu0 %v822
    %v890 = vpop.f32.mrb[0].mxu0
    %v891 = vadd.f32 0.0, %v890
    %v892 = vpop.f32.mrb[0].mxu0
    %893 = vdwg.mxu0
    %v894 = vadd.f32 %v383, %v891
    %v895 = vxor.u32 %v894, 2147483648
    %v896 = vmul.f32 %v895, 1.442695
    %v897 = vpow.pop %v896
    %v898 = vadd.f32 %v897, 1.0
    %v899 = vrcp.pop %v898
    %v900 = vmul.f32 1.0, %v899
    %v901 = vmul.f32 %v900, 2.0
    %v902 = vsub.f32 %v901, 1.0
    %v903 = vsel %vm45, %v902, %v900
    %v904 = vmul.f32 %v903, %v810
    %906 = vrot.lane.b32.xlu0 %v903, 64
    %v907 = vpop.permute.xlu0 %906
    %v909 = vmul.f32 %v903, %v907
    %911 = vrot.lane.b32.xlu0 %v909, 32
    %v912 = vpop.permute.xlu0 %911
    %v914 = vadd.f32 %v904, %v912
    %v915 = vtanh.pop %v914
    %917 = vrot.lane.b32.xlu0 %v915, 64
    %v918 = vpop.permute.xlu0 %917
    %v920 = vmul.f32 %v903, %v918
    %922 = vrot.lane.b32.xlu0 %v920, 32
    %v923 = vpop.permute.xlu0 %922
    %925 = vst.msk [vmem:[#allocation2 + $0x20] sm:$0xff] %vm271, %v923
    %v926 = vsel %vm271, %v923, 0
    %928 = vmatprep.subr.mxu0 0.0
    %929 = vmatpush1.msra.mxu0 %v260
    %930 = vmatprep.subr.mxu0 0.0
    %931 = vmatpush1.msra.mxu0 %v261
    %932 = vmatprep.subr.mxu0 0.0
    %933 = vmatpush1.msra.mxu0 %v262
    %934 = vmatprep.subr.mxu0 0.0
    %935 = vmatpush1.msra.mxu0 %v263
    %936 = vmatprep.subr.mxu0 0.0
    %937 = vmatpush1.msra.mxu0 0.0
    %938 = vmatprep.subr.mxu0 0.0
    %939 = vmatpush1.msra.mxu0 0.0
    %940 = vmatprep.subr.mxu0 0.0
    %941 = vmatpush1.msra.mxu0 0.0
    %942 = vmatprep.subr.mxu0 0.0
    %943 = vmatpush1.msra.mxu0 0.0
    %944 = vmatprep.subr.mxu0 0.0
    %945 = vmatpush1.msra.mxu0 0.0
    %946 = vmatprep.subr.mxu0 0.0
    %947 = vmatpush1.msra.mxu0 0.0
    %948 = vmatprep.subr.mxu0 0.0
    %949 = vmatpush1.msra.mxu0 0.0
    %950 = vmatprep.subr.mxu0 0.0
    %951 = vmatpush1.msra.mxu0 0.0
    %952 = vmatprep.subr.mxu0 0.0
    %953 = vmatpush1.msra.mxu0 0.0
    %954 = vmatprep.subr.mxu0 0.0
    %955 = vmatpush1.msra.mxu0 0.0
    %956 = vmatprep.subr.mxu0 0.0
    %957 = vmatpush1.msra.mxu0 0.0
    %958 = vmatprep.subr.mxu0 0.0
    %959 = vmatpush1.msra.mxu0 0.0
    %960 = vmatprep.subr.mxu0 0.0
    %961 = vmatpush1.msra.mxu0 0.0
    %962 = vmatprep.subr.mxu0 0.0
    %963 = vmatpush1.msra.mxu0 0.0
    %964 = vmatprep.subr.mxu0 0.0
    %965 = vmatpush1.msra.mxu0 0.0
    %966 = vmatprep.subr.mxu0 0.0
    %967 = vmatpush1.msra.mxu0 0.0
    %968 = vmatprep.subr.mxu0 0.0
    %969 = vmatpush1.msra.mxu0 0.0
    %970 = vmatprep.subr.mxu0 0.0
    %971 = vmatpush1.msra.mxu0 0.0
    %972 = vmatprep.subr.mxu0 0.0
    %973 = vmatpush1.msra.mxu0 0.0
    %974 = vmatprep.subr.mxu0 0.0
    %975 = vmatpush1.msra.mxu0 0.0
    %976 = vmatprep.subr.mxu0 0.0
    %977 = vmatpush1.msra.mxu0 0.0
    %978 = vmatprep.subr.mxu0 0.0
    %979 = vmatpush1.msra.mxu0 0.0
    %980 = vmatprep.subr.mxu0 0.0
    %981 = vmatpush1.msra.mxu0 0.0
    %982 = vmatprep.subr.mxu0 0.0
    %983 = vmatpush1.msra.mxu0 0.0
    %984 = vmatprep.subr.mxu0 0.0
    %985 = vmatpush1.msra.mxu0 0.0
    %986 = vmatprep.subr.mxu0 0.0
    %987 = vmatpush1.msra.mxu0 0.0
    %988 = vmatprep.subr.mxu0 0.0
    %989 = vmatpush1.msra.mxu0 0.0
    %990 = vmatprep.subr.mxu0 0.0
    %991 = vmatpush1.msra.mxu0 0.0
    %992 = vmatprep.mubr.f32.mxu0 0.0
    %993 = vmatmul.mubr.f32.gmra.mrb[0].mxu0 %v926
    %v994 = vpop.f32.mrb[0].mxu0
    %v995 = vadd.f32 0.0, %v994
    %v996 = vpop.f32.mrb[0].mxu0
    %997 = vdwg.mxu0
    %v998 = vadd.f32 %v388, %v995
    %v999 = vxor.u32 %v998, 2147483648
    %v1000 = vmul.f32 %v999, 1.442695
    %v1001 = vpow.pop %v1000
    %v1002 = vadd.f32 %v1001, 1.0
    %v1003 = vrcp.pop %v1002
    %v1004 = vmul.f32 1.0, %v1003
    %v1005 = vmul.f32 %v1004, 2.0
    %v1006 = vsub.f32 %v1005, 1.0
    %v1007 = vsel %vm45, %v1006, %v1004
    %v1008 = vmul.f32 %v1007, %v914
    %1010 = vrot.lane.b32.xlu0 %v1007, 64
    %v1011 = vpop.permute.xlu0 %1010
    %v1013 = vmul.f32 %v1007, %v1011
    %1015 = vrot.lane.b32.xlu0 %v1013, 32
    %v1016 = vpop.permute.xlu0 %1015
    %v1018 = vadd.f32 %v1008, %v1016
    %v1019 = vtanh.pop %v1018
    %1021 = vrot.lane.b32.xlu0 %v1019, 64
    %v1022 = vpop.permute.xlu0 %1021
    %v1024 = vmul.f32 %v1007, %v1022
    %1026 = vrot.lane.b32.xlu0 %v1024, 32
    %v1027 = vpop.permute.xlu0 %1026
    %1029 = vst.msk [vmem:[#allocation2 + $0x28] sm:$0xff] %vm271, %v1027
    %v1030 = vsel %vm271, %v1027, 0
    %1032 = vmatprep.subr.mxu0 0.0
    %1033 = vmatpush1.msra.mxu0 %v260
    %1034 = vmatprep.subr.mxu0 0.0
    %1035 = vmatpush1.msra.mxu0 %v261
    %1036 = vmatprep.subr.mxu0 0.0
    %1037 = vmatpush1.msra.mxu0 %v262
    %1038 = vmatprep.subr.mxu0 0.0
    %1039 = vmatpush1.msra.mxu0 %v263
    %1040 = vmatprep.subr.mxu0 0.0
    %1041 = vmatpush1.msra.mxu0 0.0
    %1042 = vmatprep.subr.mxu0 0.0
    %1043 = vmatpush1.msra.mxu0 0.0
    %1044 = vmatprep.subr.mxu0 0.0
    %1045 = vmatpush1.msra.mxu0 0.0
    %1046 = vmatprep.subr.mxu0 0.0
    %1047 = vmatpush1.msra.mxu0 0.0
    %1048 = vmatprep.subr.mxu0 0.0
    %1049 = vmatpush1.msra.mxu0 0.0
    %1050 = vmatprep.subr.mxu0 0.0
    %1051 = vmatpush1.msra.mxu0 0.0
    %1052 = vmatprep.subr.mxu0 0.0
    %1053 = vmatpush1.msra.mxu0 0.0
    %1054 = vmatprep.subr.mxu0 0.0
    %1055 = vmatpush1.msra.mxu0 0.0
    %1056 = vmatprep.subr.mxu0 0.0
    %1057 = vmatpush1.msra.mxu0 0.0
    %1058 = vmatprep.subr.mxu0 0.0
    %1059 = vmatpush1.msra.mxu0 0.0
    %1060 = vmatprep.subr.mxu0 0.0
    %1061 = vmatpush1.msra.mxu0 0.0
    %1062 = vmatprep.subr.mxu0 0.0
    %1063 = vmatpush1.msra.mxu0 0.0
    %1064 = vmatprep.subr.mxu0 0.0
    %1065 = vmatpush1.msra.mxu0 0.0
    %1066 = vmatprep.subr.mxu0 0.0
    %1067 = vmatpush1.msra.mxu0 0.0
    %1068 = vmatprep.subr.mxu0 0.0
    %1069 = vmatpush1.msra.mxu0 0.0
    %1070 = vmatprep.subr.mxu0 0.0
    %1071 = vmatpush1.msra.mxu0 0.0
    %1072 = vmatprep.subr.mxu0 0.0
    %1073 = vmatpush1.msra.mxu0 0.0
    %1074 = vmatprep.subr.mxu0 0.0
    %1075 = vmatpush1.msra.mxu0 0.0
    %1076 = vmatprep.subr.mxu0 0.0
    %1077 = vmatpush1.msra.mxu0 0.0
    %1078 = vmatprep.subr.mxu0 0.0
    %1079 = vmatpush1.msra.mxu0 0.0
    %1080 = vmatprep.subr.mxu0 0.0
    %1081 = vmatpush1.msra.mxu0 0.0
    %1082 = vmatprep.subr.mxu0 0.0
    %1083 = vmatpush1.msra.mxu0 0.0
    %1084 = vmatprep.subr.mxu0 0.0
    %1085 = vmatpush1.msra.mxu0 0.0
    %1086 = vmatprep.subr.mxu0 0.0
    %1087 = vmatpush1.msra.mxu0 0.0
    %1088 = vmatprep.subr.mxu0 0.0
    %1089 = vmatpush1.msra.mxu0 0.0
    %1090 = vmatprep.subr.mxu0 0.0
    %1091 = vmatpush1.msra.mxu0 0.0
    %1092 = vmatprep.subr.mxu0 0.0
    %1093 = vmatpush1.msra.mxu0 0.0
    %1094 = vmatprep.subr.mxu0 0.0
    %1095 = vmatpush1.msra.mxu0 0.0
    %1096 = vmatprep.mubr.f32.mxu0 0.0
    %1097 = vmatmul.mubr.f32.gmra.mrb[0].mxu0 %v1030
    %v1098 = vpop.f32.mrb[0].mxu0
    %v1099 = vadd.f32 0.0, %v1098
    %v1100 = vpop.f32.mrb[0].mxu0
    %1101 = vdwg.mxu0
    %v1102 = vadd.f32 %v393, %v1099
    %v1103 = vxor.u32 %v1102, 2147483648
    %v1104 = vmul.f32 %v1103, 1.442695
    %v1105 = vpow.pop %v1104
    %v1106 = vadd.f32 %v1105, 1.0
    %v1107 = vrcp.pop %v1106
    %v1108 = vmul.f32 1.0, %v1107
    %v1109 = vmul.f32 %v1108, 2.0
    %v1110 = vsub.f32 %v1109, 1.0
    %v1111 = vsel %vm45, %v1110, %v1108
    %v1112 = vmul.f32 %v1111, %v1018
    %1114 = vrot.lane.b32.xlu0 %v1111, 64
    %v1115 = vpop.permute.xlu0 %1114
    %v1117 = vmul.f32 %v1111, %v1115
    %1119 = vrot.lane.b32.xlu0 %v1117, 32
    %v1120 = vpop.permute.xlu0 %1119
    %v1122 = vadd.f32 %v1112, %v1120
    %v1123 = vtanh.pop %v1122
    %1125 = vrot.lane.b32.xlu0 %v1123, 64
    %v1126 = vpop.permute.xlu0 %1125
    %v1128 = vmul.f32 %v1111, %v1126
    %1130 = vrot.lane.b32.xlu0 %v1128, 32
    %v1131 = vpop.permute.xlu0 %1130
    %1133 = vst.msk [vmem:[#allocation2 + $0x30] sm:$0xff] %vm271, %v1131
    %v1134 = vsel %vm271, %v1131, 0
    %1136 = vmatprep.subr.mxu0 0.0
    %1137 = vmatpush1.msra.mxu0 %v260
    %1138 = vmatprep.subr.mxu0 0.0
    %1139 = vmatpush1.msra.mxu0 %v261
    %1140 = vmatprep.subr.mxu0 0.0
    %1141 = vmatpush1.msra.mxu0 %v262
    %1142 = vmatprep.subr.mxu0 0.0
    %1143 = vmatpush1.msra.mxu0 %v263
    %1144 = vmatprep.subr.mxu0 0.0
    %1145 = vmatpush1.msra.mxu0 0.0
    %1146 = vmatprep.subr.mxu0 0.0
    %1147 = vmatpush1.msra.mxu0 0.0
    %1148 = vmatprep.subr.mxu0 0.0
    %1149 = vmatpush1.msra.mxu0 0.0
    %1150 = vmatprep.subr.mxu0 0.0
    %1151 = vmatpush1.msra.mxu0 0.0
    %1152 = vmatprep.subr.mxu0 0.0
    %1153 = vmatpush1.msra.mxu0 0.0
    %1154 = vmatprep.subr.mxu0 0.0
    %1155 = vmatpush1.msra.mxu0 0.0
    %1156 = vmatprep.subr.mxu0 0.0
    %1157 = vmatpush1.msra.mxu0 0.0
    %1158 = vmatprep.subr.mxu0 0.0
    %1159 = vmatpush1.msra.mxu0 0.0
    %1160 = vmatprep.subr.mxu0 0.0
    %1161 = vmatpush1.msra.mxu0 0.0
    %1162 = vmatprep.subr.mxu0 0.0
    %1163 = vmatpush1.msra.mxu0 0.0
    %1164 = vmatprep.subr.mxu0 0.0
    %1165 = vmatpush1.msra.mxu0 0.0
    %1166 = vmatprep.subr.mxu0 0.0
    %1167 = vmatpush1.msra.mxu0 0.0
    %1168 = vmatprep.subr.mxu0 0.0
    %1169 = vmatpush1.msra.mxu0 0.0
    %1170 = vmatprep.subr.mxu0 0.0
    %1171 = vmatpush1.msra.mxu0 0.0
    %1172 = vmatprep.subr.mxu0 0.0
    %1173 = vmatpush1.msra.mxu0 0.0
    %1174 = vmatprep.subr.mxu0 0.0
    %1175 = vmatpush1.msra.mxu0 0.0
    %1176 = vmatprep.subr.mxu0 0.0
    %1177 = vmatpush1.msra.mxu0 0.0
    %1178 = vmatprep.subr.mxu0 0.0
    %1179 = vmatpush1.msra.mxu0 0.0
    %1180 = vmatprep.subr.mxu0 0.0
    %1181 = vmatpush1.msra.mxu0 0.0
    %1182 = vmatprep.subr.mxu0 0.0
    %1183 = vmatpush1.msra.mxu0 0.0
    %1184 = vmatprep.subr.mxu0 0.0
    %1185 = vmatpush1.msra.mxu0 0.0
    %1186 = vmatprep.subr.mxu0 0.0
    %1187 = vmatpush1.msra.mxu0 0.0
    %1188 = vmatprep.subr.mxu0 0.0
    %1189 = vmatpush1.msra.mxu0 0.0
    %1190 = vmatprep.subr.mxu0 0.0
    %1191 = vmatpush1.msra.mxu0 0.0
    %1192 = vmatprep.subr.mxu0 0.0
    %1193 = vmatpush1.msra.mxu0 0.0
    %1194 = vmatprep.subr.mxu0 0.0
    %1195 = vmatpush1.msra.mxu0 0.0
    %1196 = vmatprep.subr.mxu0 0.0
    %1197 = vmatpush1.msra.mxu0 0.0
    %1198 = vmatprep.subr.mxu0 0.0
    %1199 = vmatpush1.msra.mxu0 0.0
    %1200 = vmatprep.mubr.f32.mxu0 0.0
    %1201 = vmatmul.mubr.f32.gmra.mrb[0].mxu0 %v1134
    %v1202 = vpop.f32.mrb[0].mxu0
    %v1203 = vadd.f32 0.0, %v1202
    %v1204 = vpop.f32.mrb[0].mxu0
    %1205 = vdwg.mxu0
    %v1206 = vadd.f32 %v398, %v1203
    %v1207 = vxor.u32 %v1206, 2147483648
    %v1208 = vmul.f32 %v1207, 1.442695
    %v1209 = vpow.pop %v1208
    %v1210 = vadd.f32 %v1209, 1.0
    %v1211 = vrcp.pop %v1210
    %v1212 = vmul.f32 1.0, %v1211
    %v1213 = vmul.f32 %v1212, 2.0
    %v1214 = vsub.f32 %v1213, 1.0
    %v1215 = vsel %vm45, %v1214, %v1212
    %v1216 = vmul.f32 %v1215, %v1122
    %1218 = vrot.lane.b32.xlu0 %v1215, 64
    %v1219 = vpop.permute.xlu0 %1218
    %v1221 = vmul.f32 %v1215, %v1219
    %1223 = vrot.lane.b32.xlu0 %v1221, 32
    %v1224 = vpop.permute.xlu0 %1223
    %v1226 = vadd.f32 %v1216, %v1224
    %v1227 = vtanh.pop %v1226
    %1229 = vrot.lane.b32.xlu0 %v1227, 64
    %v1230 = vpop.permute.xlu0 %1229
    %v1232 = vmul.f32 %v1215, %v1230
    %1234 = vrot.lane.b32.xlu0 %v1232, 32
    %v1235 = vpop.permute.xlu0 %1234
    %1237 = vst.msk [vmem:[#allocation2 + $0x38] sm:$0xff] %vm271, %v1235
    %v1238 = vld [vmem:[#allocation2] sm:$0xff]
    %v1239 = vld [vmem:[#allocation2 + $0x8] sm:$0xff]
    %v1240 = vld [vmem:[#allocation2 + $0x10] sm:$0xff]
    %v1241 = vld [vmem:[#allocation2 + $0x18] sm:$0xff]
    %v1242 = vld [vmem:[#allocation2 + $0x20] sm:$0xff]
    %v1243 = vld [vmem:[#allocation2 + $0x28] sm:$0xff]
    %v1244 = vld [vmem:[#allocation2 + $0x30] sm:$0xff]
    %v1245 = vld [vmem:[#allocation2 + $0x38] sm:$0xff]
    %s1246 = scalar_lea.vmem %s3, 64
    %v1247 = vld [vmem:[%s1246] sm:$0xff]
    %v1248 = vld [vmem:[%s1246 + $0x8] sm:$0xff]
    %v1249 = vld [vmem:[%s1246 + $0x10] sm:$0xff]
    %v1250 = vld [vmem:[%s1246 + $0x18] sm:$0xff]
    %v1251 = vld [vmem:[%s1246 + $0x20] sm:$0xff]
    %v1252 = vld [vmem:[%s1246 + $0x28] sm:$0xff]
    %v1253 = vld [vmem:[%s1246 + $0x30] sm:$0xff]
    %v1254 = vld [vmem:[%s1246 + $0x38] sm:$0xff]
    %s1255 = scalar_lea.vmem %s6, 8
    %v1256 = vld [vmem:[%s1255] sm:$0xff]
    %s1257 = scalar_lea.vmem %s6, 32
    %v1258 = vld [vmem:[%s1257] sm:$0xff]
    %v1259 = vlaneseq
    %v1260 = vshrl.u32 %v1259, 7
    %v1261 = vsub.s32 1, %v1260
    %v1262 = vrot.slane %v40, %v1261
    %v1264 = vsel %vm271, %v1238, 0
    %v1267 = vsel %vm271, %v1239, 0
    %v1270 = vsel %vm271, %v1240, 0
    %v1273 = vsel %vm271, %v1241, 0
    %v1276 = vsel %vm271, %v1242, 0
    %v1279 = vsel %vm271, %v1243, 0
    %v1282 = vsel %vm271, %v1244, 0
    %v1285 = vsel %vm271, %v1245, 0
    %1287 = vmatprep.subr.mxu0 0.0
    %1288 = vmatpush1.msra.mxu0 %v1247
    %1289 = vmatprep.subr.mxu0 0.0
    %1290 = vmatpush1.msra.mxu0 %v1248
    %1291 = vmatprep.subr.mxu0 0.0
    %1292 = vmatpush1.msra.mxu0 %v1249
    %1293 = vmatprep.subr.mxu0 0.0
    %1294 = vmatpush1.msra.mxu0 %v1250
    %1295 = vmatprep.subr.mxu0 0.0
    %1296 = vmatpush1.msra.mxu0 0.0
    %1297 = vmatprep.subr.mxu0 0.0
    %1298 = vmatpush1.msra.mxu0 0.0
    %1299 = vmatprep.subr.mxu0 0.0
    %1300 = vmatpush1.msra.mxu0 0.0
    %1301 = vmatprep.subr.mxu0 0.0
    %1302 = vmatpush1.msra.mxu0 0.0
    %1303 = vmatprep.subr.mxu0 0.0
    %1304 = vmatpush1.msra.mxu0 0.0
    %1305 = vmatprep.subr.mxu0 0.0
    %1306 = vmatpush1.msra.mxu0 0.0
    %1307 = vmatprep.subr.mxu0 0.0
    %1308 = vmatpush1.msra.mxu0 0.0
    %1309 = vmatprep.subr.mxu0 0.0
    %1310 = vmatpush1.msra.mxu0 0.0
    %1311 = vmatprep.subr.mxu0 0.0
    %1312 = vmatpush1.msra.mxu0 0.0
    %1313 = vmatprep.subr.mxu0 0.0
    %1314 = vmatpush1.msra.mxu0 0.0
    %1315 = vmatprep.subr.mxu0 0.0
    %1316 = vmatpush1.msra.mxu0 0.0
    %1317 = vmatprep.subr.mxu0 0.0
    %1318 = vmatpush1.msra.mxu0 0.0
    %1319 = vmatprep.subr.mxu0 0.0
    %1320 = vmatpush1.msra.mxu0 0.0
    %1321 = vmatprep.subr.mxu0 0.0
    %1322 = vmatpush1.msra.mxu0 0.0
    %1323 = vmatprep.subr.mxu0 0.0
    %1324 = vmatpush1.msra.mxu0 0.0
    %1325 = vmatprep.subr.mxu0 0.0
    %1326 = vmatpush1.msra.mxu0 0.0
    %1327 = vmatprep.subr.mxu0 0.0
    %1328 = vmatpush1.msra.mxu0 0.0
    %1329 = vmatprep.subr.mxu0 0.0
    %1330 = vmatpush1.msra.mxu0 0.0
    %1331 = vmatprep.subr.mxu0 0.0
    %1332 = vmatpush1.msra.mxu0 0.0
    %1333 = vmatprep.subr.mxu0 0.0
    %1334 = vmatpush1.msra.mxu0 0.0
    %1335 = vmatprep.subr.mxu0 0.0
    %1336 = vmatpush1.msra.mxu0 0.0
    %1337 = vmatprep.subr.mxu0 0.0
    %1338 = vmatpush1.msra.mxu0 0.0
    %1339 = vmatprep.subr.mxu0 0.0
    %1340 = vmatpush1.msra.mxu0 0.0
    %1341 = vmatprep.subr.mxu0 0.0
    %1342 = vmatpush1.msra.mxu0 0.0
    %1343 = vmatprep.subr.mxu0 0.0
    %1344 = vmatpush1.msra.mxu0 0.0
    %1345 = vmatprep.subr.mxu0 0.0
    %1346 = vmatpush1.msra.mxu0 0.0
    %1347 = vmatprep.subr.mxu0 0.0
    %1348 = vmatpush1.msra.mxu0 0.0
    %1349 = vmatprep.subr.mxu0 0.0
    %1350 = vmatpush1.msra.mxu0 0.0
    %1351 = vmatprep.mubr.f32.mxu0 0.0
    %1352 = vmatmul.mubr.f32.gmra.mrb[0].mxu0 %v1264
    %v1353 = vpop.f32.mrb[0].mxu0
    %v1354 = vadd.f32 %v1262, %v1353
    %v1355 = vpop.f32.mrb[0].mxu0
    %1356 = vmatprep.mubr.f32.mxu0 0.0
    %1357 = vmatmul.mubr.f32.gmra.mrb[0].mxu0 %v1267
    %v1358 = vpop.f32.mrb[0].mxu0
    %v1359 = vadd.f32 %v1262, %v1358
    %v1360 = vpop.f32.mrb[0].mxu0
    %1361 = vmatprep.mubr.f32.mxu0 0.0
    %1362 = vmatmul.mubr.f32.gmra.mrb[0].mxu0 %v1270
    %v1363 = vpop.f32.mrb[0].mxu0
    %v1364 = vadd.f32 %v1262, %v1363
    %v1365 = vpop.f32.mrb[0].mxu0
    %1366 = vmatprep.mubr.f32.mxu0 0.0
    %1367 = vmatmul.mubr.f32.gmra.mrb[0].mxu0 %v1273
    %v1368 = vpop.f32.mrb[0].mxu0
    %v1369 = vadd.f32 %v1262, %v1368
    %v1370 = vpop.f32.mrb[0].mxu0
    %1371 = vmatprep.mubr.f32.mxu0 0.0
    %1372 = vmatmul.mubr.f32.gmra.mrb[0].mxu0 %v1276
    %v1373 = vpop.f32.mrb[0].mxu0
    %v1374 = vadd.f32 %v1262, %v1373
    %v1375 = vpop.f32.mrb[0].mxu0
    %1376 = vmatprep.mubr.f32.mxu0 0.0
    %1377 = vmatmul.mubr.f32.gmra.mrb[0].mxu0 %v1279
    %v1378 = vpop.f32.mrb[0].mxu0
    %v1379 = vadd.f32 %v1262, %v1378
    %v1380 = vpop.f32.mrb[0].mxu0
    %1381 = vmatprep.mubr.f32.mxu0 0.0
    %1382 = vmatmul.mubr.f32.gmra.mrb[0].mxu0 %v1282
    %v1383 = vpop.f32.mrb[0].mxu0
    %v1384 = vadd.f32 %v1262, %v1383
    %v1385 = vpop.f32.mrb[0].mxu0
    %1386 = vmatprep.mubr.f32.mxu0 0.0
    %1387 = vmatmul.mubr.f32.gmra.mrb[0].mxu0 %v1285
    %v1388 = vpop.f32.mrb[0].mxu0
    %v1389 = vadd.f32 %v1262, %v1388
    %v1390 = vpop.f32.mrb[0].mxu0
    %1391 = vdwg.mxu0
    %v1393 = vsel %vm271, %v1256, 0
    %1395 = vmatprep.subr.mxu0 0.0
    %1396 = vmatpush1.msra.mxu0 %v1251
    %1397 = vmatprep.subr.mxu0 0.0
    %1398 = vmatpush1.msra.mxu0 %v1252
    %1399 = vmatprep.subr.mxu0 0.0
    %1400 = vmatpush1.msra.mxu0 %v1253
    %1401 = vmatprep.subr.mxu0 0.0
    %1402 = vmatpush1.msra.mxu0 %v1254
    %1403 = vmatprep.subr.mxu0 0.0
    %1404 = vmatpush1.msra.mxu0 0.0
    %1405 = vmatprep.subr.mxu0 0.0
    %1406 = vmatpush1.msra.mxu0 0.0
    %1407 = vmatprep.subr.mxu0 0.0
    %1408 = vmatpush1.msra.mxu0 0.0
    %1409 = vmatprep.subr.mxu0 0.0
    %1410 = vmatpush1.msra.mxu0 0.0
    %1411 = vmatprep.subr.mxu0 0.0
    %1412 = vmatpush1.msra.mxu0 0.0
    %1413 = vmatprep.subr.mxu0 0.0
    %1414 = vmatpush1.msra.mxu0 0.0
    %1415 = vmatprep.subr.mxu0 0.0
    %1416 = vmatpush1.msra.mxu0 0.0
    %1417 = vmatprep.subr.mxu0 0.0
    %1418 = vmatpush1.msra.mxu0 0.0
    %1419 = vmatprep.subr.mxu0 0.0
    %1420 = vmatpush1.msra.mxu0 0.0
    %1421 = vmatprep.subr.mxu0 0.0
    %1422 = vmatpush1.msra.mxu0 0.0
    %1423 = vmatprep.subr.mxu0 0.0
    %1424 = vmatpush1.msra.mxu0 0.0
    %1425 = vmatprep.subr.mxu0 0.0
    %1426 = vmatpush1.msra.mxu0 0.0
    %1427 = vmatprep.subr.mxu0 0.0
    %1428 = vmatpush1.msra.mxu0 0.0
    %1429 = vmatprep.subr.mxu0 0.0
    %1430 = vmatpush1.msra.mxu0 0.0
    %1431 = vmatprep.subr.mxu0 0.0
    %1432 = vmatpush1.msra.mxu0 0.0
    %1433 = vmatprep.subr.mxu0 0.0
    %1434 = vmatpush1.msra.mxu0 0.0
    %1435 = vmatprep.subr.mxu0 0.0
    %1436 = vmatpush1.msra.mxu0 0.0
    %1437 = vmatprep.subr.mxu0 0.0
    %1438 = vmatpush1.msra.mxu0 0.0
    %1439 = vmatprep.subr.mxu0 0.0
    %1440 = vmatpush1.msra.mxu0 0.0
    %1441 = vmatprep.subr.mxu0 0.0
    %1442 = vmatpush1.msra.mxu0 0.0
    %1443 = vmatprep.subr.mxu0 0.0
    %1444 = vmatpush1.msra.mxu0 0.0
    %1445 = vmatprep.subr.mxu0 0.0
    %1446 = vmatpush1.msra.mxu0 0.0
    %1447 = vmatprep.subr.mxu0 0.0
    %1448 = vmatpush1.msra.mxu0 0.0
    %1449 = vmatprep.subr.mxu0 0.0
    %1450 = vmatpush1.msra.mxu0 0.0
    %1451 = vmatprep.subr.mxu0 0.0
    %1452 = vmatpush1.msra.mxu0 0.0
    %1453 = vmatprep.subr.mxu0 0.0
    %1454 = vmatpush1.msra.mxu0 0.0
    %1455 = vmatprep.subr.mxu0 0.0
    %1456 = vmatpush1.msra.mxu0 0.0
    %1457 = vmatprep.subr.mxu0 0.0
    %1458 = vmatpush1.msra.mxu0 0.0
    %1459 = vmatprep.mubr.f32.mxu0 0.0
    %1460 = vmatmul.mubr.f32.gmra.mrb[0].mxu0 %v1393
    %v1461 = vpop.f32.mrb[0].mxu0
    %v1462 = vadd.f32 0.0, %v1461
    %v1463 = vpop.f32.mrb[0].mxu0
    %1464 = vdwg.mxu0
    %v1465 = vadd.f32 %v1354, %v1462
    %v1466 = vxor.u32 %v1465, 2147483648
    %v1467 = vmul.f32 %v1466, 1.442695
    %v1468 = vpow.pop %v1467
    %v1469 = vadd.f32 %v1468, 1.0
    %v1470 = vrcp.pop %v1469
    %v1471 = vmul.f32 1.0, %v1470
    %v1472 = vmul.f32 %v1471, 2.0
    %v1473 = vsub.f32 %v1472, 1.0
    %v1474 = vsel %vm45, %v1473, %v1471
    %1476 = vrot.lane.b32.xlu0 %v1258, 32
    %v1477 = vpop.permute.xlu0 %1476
    %v1479 = vmul.f32 %v1474, %v1477
    %1481 = vrot.lane.b32.xlu0 %v1474, 64
    %v1482 = vpop.permute.xlu0 %1481
    %v1484 = vmul.f32 %v1474, %v1482
    %1486 = vrot.lane.b32.xlu0 %v1484, 32
    %v1487 = vpop.permute.xlu0 %1486
    %v1489 = vadd.f32 %v1479, %v1487
    %v1490 = vtanh.pop %v1489
    %1492 = vrot.lane.b32.xlu0 %v1490, 64
    %v1493 = vpop.permute.xlu0 %1492
    %v1495 = vmul.f32 %v1474, %v1493
    %1497 = vrot.lane.b32.xlu0 %v1495, 32
    %v1498 = vpop.permute.xlu0 %1497
    %1500 = vst.msk [vmem:[#allocation3] sm:$0xff] %vm271, %v1498
    %v1501 = vsel %vm271, %v1498, 0
    %1503 = vmatprep.subr.mxu0 0.0
    %1504 = vmatpush1.msra.mxu0 %v1251
    %1505 = vmatprep.subr.mxu0 0.0
    %1506 = vmatpush1.msra.mxu0 %v1252
    %1507 = vmatprep.subr.mxu0 0.0
    %1508 = vmatpush1.msra.mxu0 %v1253
    %1509 = vmatprep.subr.mxu0 0.0
    %1510 = vmatpush1.msra.mxu0 %v1254
    %1511 = vmatprep.subr.mxu0 0.0
    %1512 = vmatpush1.msra.mxu0 0.0
    %1513 = vmatprep.subr.mxu0 0.0
    %1514 = vmatpush1.msra.mxu0 0.0
    %1515 = vmatprep.subr.mxu0 0.0
    %1516 = vmatpush1.msra.mxu0 0.0
    %1517 = vmatprep.subr.mxu0 0.0
    %1518 = vmatpush1.msra.mxu0 0.0
    %1519 = vmatprep.subr.mxu0 0.0
    %1520 = vmatpush1.msra.mxu0 0.0
    %1521 = vmatprep.subr.mxu0 0.0
    %1522 = vmatpush1.msra.mxu0 0.0
    %1523 = vmatprep.subr.mxu0 0.0
    %1524 = vmatpush1.msra.mxu0 0.0
    %1525 = vmatprep.subr.mxu0 0.0
    %1526 = vmatpush1.msra.mxu0 0.0
    %1527 = vmatprep.subr.mxu0 0.0
    %1528 = vmatpush1.msra.mxu0 0.0
    %1529 = vmatprep.subr.mxu0 0.0
    %1530 = vmatpush1.msra.mxu0 0.0
    %1531 = vmatprep.subr.mxu0 0.0
    %1532 = vmatpush1.msra.mxu0 0.0
    %1533 = vmatprep.subr.mxu0 0.0
    %1534 = vmatpush1.msra.mxu0 0.0
    %1535 = vmatprep.subr.mxu0 0.0
    %1536 = vmatpush1.msra.mxu0 0.0
    %1537 = vmatprep.subr.mxu0 0.0
    %1538 = vmatpush1.msra.mxu0 0.0
    %1539 = vmatprep.subr.mxu0 0.0
    %1540 = vmatpush1.msra.mxu0 0.0
    %1541 = vmatprep.subr.mxu0 0.0
    %1542 = vmatpush1.msra.mxu0 0.0
    %1543 = vmatprep.subr.mxu0 0.0
    %1544 = vmatpush1.msra.mxu0 0.0
    %1545 = vmatprep.subr.mxu0 0.0
    %1546 = vmatpush1.msra.mxu0 0.0
    %1547 = vmatprep.subr.mxu0 0.0
    %1548 = vmatpush1.msra.mxu0 0.0
    %1549 = vmatprep.subr.mxu0 0.0
    %1550 = vmatpush1.msra.mxu0 0.0
    %1551 = vmatprep.subr.mxu0 0.0
    %1552 = vmatpush1.msra.mxu0 0.0
    %1553 = vmatprep.subr.mxu0 0.0
    %1554 = vmatpush1.msra.mxu0 0.0
    %1555 = vmatprep.subr.mxu0 0.0
    %1556 = vmatpush1.msra.mxu0 0.0
    %1557 = vmatprep.subr.mxu0 0.0
    %1558 = vmatpush1.msra.mxu0 0.0
    %1559 = vmatprep.subr.mxu0 0.0
    %1560 = vmatpush1.msra.mxu0 0.0
    %1561 = vmatprep.subr.mxu0 0.0
    %1562 = vmatpush1.msra.mxu0 0.0
    %1563 = vmatprep.subr.mxu0 0.0
    %1564 = vmatpush1.msra.mxu0 0.0
    %1565 = vmatprep.subr.mxu0 0.0
    %1566 = vmatpush1.msra.mxu0 0.0
    %1567 = vmatprep.mubr.f32.mxu0 0.0
    %1568 = vmatmul.mubr.f32.gmra.mrb[0].mxu0 %v1501
    %v1569 = vpop.f32.mrb[0].mxu0
    %v1570 = vadd.f32 0.0, %v1569
    %v1571 = vpop.f32.mrb[0].mxu0
    %1572 = vdwg.mxu0
    %v1573 = vadd.f32 %v1359, %v1570
    %v1574 = vxor.u32 %v1573, 2147483648
    %v1575 = vmul.f32 %v1574, 1.442695
    %v1576 = vpow.pop %v1575
    %v1577 = vadd.f32 %v1576, 1.0
    %v1578 = vrcp.pop %v1577
    %v1579 = vmul.f32 1.0, %v1578
    %v1580 = vmul.f32 %v1579, 2.0
    %v1581 = vsub.f32 %v1580, 1.0
    %v1582 = vsel %vm45, %v1581, %v1579
    %v1583 = vmul.f32 %v1582, %v1489
    %1585 = vrot.lane.b32.xlu0 %v1582, 64
    %v1586 = vpop.permute.xlu0 %1585
    %v1588 = vmul.f32 %v1582, %v1586
    %1590 = vrot.lane.b32.xlu0 %v1588, 32
    %v1591 = vpop.permute.xlu0 %1590
    %v1593 = vadd.f32 %v1583, %v1591
    %v1594 = vtanh.pop %v1593
    %1596 = vrot.lane.b32.xlu0 %v1594, 64
    %v1597 = vpop.permute.xlu0 %1596
    %v1599 = vmul.f32 %v1582, %v1597
    %1601 = vrot.lane.b32.xlu0 %v1599, 32
    %v1602 = vpop.permute.xlu0 %1601
    %1604 = vst.msk [vmem:[#allocation3 + $0x8] sm:$0xff] %vm271, %v1602
    %v1605 = vsel %vm271, %v1602, 0
    %1607 = vmatprep.subr.mxu0 0.0
    %1608 = vmatpush1.msra.mxu0 %v1251
    %1609 = vmatprep.subr.mxu0 0.0
    %1610 = vmatpush1.msra.mxu0 %v1252
    %1611 = vmatprep.subr.mxu0 0.0
    %1612 = vmatpush1.msra.mxu0 %v1253
    %1613 = vmatprep.subr.mxu0 0.0
    %1614 = vmatpush1.msra.mxu0 %v1254
    %1615 = vmatprep.subr.mxu0 0.0
    %1616 = vmatpush1.msra.mxu0 0.0
    %1617 = vmatprep.subr.mxu0 0.0
    %1618 = vmatpush1.msra.mxu0 0.0
    %1619 = vmatprep.subr.mxu0 0.0
    %1620 = vmatpush1.msra.mxu0 0.0
    %1621 = vmatprep.subr.mxu0 0.0
    %1622 = vmatpush1.msra.mxu0 0.0
    %1623 = vmatprep.subr.mxu0 0.0
    %1624 = vmatpush1.msra.mxu0 0.0
    %1625 = vmatprep.subr.mxu0 0.0
    %1626 = vmatpush1.msra.mxu0 0.0
    %1627 = vmatprep.subr.mxu0 0.0
    %1628 = vmatpush1.msra.mxu0 0.0
    %1629 = vmatprep.subr.mxu0 0.0
    %1630 = vmatpush1.msra.mxu0 0.0
    %1631 = vmatprep.subr.mxu0 0.0
    %1632 = vmatpush1.msra.mxu0 0.0
    %1633 = vmatprep.subr.mxu0 0.0
    %1634 = vmatpush1.msra.mxu0 0.0
    %1635 = vmatprep.subr.mxu0 0.0
    %1636 = vmatpush1.msra.mxu0 0.0
    %1637 = vmatprep.subr.mxu0 0.0
    %1638 = vmatpush1.msra.mxu0 0.0
    %1639 = vmatprep.subr.mxu0 0.0
    %1640 = vmatpush1.msra.mxu0 0.0
    %1641 = vmatprep.subr.mxu0 0.0
    %1642 = vmatpush1.msra.mxu0 0.0
    %1643 = vmatprep.subr.mxu0 0.0
    %1644 = vmatpush1.msra.mxu0 0.0
    %1645 = vmatprep.subr.mxu0 0.0
    %1646 = vmatpush1.msra.mxu0 0.0
    %1647 = vmatprep.subr.mxu0 0.0
    %1648 = vmatpush1.msra.mxu0 0.0
    %1649 = vmatprep.subr.mxu0 0.0
    %1650 = vmatpush1.msra.mxu0 0.0
    %1651 = vmatprep.subr.mxu0 0.0
    %1652 = vmatpush1.msra.mxu0 0.0
    %1653 = vmatprep.subr.mxu0 0.0
    %1654 = vmatpush1.msra.mxu0 0.0
    %1655 = vmatprep.subr.mxu0 0.0
    %1656 = vmatpush1.msra.mxu0 0.0
    %1657 = vmatprep.subr.mxu0 0.0
    %1658 = vmatpush1.msra.mxu0 0.0
    %1659 = vmatprep.subr.mxu0 0.0
    %1660 = vmatpush1.msra.mxu0 0.0
    %1661 = vmatprep.subr.mxu0 0.0
    %1662 = vmatpush1.msra.mxu0 0.0
    %1663 = vmatprep.subr.mxu0 0.0
    %1664 = vmatpush1.msra.mxu0 0.0
    %1665 = vmatprep.subr.mxu0 0.0
    %1666 = vmatpush1.msra.mxu0 0.0
    %1667 = vmatprep.subr.mxu0 0.0
    %1668 = vmatpush1.msra.mxu0 0.0
    %1669 = vmatprep.subr.mxu0 0.0
    %1670 = vmatpush1.msra.mxu0 0.0
    %1671 = vmatprep.mubr.f32.mxu0 0.0
    %1672 = vmatmul.mubr.f32.gmra.mrb[0].mxu0 %v1605
    %v1673 = vpop.f32.mrb[0].mxu0
    %v1674 = vadd.f32 0.0, %v1673
    %v1675 = vpop.f32.mrb[0].mxu0
    %1676 = vdwg.mxu0
    %v1677 = vadd.f32 %v1364, %v1674
    %v1678 = vxor.u32 %v1677, 2147483648
    %v1679 = vmul.f32 %v1678, 1.442695
    %v1680 = vpow.pop %v1679
    %v1681 = vadd.f32 %v1680, 1.0
    %v1682 = vrcp.pop %v1681
    %v1683 = vmul.f32 1.0, %v1682
    %v1684 = vmul.f32 %v1683, 2.0
    %v1685 = vsub.f32 %v1684, 1.0
    %v1686 = vsel %vm45, %v1685, %v1683
    %v1687 = vmul.f32 %v1686, %v1593
    %1689 = vrot.lane.b32.xlu0 %v1686, 64
    %v1690 = vpop.permute.xlu0 %1689
    %v1692 = vmul.f32 %v1686, %v1690
    %1694 = vrot.lane.b32.xlu0 %v1692, 32
    %v1695 = vpop.permute.xlu0 %1694
    %v1697 = vadd.f32 %v1687, %v1695
    %v1698 = vtanh.pop %v1697
    %1700 = vrot.lane.b32.xlu0 %v1698, 64
    %v1701 = vpop.permute.xlu0 %1700
    %v1703 = vmul.f32 %v1686, %v1701
    %1705 = vrot.lane.b32.xlu0 %v1703, 32
    %v1706 = vpop.permute.xlu0 %1705
    %1708 = vst.msk [vmem:[#allocation3 + $0x10] sm:$0xff] %vm271, %v1706
    %v1709 = vsel %vm271, %v1706, 0
    %1711 = vmatprep.subr.mxu0 0.0
    %1712 = vmatpush1.msra.mxu0 %v1251
    %1713 = vmatprep.subr.mxu0 0.0
    %1714 = vmatpush1.msra.mxu0 %v1252
    %1715 = vmatprep.subr.mxu0 0.0
    %1716 = vmatpush1.msra.mxu0 %v1253
    %1717 = vmatprep.subr.mxu0 0.0
    %1718 = vmatpush1.msra.mxu0 %v1254
    %1719 = vmatprep.subr.mxu0 0.0
    %1720 = vmatpush1.msra.mxu0 0.0
    %1721 = vmatprep.subr.mxu0 0.0
    %1722 = vmatpush1.msra.mxu0 0.0
    %1723 = vmatprep.subr.mxu0 0.0
    %1724 = vmatpush1.msra.mxu0 0.0
    %1725 = vmatprep.subr.mxu0 0.0
    %1726 = vmatpush1.msra.mxu0 0.0
    %1727 = vmatprep.subr.mxu0 0.0
    %1728 = vmatpush1.msra.mxu0 0.0
    %1729 = vmatprep.subr.mxu0 0.0
    %1730 = vmatpush1.msra.mxu0 0.0
    %1731 = vmatprep.subr.mxu0 0.0
    %1732 = vmatpush1.msra.mxu0 0.0
    %1733 = vmatprep.subr.mxu0 0.0
    %1734 = vmatpush1.msra.mxu0 0.0
    %1735 = vmatprep.subr.mxu0 0.0
    %1736 = vmatpush1.msra.mxu0 0.0
    %1737 = vmatprep.subr.mxu0 0.0
    %1738 = vmatpush1.msra.mxu0 0.0
    %1739 = vmatprep.subr.mxu0 0.0
    %1740 = vmatpush1.msra.mxu0 0.0
    %1741 = vmatprep.subr.mxu0 0.0
    %1742 = vmatpush1.msra.mxu0 0.0
    %1743 = vmatprep.subr.mxu0 0.0
    %1744 = vmatpush1.msra.mxu0 0.0
    %1745 = vmatprep.subr.mxu0 0.0
    %1746 = vmatpush1.msra.mxu0 0.0
    %1747 = vmatprep.subr.mxu0 0.0
    %1748 = vmatpush1.msra.mxu0 0.0
    %1749 = vmatprep.subr.mxu0 0.0
    %1750 = vmatpush1.msra.mxu0 0.0
    %1751 = vmatprep.subr.mxu0 0.0
    %1752 = vmatpush1.msra.mxu0 0.0
    %1753 = vmatprep.subr.mxu0 0.0
    %1754 = vmatpush1.msra.mxu0 0.0
    %1755 = vmatprep.subr.mxu0 0.0
    %1756 = vmatpush1.msra.mxu0 0.0
    %1757 = vmatprep.subr.mxu0 0.0
    %1758 = vmatpush1.msra.mxu0 0.0
    %1759 = vmatprep.subr.mxu0 0.0
    %1760 = vmatpush1.msra.mxu0 0.0
    %1761 = vmatprep.subr.mxu0 0.0
    %1762 = vmatpush1.msra.mxu0 0.0
    %1763 = vmatprep.subr.mxu0 0.0
    %1764 = vmatpush1.msra.mxu0 0.0
    %1765 = vmatprep.subr.mxu0 0.0
    %1766 = vmatpush1.msra.mxu0 0.0
    %1767 = vmatprep.subr.mxu0 0.0
    %1768 = vmatpush1.msra.mxu0 0.0
    %1769 = vmatprep.subr.mxu0 0.0
    %1770 = vmatpush1.msra.mxu0 0.0
    %1771 = vmatprep.subr.mxu0 0.0
    %1772 = vmatpush1.msra.mxu0 0.0
    %1773 = vmatprep.subr.mxu0 0.0
    %1774 = vmatpush1.msra.mxu0 0.0
    %1775 = vmatprep.mubr.f32.mxu0 0.0
    %1776 = vmatmul.mubr.f32.gmra.mrb[0].mxu0 %v1709
    %v1777 = vpop.f32.mrb[0].mxu0
    %v1778 = vadd.f32 0.0, %v1777
    %v1779 = vpop.f32.mrb[0].mxu0
    %1780 = vdwg.mxu0
    %v1781 = vadd.f32 %v1369, %v1778
    %v1782 = vxor.u32 %v1781, 2147483648
    %v1783 = vmul.f32 %v1782, 1.442695
    %v1784 = vpow.pop %v1783
    %v1785 = vadd.f32 %v1784, 1.0
    %v1786 = vrcp.pop %v1785
    %v1787 = vmul.f32 1.0, %v1786
    %v1788 = vmul.f32 %v1787, 2.0
    %v1789 = vsub.f32 %v1788, 1.0
    %v1790 = vsel %vm45, %v1789, %v1787
    %v1791 = vmul.f32 %v1790, %v1697
    %1793 = vrot.lane.b32.xlu0 %v1790, 64
    %v1794 = vpop.permute.xlu0 %1793
    %v1796 = vmul.f32 %v1790, %v1794
    %1798 = vrot.lane.b32.xlu0 %v1796, 32
    %v1799 = vpop.permute.xlu0 %1798
    %v1801 = vadd.f32 %v1791, %v1799
    %v1802 = vtanh.pop %v1801
    %1804 = vrot.lane.b32.xlu0 %v1802, 64
    %v1805 = vpop.permute.xlu0 %1804
    %v1807 = vmul.f32 %v1790, %v1805
    %1809 = vrot.lane.b32.xlu0 %v1807, 32
    %v1810 = vpop.permute.xlu0 %1809
    %1812 = vst.msk [vmem:[#allocation3 + $0x18] sm:$0xff] %vm271, %v1810
    %v1813 = vsel %vm271, %v1810, 0
    %1815 = vmatprep.subr.mxu0 0.0
    %1816 = vmatpush1.msra.mxu0 %v1251
    %1817 = vmatprep.subr.mxu0 0.0
    %1818 = vmatpush1.msra.mxu0 %v1252
    %1819 = vmatprep.subr.mxu0 0.0
    %1820 = vmatpush1.msra.mxu0 %v1253
    %1821 = vmatprep.subr.mxu0 0.0
    %1822 = vmatpush1.msra.mxu0 %v1254
    %1823 = vmatprep.subr.mxu0 0.0
    %1824 = vmatpush1.msra.mxu0 0.0
    %1825 = vmatprep.subr.mxu0 0.0
    %1826 = vmatpush1.msra.mxu0 0.0
    %1827 = vmatprep.subr.mxu0 0.0
    %1828 = vmatpush1.msra.mxu0 0.0
    %1829 = vmatprep.subr.mxu0 0.0
    %1830 = vmatpush1.msra.mxu0 0.0
    %1831 = vmatprep.subr.mxu0 0.0
    %1832 = vmatpush1.msra.mxu0 0.0
    %1833 = vmatprep.subr.mxu0 0.0
    %1834 = vmatpush1.msra.mxu0 0.0
    %1835 = vmatprep.subr.mxu0 0.0
    %1836 = vmatpush1.msra.mxu0 0.0
    %1837 = vmatprep.subr.mxu0 0.0
    %1838 = vmatpush1.msra.mxu0 0.0
    %1839 = vmatprep.subr.mxu0 0.0
    %1840 = vmatpush1.msra.mxu0 0.0
    %1841 = vmatprep.subr.mxu0 0.0
    %1842 = vmatpush1.msra.mxu0 0.0
    %1843 = vmatprep.subr.mxu0 0.0
    %1844 = vmatpush1.msra.mxu0 0.0
    %1845 = vmatprep.subr.mxu0 0.0
    %1846 = vmatpush1.msra.mxu0 0.0
    %1847 = vmatprep.subr.mxu0 0.0
    %1848 = vmatpush1.msra.mxu0 0.0
    %1849 = vmatprep.subr.mxu0 0.0
    %1850 = vmatpush1.msra.mxu0 0.0
    %1851 = vmatprep.subr.mxu0 0.0
    %1852 = vmatpush1.msra.mxu0 0.0
    %1853 = vmatprep.subr.mxu0 0.0
    %1854 = vmatpush1.msra.mxu0 0.0
    %1855 = vmatprep.subr.mxu0 0.0
    %1856 = vmatpush1.msra.mxu0 0.0
    %1857 = vmatprep.subr.mxu0 0.0
    %1858 = vmatpush1.msra.mxu0 0.0
    %1859 = vmatprep.subr.mxu0 0.0
    %1860 = vmatpush1.msra.mxu0 0.0
    %1861 = vmatprep.subr.mxu0 0.0
    %1862 = vmatpush1.msra.mxu0 0.0
    %1863 = vmatprep.subr.mxu0 0.0
    %1864 = vmatpush1.msra.mxu0 0.0
    %1865 = vmatprep.subr.mxu0 0.0
    %1866 = vmatpush1.msra.mxu0 0.0
    %1867 = vmatprep.subr.mxu0 0.0
    %1868 = vmatpush1.msra.mxu0 0.0
    %1869 = vmatprep.subr.mxu0 0.0
    %1870 = vmatpush1.msra.mxu0 0.0
    %1871 = vmatprep.subr.mxu0 0.0
    %1872 = vmatpush1.msra.mxu0 0.0
    %1873 = vmatprep.subr.mxu0 0.0
    %1874 = vmatpush1.msra.mxu0 0.0
    %1875 = vmatprep.subr.mxu0 0.0
    %1876 = vmatpush1.msra.mxu0 0.0
    %1877 = vmatprep.subr.mxu0 0.0
    %1878 = vmatpush1.msra.mxu0 0.0
    %1879 = vmatprep.mubr.f32.mxu0 0.0
    %1880 = vmatmul.mubr.f32.gmra.mrb[0].mxu0 %v1813
    %v1881 = vpop.f32.mrb[0].mxu0
    %v1882 = vadd.f32 0.0, %v1881
    %v1883 = vpop.f32.mrb[0].mxu0
    %1884 = vdwg.mxu0
    %v1885 = vadd.f32 %v1374, %v1882
    %v1886 = vxor.u32 %v1885, 2147483648
    %v1887 = vmul.f32 %v1886, 1.442695
    %v1888 = vpow.pop %v1887
    %v1889 = vadd.f32 %v1888, 1.0
    %v1890 = vrcp.pop %v1889
    %v1891 = vmul.f32 1.0, %v1890
    %v1892 = vmul.f32 %v1891, 2.0
    %v1893 = vsub.f32 %v1892, 1.0
    %v1894 = vsel %vm45, %v1893, %v1891
    %v1895 = vmul.f32 %v1894, %v1801
    %1897 = vrot.lane.b32.xlu0 %v1894, 64
    %v1898 = vpop.permute.xlu0 %1897
    %v1900 = vmul.f32 %v1894, %v1898
    %1902 = vrot.lane.b32.xlu0 %v1900, 32
    %v1903 = vpop.permute.xlu0 %1902
    %v1905 = vadd.f32 %v1895, %v1903
    %v1906 = vtanh.pop %v1905
    %1908 = vrot.lane.b32.xlu0 %v1906, 64
    %v1909 = vpop.permute.xlu0 %1908
    %v1911 = vmul.f32 %v1894, %v1909
    %1913 = vrot.lane.b32.xlu0 %v1911, 32
    %v1914 = vpop.permute.xlu0 %1913
    %1916 = vst.msk [vmem:[#allocation3 + $0x20] sm:$0xff] %vm271, %v1914
    %v1917 = vsel %vm271, %v1914, 0
    %1919 = vmatprep.subr.mxu0 0.0
    %1920 = vmatpush1.msra.mxu0 %v1251
    %1921 = vmatprep.subr.mxu0 0.0
    %1922 = vmatpush1.msra.mxu0 %v1252
    %1923 = vmatprep.subr.mxu0 0.0
    %1924 = vmatpush1.msra.mxu0 %v1253
    %1925 = vmatprep.subr.mxu0 0.0
    %1926 = vmatpush1.msra.mxu0 %v1254
    %1927 = vmatprep.subr.mxu0 0.0
    %1928 = vmatpush1.msra.mxu0 0.0
    %1929 = vmatprep.subr.mxu0 0.0
    %1930 = vmatpush1.msra.mxu0 0.0
    %1931 = vmatprep.subr.mxu0 0.0
    %1932 = vmatpush1.msra.mxu0 0.0
    %1933 = vmatprep.subr.mxu0 0.0
    %1934 = vmatpush1.msra.mxu0 0.0
    %1935 = vmatprep.subr.mxu0 0.0
    %1936 = vmatpush1.msra.mxu0 0.0
    %1937 = vmatprep.subr.mxu0 0.0
    %1938 = vmatpush1.msra.mxu0 0.0
    %1939 = vmatprep.subr.mxu0 0.0
    %1940 = vmatpush1.msra.mxu0 0.0
    %1941 = vmatprep.subr.mxu0 0.0
    %1942 = vmatpush1.msra.mxu0 0.0
    %1943 = vmatprep.subr.mxu0 0.0
    %1944 = vmatpush1.msra.mxu0 0.0
    %1945 = vmatprep.subr.mxu0 0.0
    %1946 = vmatpush1.msra.mxu0 0.0
    %1947 = vmatprep.subr.mxu0 0.0
    %1948 = vmatpush1.msra.mxu0 0.0
    %1949 = vmatprep.subr.mxu0 0.0
    %1950 = vmatpush1.msra.mxu0 0.0
    %1951 = vmatprep.subr.mxu0 0.0
    %1952 = vmatpush1.msra.mxu0 0.0
    %1953 = vmatprep.subr.mxu0 0.0
    %1954 = vmatpush1.msra.mxu0 0.0
    %1955 = vmatprep.subr.mxu0 0.0
    %1956 = vmatpush1.msra.mxu0 0.0
    %1957 = vmatprep.subr.mxu0 0.0
    %1958 = vmatpush1.msra.mxu0 0.0
    %1959 = vmatprep.subr.mxu0 0.0
    %1960 = vmatpush1.msra.mxu0 0.0
    %1961 = vmatprep.subr.mxu0 0.0
    %1962 = vmatpush1.msra.mxu0 0.0
    %1963 = vmatprep.subr.mxu0 0.0
    %1964 = vmatpush1.msra.mxu0 0.0
    %1965 = vmatprep.subr.mxu0 0.0
    %1966 = vmatpush1.msra.mxu0 0.0
    %1967 = vmatprep.subr.mxu0 0.0
    %1968 = vmatpush1.msra.mxu0 0.0
    %1969 = vmatprep.subr.mxu0 0.0
    %1970 = vmatpush1.msra.mxu0 0.0
    %1971 = vmatprep.subr.mxu0 0.0
    %1972 = vmatpush1.msra.mxu0 0.0
    %1973 = vmatprep.subr.mxu0 0.0
    %1974 = vmatpush1.msra.mxu0 0.0
    %1975 = vmatprep.subr.mxu0 0.0
    %1976 = vmatpush1.msra.mxu0 0.0
    %1977 = vmatprep.subr.mxu0 0.0
    %1978 = vmatpush1.msra.mxu0 0.0
    %1979 = vmatprep.subr.mxu0 0.0
    %1980 = vmatpush1.msra.mxu0 0.0
    %1981 = vmatprep.subr.mxu0 0.0
    %1982 = vmatpush1.msra.mxu0 0.0
    %1983 = vmatprep.mubr.f32.mxu0 0.0
    %1984 = vmatmul.mubr.f32.gmra.mrb[0].mxu0 %v1917
    %v1985 = vpop.f32.mrb[0].mxu0
    %v1986 = vadd.f32 0.0, %v1985
    %v1987 = vpop.f32.mrb[0].mxu0
    %1988 = vdwg.mxu0
    %v1989 = vadd.f32 %v1379, %v1986
    %v1990 = vxor.u32 %v1989, 2147483648
    %v1991 = vmul.f32 %v1990, 1.442695
    %v1992 = vpow.pop %v1991
    %v1993 = vadd.f32 %v1992, 1.0
    %v1994 = vrcp.pop %v1993
    %v1995 = vmul.f32 1.0, %v1994
    %v1996 = vmul.f32 %v1995, 2.0
    %v1997 = vsub.f32 %v1996, 1.0
    %v1998 = vsel %vm45, %v1997, %v1995
    %v1999 = vmul.f32 %v1998, %v1905
    %2001 = vrot.lane.b32.xlu0 %v1998, 64
    %v2002 = vpop.permute.xlu0 %2001
    %v2004 = vmul.f32 %v1998, %v2002
    %2006 = vrot.lane.b32.xlu0 %v2004, 32
    %v2007 = vpop.permute.xlu0 %2006
    %v2009 = vadd.f32 %v1999, %v2007
    %v2010 = vtanh.pop %v2009
    %2012 = vrot.lane.b32.xlu0 %v2010, 64
    %v2013 = vpop.permute.xlu0 %2012
    %v2015 = vmul.f32 %v1998, %v2013
    %2017 = vrot.lane.b32.xlu0 %v2015, 32
    %v2018 = vpop.permute.xlu0 %2017
    %2020 = vst.msk [vmem:[#allocation3 + $0x28] sm:$0xff] %vm271, %v2018
    %v2021 = vsel %vm271, %v2018, 0
    %2023 = vmatprep.subr.mxu0 0.0
    %2024 = vmatpush1.msra.mxu0 %v1251
    %2025 = vmatprep.subr.mxu0 0.0
    %2026 = vmatpush1.msra.mxu0 %v1252
    %2027 = vmatprep.subr.mxu0 0.0
    %2028 = vmatpush1.msra.mxu0 %v1253
    %2029 = vmatprep.subr.mxu0 0.0
    %2030 = vmatpush1.msra.mxu0 %v1254
    %2031 = vmatprep.subr.mxu0 0.0
    %2032 = vmatpush1.msra.mxu0 0.0
    %2033 = vmatprep.subr.mxu0 0.0
    %2034 = vmatpush1.msra.mxu0 0.0
    %2035 = vmatprep.subr.mxu0 0.0
    %2036 = vmatpush1.msra.mxu0 0.0
    %2037 = vmatprep.subr.mxu0 0.0
    %2038 = vmatpush1.msra.mxu0 0.0
    %2039 = vmatprep.subr.mxu0 0.0
    %2040 = vmatpush1.msra.mxu0 0.0
    %2041 = vmatprep.subr.mxu0 0.0
    %2042 = vmatpush1.msra.mxu0 0.0
    %2043 = vmatprep.subr.mxu0 0.0
    %2044 = vmatpush1.msra.mxu0 0.0
    %2045 = vmatprep.subr.mxu0 0.0
    %2046 = vmatpush1.msra.mxu0 0.0
    %2047 = vmatprep.subr.mxu0 0.0
    %2048 = vmatpush1.msra.mxu0 0.0
    %2049 = vmatprep.subr.mxu0 0.0
    %2050 = vmatpush1.msra.mxu0 0.0
    %2051 = vmatprep.subr.mxu0 0.0
    %2052 = vmatpush1.msra.mxu0 0.0
    %2053 = vmatprep.subr.mxu0 0.0
    %2054 = vmatpush1.msra.mxu0 0.0
    %2055 = vmatprep.subr.mxu0 0.0
    %2056 = vmatpush1.msra.mxu0 0.0
    %2057 = vmatprep.subr.mxu0 0.0
    %2058 = vmatpush1.msra.mxu0 0.0
    %2059 = vmatprep.subr.mxu0 0.0
    %2060 = vmatpush1.msra.mxu0 0.0
    %2061 = vmatprep.subr.mxu0 0.0
    %2062 = vmatpush1.msra.mxu0 0.0
    %2063 = vmatprep.subr.mxu0 0.0
    %2064 = vmatpush1.msra.mxu0 0.0
    %2065 = vmatprep.subr.mxu0 0.0
    %2066 = vmatpush1.msra.mxu0 0.0
    %2067 = vmatprep.subr.mxu0 0.0
    %2068 = vmatpush1.msra.mxu0 0.0
    %2069 = vmatprep.subr.mxu0 0.0
    %2070 = vmatpush1.msra.mxu0 0.0
    %2071 = vmatprep.subr.mxu0 0.0
    %2072 = vmatpush1.msra.mxu0 0.0
    %2073 = vmatprep.subr.mxu0 0.0
    %2074 = vmatpush1.msra.mxu0 0.0
    %2075 = vmatprep.subr.mxu0 0.0
    %2076 = vmatpush1.msra.mxu0 0.0
    %2077 = vmatprep.subr.mxu0 0.0
    %2078 = vmatpush1.msra.mxu0 0.0
    %2079 = vmatprep.subr.mxu0 0.0
    %2080 = vmatpush1.msra.mxu0 0.0
    %2081 = vmatprep.subr.mxu0 0.0
    %2082 = vmatpush1.msra.mxu0 0.0
    %2083 = vmatprep.subr.mxu0 0.0
    %2084 = vmatpush1.msra.mxu0 0.0
    %2085 = vmatprep.subr.mxu0 0.0
    %2086 = vmatpush1.msra.mxu0 0.0
    %2087 = vmatprep.mubr.f32.mxu0 0.0
    %2088 = vmatmul.mubr.f32.gmra.mrb[0].mxu0 %v2021
    %v2089 = vpop.f32.mrb[0].mxu0
    %v2090 = vadd.f32 0.0, %v2089
    %v2091 = vpop.f32.mrb[0].mxu0
    %2092 = vdwg.mxu0
    %v2093 = vadd.f32 %v1384, %v2090
    %v2094 = vxor.u32 %v2093, 2147483648
    %v2095 = vmul.f32 %v2094, 1.442695
    %v2096 = vpow.pop %v2095
    %v2097 = vadd.f32 %v2096, 1.0
    %v2098 = vrcp.pop %v2097
    %v2099 = vmul.f32 1.0, %v2098
    %v2100 = vmul.f32 %v2099, 2.0
    %v2101 = vsub.f32 %v2100, 1.0
    %v2102 = vsel %vm45, %v2101, %v2099
    %v2103 = vmul.f32 %v2102, %v2009
    %2105 = vrot.lane.b32.xlu0 %v2102, 64
    %v2106 = vpop.permute.xlu0 %2105
    %v2108 = vmul.f32 %v2102, %v2106
    %2110 = vrot.lane.b32.xlu0 %v2108, 32
    %v2111 = vpop.permute.xlu0 %2110
    %v2113 = vadd.f32 %v2103, %v2111
    %v2114 = vtanh.pop %v2113
    %2116 = vrot.lane.b32.xlu0 %v2114, 64
    %v2117 = vpop.permute.xlu0 %2116
    %v2119 = vmul.f32 %v2102, %v2117
    %2121 = vrot.lane.b32.xlu0 %v2119, 32
    %v2122 = vpop.permute.xlu0 %2121
    %2124 = vst.msk [vmem:[#allocation3 + $0x30] sm:$0xff] %vm271, %v2122
    %v2125 = vsel %vm271, %v2122, 0
    %2127 = vmatprep.subr.mxu0 0.0
    %2128 = vmatpush1.msra.mxu0 %v1251
    %2129 = vmatprep.subr.mxu0 0.0
    %2130 = vmatpush1.msra.mxu0 %v1252
    %2131 = vmatprep.subr.mxu0 0.0
    %2132 = vmatpush1.msra.mxu0 %v1253
    %2133 = vmatprep.subr.mxu0 0.0
    %2134 = vmatpush1.msra.mxu0 %v1254
    %2135 = vmatprep.subr.mxu0 0.0
    %2136 = vmatpush1.msra.mxu0 0.0
    %2137 = vmatprep.subr.mxu0 0.0
    %2138 = vmatpush1.msra.mxu0 0.0
    %2139 = vmatprep.subr.mxu0 0.0
    %2140 = vmatpush1.msra.mxu0 0.0
    %2141 = vmatprep.subr.mxu0 0.0
    %2142 = vmatpush1.msra.mxu0 0.0
    %2143 = vmatprep.subr.mxu0 0.0
    %2144 = vmatpush1.msra.mxu0 0.0
    %2145 = vmatprep.subr.mxu0 0.0
    %2146 = vmatpush1.msra.mxu0 0.0
    %2147 = vmatprep.subr.mxu0 0.0
    %2148 = vmatpush1.msra.mxu0 0.0
    %2149 = vmatprep.subr.mxu0 0.0
    %2150 = vmatpush1.msra.mxu0 0.0
    %2151 = vmatprep.subr.mxu0 0.0
    %2152 = vmatpush1.msra.mxu0 0.0
    %2153 = vmatprep.subr.mxu0 0.0
    %2154 = vmatpush1.msra.mxu0 0.0
    %2155 = vmatprep.subr.mxu0 0.0
    %2156 = vmatpush1.msra.mxu0 0.0
    %2157 = vmatprep.subr.mxu0 0.0
    %2158 = vmatpush1.msra.mxu0 0.0
    %2159 = vmatprep.subr.mxu0 0.0
    %2160 = vmatpush1.msra.mxu0 0.0
    %2161 = vmatprep.subr.mxu0 0.0
    %2162 = vmatpush1.msra.mxu0 0.0
    %2163 = vmatprep.subr.mxu0 0.0
    %2164 = vmatpush1.msra.mxu0 0.0
    %2165 = vmatprep.subr.mxu0 0.0
    %2166 = vmatpush1.msra.mxu0 0.0
    %2167 = vmatprep.subr.mxu0 0.0
    %2168 = vmatpush1.msra.mxu0 0.0
    %2169 = vmatprep.subr.mxu0 0.0
    %2170 = vmatpush1.msra.mxu0 0.0
    %2171 = vmatprep.subr.mxu0 0.0
    %2172 = vmatpush1.msra.mxu0 0.0
    %2173 = vmatprep.subr.mxu0 0.0
    %2174 = vmatpush1.msra.mxu0 0.0
    %2175 = vmatprep.subr.mxu0 0.0
    %2176 = vmatpush1.msra.mxu0 0.0
    %2177 = vmatprep.subr.mxu0 0.0
    %2178 = vmatpush1.msra.mxu0 0.0
    %2179 = vmatprep.subr.mxu0 0.0
    %2180 = vmatpush1.msra.mxu0 0.0
    %2181 = vmatprep.subr.mxu0 0.0
    %2182 = vmatpush1.msra.mxu0 0.0
    %2183 = vmatprep.subr.mxu0 0.0
    %2184 = vmatpush1.msra.mxu0 0.0
    %2185 = vmatprep.subr.mxu0 0.0
    %2186 = vmatpush1.msra.mxu0 0.0
    %2187 = vmatprep.subr.mxu0 0.0
    %2188 = vmatpush1.msra.mxu0 0.0
    %2189 = vmatprep.subr.mxu0 0.0
    %2190 = vmatpush1.msra.mxu0 0.0
    %2191 = vmatprep.mubr.f32.mxu0 0.0
    %2192 = vmatmul.mubr.f32.gmra.mrb[0].mxu0 %v2125
    %v2193 = vpop.f32.mrb[0].mxu0
    %v2194 = vadd.f32 0.0, %v2193
    %v2195 = vpop.f32.mrb[0].mxu0
    %2196 = vdwg.mxu0
    %v2197 = vadd.f32 %v1389, %v2194
    %v2198 = vxor.u32 %v2197, 2147483648
    %v2199 = vmul.f32 %v2198, 1.442695
    %v2200 = vpow.pop %v2199
    %v2201 = vadd.f32 %v2200, 1.0
    %v2202 = vrcp.pop %v2201
    %v2203 = vmul.f32 1.0, %v2202
    %v2204 = vmul.f32 %v2203, 2.0
    %v2205 = vsub.f32 %v2204, 1.0
    %v2206 = vsel %vm45, %v2205, %v2203
    %v2207 = vmul.f32 %v2206, %v2113
    %2209 = vrot.lane.b32.xlu0 %v2206, 64
    %v2210 = vpop.permute.xlu0 %2209
    %v2212 = vmul.f32 %v2206, %v2210
    %2214 = vrot.lane.b32.xlu0 %v2212, 32
    %v2215 = vpop.permute.xlu0 %2214
    %v2217 = vadd.f32 %v2207, %v2215
    %v2218 = vtanh.pop %v2217
    %2220 = vrot.lane.b32.xlu0 %v2218, 64
    %v2221 = vpop.permute.xlu0 %2220
    %v2223 = vmul.f32 %v2206, %v2221
    %2225 = vrot.lane.b32.xlu0 %v2223, 32
    %v2226 = vpop.permute.xlu0 %2225
    %2228 = vst.msk [vmem:[#allocation3 + $0x38] sm:$0xff] %vm271, %v2226
    %v2229 = vld [vmem:[#allocation3] sm:$0xff]
    %v2230 = vld [vmem:[#allocation3 + $0x8] sm:$0xff]
    %v2231 = vld [vmem:[#allocation3 + $0x10] sm:$0xff]
    %v2232 = vld [vmem:[#allocation3 + $0x18] sm:$0xff]
    %v2233 = vld [vmem:[#allocation3 + $0x20] sm:$0xff]
    %v2234 = vld [vmem:[#allocation3 + $0x28] sm:$0xff]
    %v2235 = vld [vmem:[#allocation3 + $0x30] sm:$0xff]
    %v2236 = vld [vmem:[#allocation3 + $0x38] sm:$0xff]
    %v2237 = vld [vmem:[%s5] sm:$0xff]
    %v2238 = vld [vmem:[%s5 + $0x8] sm:$0xff]
    %v2239 = vld [vmem:[%s5 + $0x10] sm:$0xff]
    %v2240 = vld [vmem:[%s5 + $0x18] sm:$0xff]
    %v2241 = vld [vmem:[%s5 + $0x20] sm:$0xff]
    %v2242 = vld [vmem:[%s5 + $0x28] sm:$0xff]
    %v2243 = vld [vmem:[%s5 + $0x30] sm:$0xff]
    %v2244 = vld [vmem:[%s5 + $0x38] sm:$0xff]
    %2245 = vrot.lane.b32.xlu0 %v1238, 32
    %v2246 = vpop.permute.xlu0 %2245
    %2247 = vrot.lane.b32.xlu0 %v1239, 32
    %v2248 = vpop.permute.xlu0 %2247
    %2249 = vrot.lane.b32.xlu0 %v1240, 32
    %v2250 = vpop.permute.xlu0 %2249
    %2251 = vrot.lane.b32.xlu0 %v1241, 32
    %v2252 = vpop.permute.xlu0 %2251
    %2253 = vrot.lane.b32.xlu0 %v1242, 32
    %v2254 = vpop.permute.xlu0 %2253
    %2255 = vrot.lane.b32.xlu0 %v1243, 32
    %v2256 = vpop.permute.xlu0 %2255
    %2257 = vrot.lane.b32.xlu0 %v1244, 32
    %v2258 = vpop.permute.xlu0 %2257
    %2259 = vrot.lane.b32.xlu0 %v1245, 32
    %v2260 = vpop.permute.xlu0 %2259
    %v2269 = vsel %vm271, %v2229, %v2246
    %v2270 = vsel %vm271, %v2230, %v2248
    %v2271 = vsel %vm271, %v2231, %v2250
    %v2272 = vsel %vm271, %v2232, %v2252
    %v2273 = vsel %vm271, %v2233, %v2254
    %v2274 = vsel %vm271, %v2234, %v2256
    %v2275 = vsel %vm271, %v2235, %v2258
    %v2276 = vsel %vm271, %v2236, %v2260
    %v2277 = vlaneseq
    %v2278 = vshrl.u32 %v2277, 7
    %v2279 = vsub.s32 3, %v2278
    %v2280 = vrot.slane %v40, %v2279
    %v2282 = vsel %vm110, %v2269, 0
    %v2285 = vsel %vm110, %v2270, 0
    %v2288 = vsel %vm110, %v2271, 0
    %v2291 = vsel %vm110, %v2272, 0
    %v2294 = vsel %vm110, %v2273, 0
    %v2297 = vsel %vm110, %v2274, 0
    %v2300 = vsel %vm110, %v2275, 0
    %v2303 = vsel %vm110, %v2276, 0
    %2305 = vmatprep.subr.mxu0 0.0
    %2306 = vmatpush1.msra.mxu0 %v2237
    %2307 = vmatprep.subr.mxu0 0.0
    %2308 = vmatpush1.msra.mxu0 %v2238
    %2309 = vmatprep.subr.mxu0 0.0
    %2310 = vmatpush1.msra.mxu0 %v2239
    %2311 = vmatprep.subr.mxu0 0.0
    %2312 = vmatpush1.msra.mxu0 %v2240
    %2313 = vmatprep.subr.mxu0 0.0
    %2314 = vmatpush1.msra.mxu0 %v2241
    %2315 = vmatprep.subr.mxu0 0.0
    %2316 = vmatpush1.msra.mxu0 %v2242
    %2317 = vmatprep.subr.mxu0 0.0
    %2318 = vmatpush1.msra.mxu0 %v2243
    %2319 = vmatprep.subr.mxu0 0.0
    %2320 = vmatpush1.msra.mxu0 %v2244
    %2321 = vmatprep.subr.mxu0 0.0
    %2322 = vmatpush1.msra.mxu0 0.0
    %2323 = vmatprep.subr.mxu0 0.0
    %2324 = vmatpush1.msra.mxu0 0.0
    %2325 = vmatprep.subr.mxu0 0.0
    %2326 = vmatpush1.msra.mxu0 0.0
    %2327 = vmatprep.subr.mxu0 0.0
    %2328 = vmatpush1.msra.mxu0 0.0
    %2329 = vmatprep.subr.mxu0 0.0
    %2330 = vmatpush1.msra.mxu0 0.0
    %2331 = vmatprep.subr.mxu0 0.0
    %2332 = vmatpush1.msra.mxu0 0.0
    %2333 = vmatprep.subr.mxu0 0.0
    %2334 = vmatpush1.msra.mxu0 0.0
    %2335 = vmatprep.subr.mxu0 0.0
    %2336 = vmatpush1.msra.mxu0 0.0
    %2337 = vmatprep.subr.mxu0 0.0
    %2338 = vmatpush1.msra.mxu0 0.0
    %2339 = vmatprep.subr.mxu0 0.0
    %2340 = vmatpush1.msra.mxu0 0.0
    %2341 = vmatprep.subr.mxu0 0.0
    %2342 = vmatpush1.msra.mxu0 0.0
    %2343 = vmatprep.subr.mxu0 0.0
    %2344 = vmatpush1.msra.mxu0 0.0
    %2345 = vmatprep.subr.mxu0 0.0
    %2346 = vmatpush1.msra.mxu0 0.0
    %2347 = vmatprep.subr.mxu0 0.0
    %2348 = vmatpush1.msra.mxu0 0.0
    %2349 = vmatprep.subr.mxu0 0.0
    %2350 = vmatpush1.msra.mxu0 0.0
    %2351 = vmatprep.subr.mxu0 0.0
    %2352 = vmatpush1.msra.mxu0 0.0
    %2353 = vmatprep.subr.mxu0 0.0
    %2354 = vmatpush1.msra.mxu0 0.0
    %2355 = vmatprep.subr.mxu0 0.0
    %2356 = vmatpush1.msra.mxu0 0.0
    %2357 = vmatprep.subr.mxu0 0.0
    %2358 = vmatpush1.msra.mxu0 0.0
    %2359 = vmatprep.subr.mxu0 0.0
    %2360 = vmatpush1.msra.mxu0 0.0
    %2361 = vmatprep.subr.mxu0 0.0
    %2362 = vmatpush1.msra.mxu0 0.0
    %2363 = vmatprep.subr.mxu0 0.0
    %2364 = vmatpush1.msra.mxu0 0.0
    %2365 = vmatprep.subr.mxu0 0.0
    %2366 = vmatpush1.msra.mxu0 0.0
    %2367 = vmatprep.subr.mxu0 0.0
    %2368 = vmatpush1.msra.mxu0 0.0
    %2369 = vmatprep.mubr.f32.mxu0 0.0
    %2370 = vmatmul.mubr.f32.gmra.mrb[0].mxu0 %v2282
    %v2371 = vpop.f32.mrb[0].mxu0
    %v2372 = vadd.f32 %v2280, %v2371
    %v2373 = vpop.f32.mrb[0].mxu0
    %2374 = vmatprep.mubr.f32.mxu0 0.0
    %2375 = vmatmul.mubr.f32.gmra.mrb[0].mxu0 %v2285
    %v2376 = vpop.f32.mrb[0].mxu0
    %v2377 = vadd.f32 %v2280, %v2376
    %v2378 = vpop.f32.mrb[0].mxu0
    %2379 = vmatprep.mubr.f32.mxu0 0.0
    %2380 = vmatmul.mubr.f32.gmra.mrb[0].mxu0 %v2288
    %v2381 = vpop.f32.mrb[0].mxu0
    %v2382 = vadd.f32 %v2280, %v2381
    %v2383 = vpop.f32.mrb[0].mxu0
    %2384 = vmatprep.mubr.f32.mxu0 0.0
    %2385 = vmatmul.mubr.f32.gmra.mrb[0].mxu0 %v2291
    %v2386 = vpop.f32.mrb[0].mxu0
    %v2387 = vadd.f32 %v2280, %v2386
    %v2388 = vpop.f32.mrb[0].mxu0
    %2389 = vmatprep.mubr.f32.mxu0 0.0
    %2390 = vmatmul.mubr.f32.gmra.mrb[0].mxu0 %v2294
    %v2391 = vpop.f32.mrb[0].mxu0
    %v2392 = vadd.f32 %v2280, %v2391
    %v2393 = vpop.f32.mrb[0].mxu0
    %2394 = vmatprep.mubr.f32.mxu0 0.0
    %2395 = vmatmul.mubr.f32.gmra.mrb[0].mxu0 %v2297
    %v2396 = vpop.f32.mrb[0].mxu0
    %v2397 = vadd.f32 %v2280, %v2396
    %v2398 = vpop.f32.mrb[0].mxu0
    %2399 = vmatprep.mubr.f32.mxu0 0.0
    %2400 = vmatmul.mubr.f32.gmra.mrb[0].mxu0 %v2300
    %v2401 = vpop.f32.mrb[0].mxu0
    %v2402 = vadd.f32 %v2280, %v2401
    %v2403 = vpop.f32.mrb[0].mxu0
    %2404 = vmatprep.mubr.f32.mxu0 0.0
    %2405 = vmatmul.mubr.f32.gmra.mrb[0].mxu0 %v2303
    %v2406 = vpop.f32.mrb[0].mxu0
    %v2407 = vadd.f32 %v2280, %v2406
    %v2408 = vpop.f32.mrb[0].mxu0
    %2409 = vdwg.mxu0
    %2418 = vrot.lane.b32.xlu0 %v2372, 96
    %v2419 = vpop.permute.xlu0 %2418
    %2420 = vrot.lane.b32.xlu0 %v2377, 96
    %v2421 = vpop.permute.xlu0 %2420
    %2422 = vrot.lane.b32.xlu0 %v2382, 96
    %v2423 = vpop.permute.xlu0 %2422
    %2424 = vrot.lane.b32.xlu0 %v2387, 96
    %v2425 = vpop.permute.xlu0 %2424
    %2426 = vrot.lane.b32.xlu0 %v2392, 96
    %v2427 = vpop.permute.xlu0 %2426
    %2428 = vrot.lane.b32.xlu0 %v2397, 96
    %v2429 = vpop.permute.xlu0 %2428
    %2430 = vrot.lane.b32.xlu0 %v2402, 96
    %v2431 = vpop.permute.xlu0 %2430
    %2432 = vrot.lane.b32.xlu0 %v2407, 96
    %v2433 = vpop.permute.xlu0 %2432
    %v2434 = vsel %vm271, %v2372, 0
    %v2436 = vsel %vm271, %v2377, 0
    %v2438 = vsel %vm271, %v2382, 0
    %v2440 = vsel %vm271, %v2387, 0
    %v2442 = vsel %vm271, %v2392, 0
    %v2444 = vsel %vm271, %v2397, 0
    %v2446 = vsel %vm271, %v2402, 0
    %v2448 = vsel %vm271, %v2407, 0
    %v2450 = vsel %vm271, %v2419, 0
    %v2452 = vsel %vm271, %v2421, 0
    %v2454 = vsel %vm271, %v2423, 0
    %v2456 = vsel %vm271, %v2425, 0
    %v2458 = vsel %vm271, %v2427, 0
    %v2460 = vsel %vm271, %v2429, 0
    %v2462 = vsel %vm271, %v2431, 0
    %v2464 = vsel %vm271, %v2433, 0
    %2466 = vmatprep.subr.mxu0 0.0
    %2467 = vmatpush1.xpose.msra.mxu0 %v2450
    %2468 = vmatprep.subr.mxu0 0.0
    %2469 = vmatpush1.xpose.msra.mxu0 %v2452
    %2470 = vmatprep.subr.mxu0 0.0
    %2471 = vmatpush1.xpose.msra.mxu0 %v2454
    %2472 = vmatprep.subr.mxu0 0.0
    %2473 = vmatpush1.xpose.msra.mxu0 %v2456
    %2474 = vmatprep.subr.mxu0 0.0
    %2475 = vmatpush1.xpose.msra.mxu0 %v2458
    %2476 = vmatprep.subr.mxu0 0.0
    %2477 = vmatpush1.xpose.msra.mxu0 %v2460
    %2478 = vmatprep.subr.mxu0 0.0
    %2479 = vmatpush1.xpose.msra.mxu0 %v2462
    %2480 = vmatprep.subr.mxu0 0.0
    %2481 = vmatpush1.xpose.msra.mxu0 %v2464
    %2482 = vmatprep.subr.mxu0 0.0
    %2483 = vmatpush1.xpose.msra.mxu0 0.0
    %2484 = vmatprep.subr.mxu0 0.0
    %2485 = vmatpush1.xpose.msra.mxu0 0.0
    %2486 = vmatprep.subr.mxu0 0.0
    %2487 = vmatpush1.xpose.msra.mxu0 0.0
    %2488 = vmatprep.subr.mxu0 0.0
    %2489 = vmatpush1.xpose.msra.mxu0 0.0
    %2490 = vmatprep.subr.mxu0 0.0
    %2491 = vmatpush1.xpose.msra.mxu0 0.0
    %2492 = vmatprep.subr.mxu0 0.0
    %2493 = vmatpush1.xpose.msra.mxu0 0.0
    %2494 = vmatprep.subr.mxu0 0.0
    %2495 = vmatpush1.xpose.msra.mxu0 0.0
    %2496 = vmatprep.subr.mxu0 0.0
    %2497 = vmatpush1.xpose.msra.mxu0 0.0
    %2498 = vmatprep.subr.mxu0 0.0
    %2499 = vmatpush1.xpose.msra.mxu0 0.0
    %2500 = vmatprep.subr.mxu0 0.0
    %2501 = vmatpush1.xpose.msra.mxu0 0.0
    %2502 = vmatprep.subr.mxu0 0.0
    %2503 = vmatpush1.xpose.msra.mxu0 0.0
    %2504 = vmatprep.subr.mxu0 0.0
    %2505 = vmatpush1.xpose.msra.mxu0 0.0
    %2506 = vmatprep.subr.mxu0 0.0
    %2507 = vmatpush1.xpose.msra.mxu0 0.0
    %2508 = vmatprep.subr.mxu0 0.0
    %2509 = vmatpush1.xpose.msra.mxu0 0.0
    %2510 = vmatprep.subr.mxu0 0.0
    %2511 = vmatpush1.xpose.msra.mxu0 0.0
    %2512 = vmatprep.subr.mxu0 0.0
    %2513 = vmatpush1.xpose.msra.mxu0 0.0
    %2514 = vmatprep.subr.mxu0 0.0
    %2515 = vmatpush1.xpose.msra.mxu0 0.0
    %2516 = vmatprep.subr.mxu0 0.0
    %2517 = vmatpush1.xpose.msra.mxu0 0.0
    %2518 = vmatprep.subr.mxu0 0.0
    %2519 = vmatpush1.xpose.msra.mxu0 0.0
    %2520 = vmatprep.subr.mxu0 0.0
    %2521 = vmatpush1.xpose.msra.mxu0 0.0
    %2522 = vmatprep.subr.mxu0 0.0
    %2523 = vmatpush1.xpose.msra.mxu0 0.0
    %2524 = vmatprep.subr.mxu0 0.0
    %2525 = vmatpush1.xpose.msra.mxu0 0.0
    %2526 = vmatprep.subr.mxu0 0.0
    %2527 = vmatpush1.xpose.msra.mxu0 0.0
    %2528 = vmatprep.subr.mxu0 0.0
    %2529 = vmatpush1.xpose.msra.mxu0 0.0
    %2530 = vmatprep.mubr.f32.mxu0 0.0
    %2531 = vmatmul.mubr.f32.gmra.mrb[0].mxu0 %v2434
    %v2532 = vpop.f32.mrb[0].mxu0
    %v2533 = vadd.f32 0.0, %v2532
    %v2534 = vpop.f32.mrb[0].mxu0
    %2535 = vmatprep.mubr.f32.mxu0 0.0
    %2536 = vmatmul.mubr.f32.gmra.mrb[0].mxu0 %v2436
    %v2537 = vpop.f32.mrb[0].mxu0
    %v2538 = vadd.f32 0.0, %v2537
    %v2539 = vpop.f32.mrb[0].mxu0
    %2540 = vmatprep.mubr.f32.mxu0 0.0
    %2541 = vmatmul.mubr.f32.gmra.mrb[0].mxu0 %v2438
    %v2542 = vpop.f32.mrb[0].mxu0
    %v2543 = vadd.f32 0.0, %v2542
    %v2544 = vpop.f32.mrb[0].mxu0
    %2545 = vmatprep.mubr.f32.mxu0 0.0
    %2546 = vmatmul.mubr.f32.gmra.mrb[0].mxu0 %v2440
    %v2547 = vpop.f32.mrb[0].mxu0
    %v2548 = vadd.f32 0.0, %v2547
    %v2549 = vpop.f32.mrb[0].mxu0
    %2550 = vmatprep.mubr.f32.mxu0 0.0
    %2551 = vmatmul.mubr.f32.gmra.mrb[0].mxu0 %v2442
    %v2552 = vpop.f32.mrb[0].mxu0
    %v2553 = vadd.f32 0.0, %v2552
    %v2554 = vpop.f32.mrb[0].mxu0
    %2555 = vmatprep.mubr.f32.mxu0 0.0
    %2556 = vmatmul.mubr.f32.gmra.mrb[0].mxu0 %v2444
    %v2557 = vpop.f32.mrb[0].mxu0
    %v2558 = vadd.f32 0.0, %v2557
    %v2559 = vpop.f32.mrb[0].mxu0
    %2560 = vmatprep.mubr.f32.mxu0 0.0
    %2561 = vmatmul.mubr.f32.gmra.mrb[0].mxu0 %v2446
    %v2562 = vpop.f32.mrb[0].mxu0
    %v2563 = vadd.f32 0.0, %v2562
    %v2564 = vpop.f32.mrb[0].mxu0
    %2565 = vmatprep.mubr.f32.mxu0 0.0
    %2566 = vmatmul.mubr.f32.gmra.mrb[0].mxu0 %v2448
    %v2567 = vpop.f32.mrb[0].mxu0
    %v2568 = vadd.f32 0.0, %v2567
    %v2569 = vpop.f32.mrb[0].mxu0
    %2570 = vdwg.mxu0
    %v2571 = vlaneseq
    %v2572 = vshrl.u32 %v2571, 7
    %v2573 = vadd.s32 %v2572, 8
    %v2574 = vadd.s32 %v2572, 16
    %v2575 = vadd.s32 %v2572, 24
    %v2576 = vadd.s32 %v2572, 32
    %v2577 = vadd.s32 %v2572, 40
    %v2578 = vadd.s32 %v2572, 48
    %v2579 = vadd.s32 %v2572, 56
    %v2580 = vand.u32 %v2572, 7
    %v2581 = vand.u32 %v2573, 7
    %v2582 = vand.u32 %v2574, 7
    %v2583 = vand.u32 %v2575, 7
    %v2584 = vand.u32 %v2576, 7
    %v2585 = vand.u32 %v2577, 7
    %v2586 = vand.u32 %v2578, 7
    %v2587 = vand.u32 %v2579, 7
    %v2588 = vand.u32 %v42, 7
    %vm2589 = vcmp.eq.s32.totalorder %v2580, %v2588
    %vm2590 = vcmp.eq.s32.totalorder %v2581, %v2588
    %vm2591 = vcmp.eq.s32.totalorder %v2582, %v2588
    %vm2592 = vcmp.eq.s32.totalorder %v2583, %v2588
    %vm2593 = vcmp.eq.s32.totalorder %v2584, %v2588
    %vm2594 = vcmp.eq.s32.totalorder %v2585, %v2588
    %vm2595 = vcmp.eq.s32.totalorder %v2586, %v2588
    %vm2596 = vcmp.eq.s32.totalorder %v2587, %v2588
    %v2597 = vsel %vm2589, %v2533, -1e+30
    %v2598 = vsel %vm2590, %v2538, -1e+30
    %v2599 = vsel %vm2591, %v2543, -1e+30
    %v2600 = vsel %vm2592, %v2548, -1e+30
    %v2601 = vsel %vm2593, %v2553, -1e+30
    %v2602 = vsel %vm2594, %v2558, -1e+30
    %v2603 = vsel %vm2595, %v2563, -1e+30
    %v2604 = vsel %vm2596, %v2568, -1e+30
    %v2605 = vsel %vm110, %v2597, -inf
    %2606 = vmax.xlane.f32.xlu0 %v2605
    %v2607 = vpop.xlane.xlu0 %2606
    %v2608 = vsel %vm110, %v2598, -inf
    %2609 = vmax.xlane.f32.xlu0 %v2608
    %v2610 = vpop.xlane.xlu0 %2609
    %v2611 = vsel %vm110, %v2599, -inf
    %2612 = vmax.xlane.f32.xlu0 %v2611
    %v2613 = vpop.xlane.xlu0 %2612
    %v2614 = vsel %vm110, %v2600, -inf
    %2615 = vmax.xlane.f32.xlu0 %v2614
    %v2616 = vpop.xlane.xlu0 %2615
    %v2617 = vsel %vm110, %v2601, -inf
    %2618 = vmax.xlane.f32.xlu0 %v2617
    %v2619 = vpop.xlane.xlu0 %2618
    %v2620 = vsel %vm110, %v2602, -inf
    %2621 = vmax.xlane.f32.xlu0 %v2620
    %v2622 = vpop.xlane.xlu0 %2621
    %v2623 = vsel %vm110, %v2603, -inf
    %2624 = vmax.xlane.f32.xlu0 %v2623
    %v2625 = vpop.xlane.xlu0 %2624
    %v2626 = vsel %vm110, %v2604, -inf
    %2627 = vmax.xlane.f32.xlu0 %v2626
    %v2628 = vpop.xlane.xlu0 %2627
    %v2629 = vsub.f32 %v2597, %v2607
    %v2630 = vsub.f32 %v2598, %v2610
    %v2631 = vsub.f32 %v2599, %v2613
    %v2632 = vsub.f32 %v2600, %v2616
    %v2633 = vsub.f32 %v2601, %v2619
    %v2634 = vsub.f32 %v2602, %v2622
    %v2635 = vsub.f32 %v2603, %v2625
    %v2636 = vsub.f32 %v2604, %v2628
    %v2637 = vmul.f32 %v2629, 1.442695
    %v2638 = vpow.pop %v2637
    %v2639 = vmul.f32 %v2630, 1.442695
    %v2640 = vpow.pop %v2639
    %v2641 = vmul.f32 %v2631, 1.442695
    %v2642 = vpow.pop %v2641
    %v2643 = vmul.f32 %v2632, 1.442695
    %v2644 = vpow.pop %v2643
    %v2645 = vmul.f32 %v2633, 1.442695
    %v2646 = vpow.pop %v2645
    %v2647 = vmul.f32 %v2634, 1.442695
    %v2648 = vpow.pop %v2647
    %v2649 = vmul.f32 %v2635, 1.442695
    %v2650 = vpow.pop %v2649
    %v2651 = vmul.f32 %v2636, 1.442695
    %v2652 = vpow.pop %v2651
    %v2653 = vsel %vm110, %v2638, 0.0
    %2654 = vadd.xlane.f32.xlu0 %v2653
    %v2655 = vpop.xlane.xlu0 %2654
    %v2656 = vsel %vm110, %v2640, 0.0
    %2657 = vadd.xlane.f32.xlu0 %v2656
    %v2658 = vpop.xlane.xlu0 %2657
    %v2659 = vsel %vm110, %v2642, 0.0
    %2660 = vadd.xlane.f32.xlu0 %v2659
    %v2661 = vpop.xlane.xlu0 %2660
    %v2662 = vsel %vm110, %v2644, 0.0
    %2663 = vadd.xlane.f32.xlu0 %v2662
    %v2664 = vpop.xlane.xlu0 %2663
    %v2665 = vsel %vm110, %v2646, 0.0
    %2666 = vadd.xlane.f32.xlu0 %v2665
    %v2667 = vpop.xlane.xlu0 %2666
    %v2668 = vsel %vm110, %v2648, 0.0
    %2669 = vadd.xlane.f32.xlu0 %v2668
    %v2670 = vpop.xlane.xlu0 %2669
    %v2671 = vsel %vm110, %v2650, 0.0
    %2672 = vadd.xlane.f32.xlu0 %v2671
    %v2673 = vpop.xlane.xlu0 %2672
    %v2674 = vsel %vm110, %v2652, 0.0
    %2675 = vadd.xlane.f32.xlu0 %v2674
    %v2676 = vpop.xlane.xlu0 %2675
    %v2677 = vrcp.pop %v2655
    %v2678 = vrcp.pop %v2658
    %v2679 = vrcp.pop %v2661
    %v2680 = vrcp.pop %v2664
    %v2681 = vrcp.pop %v2667
    %v2682 = vrcp.pop %v2670
    %v2683 = vrcp.pop %v2673
    %v2684 = vrcp.pop %v2676
    %v2685 = vmul.f32 %v2638, %v2677
    %v2686 = vmul.f32 %v2640, %v2678
    %v2687 = vmul.f32 %v2642, %v2679
    %v2688 = vmul.f32 %v2644, %v2680
    %v2689 = vmul.f32 %v2646, %v2681
    %v2690 = vmul.f32 %v2648, %v2682
    %v2691 = vmul.f32 %v2650, %v2683
    %v2692 = vmul.f32 %v2652, %v2684
    %v2694 = vsel %vm110, %v2685, 0
    %v2697 = vsel %vm110, %v2686, 0
    %v2700 = vsel %vm110, %v2687, 0
    %v2703 = vsel %vm110, %v2688, 0
    %v2706 = vsel %vm110, %v2689, 0
    %v2709 = vsel %vm110, %v2690, 0
    %v2712 = vsel %vm110, %v2691, 0
    %v2715 = vsel %vm110, %v2692, 0
    %2717 = vmatprep.subr.mxu0 0.0
    %2718 = vmatpush1.msra.mxu0 %v1238
    %2719 = vmatprep.subr.mxu0 0.0
    %2720 = vmatpush1.msra.mxu0 %v1239
    %2721 = vmatprep.subr.mxu0 0.0
    %2722 = vmatpush1.msra.mxu0 %v1240
    %2723 = vmatprep.subr.mxu0 0.0
    %2724 = vmatpush1.msra.mxu0 %v1241
    %2725 = vmatprep.subr.mxu0 0.0
    %2726 = vmatpush1.msra.mxu0 %v1242
    %2727 = vmatprep.subr.mxu0 0.0
    %2728 = vmatpush1.msra.mxu0 %v1243
    %2729 = vmatprep.subr.mxu0 0.0
    %2730 = vmatpush1.msra.mxu0 %v1244
    %2731 = vmatprep.subr.mxu0 0.0
    %2732 = vmatpush1.msra.mxu0 %v1245
    %2733 = vmatprep.subr.mxu0 0.0
    %2734 = vmatpush1.msra.mxu0 0.0
    %2735 = vmatprep.subr.mxu0 0.0
    %2736 = vmatpush1.msra.mxu0 0.0
    %2737 = vmatprep.subr.mxu0 0.0
    %2738 = vmatpush1.msra.mxu0 0.0
    %2739 = vmatprep.subr.mxu0 0.0
    %2740 = vmatpush1.msra.mxu0 0.0
    %2741 = vmatprep.subr.mxu0 0.0
    %2742 = vmatpush1.msra.mxu0 0.0
    %2743 = vmatprep.subr.mxu0 0.0
    %2744 = vmatpush1.msra.mxu0 0.0
    %2745 = vmatprep.subr.mxu0 0.0
    %2746 = vmatpush1.msra.mxu0 0.0
    %2747 = vmatprep.subr.mxu0 0.0
    %2748 = vmatpush1.msra.mxu0 0.0
    %2749 = vmatprep.subr.mxu0 0.0
    %2750 = vmatpush1.msra.mxu0 0.0
    %2751 = vmatprep.subr.mxu0 0.0
    %2752 = vmatpush1.msra.mxu0 0.0
    %2753 = vmatprep.subr.mxu0 0.0
    %2754 = vmatpush1.msra.mxu0 0.0
    %2755 = vmatprep.subr.mxu0 0.0
    %2756 = vmatpush1.msra.mxu0 0.0
    %2757 = vmatprep.subr.mxu0 0.0
    %2758 = vmatpush1.msra.mxu0 0.0
    %2759 = vmatprep.subr.mxu0 0.0
    %2760 = vmatpush1.msra.mxu0 0.0
    %2761 = vmatprep.subr.mxu0 0.0
    %2762 = vmatpush1.msra.mxu0 0.0
    %2763 = vmatprep.subr.mxu0 0.0
    %2764 = vmatpush1.msra.mxu0 0.0
    %2765 = vmatprep.subr.mxu0 0.0
    %2766 = vmatpush1.msra.mxu0 0.0
    %2767 = vmatprep.subr.mxu0 0.0
    %2768 = vmatpush1.msra.mxu0 0.0
    %2769 = vmatprep.subr.mxu0 0.0
    %2770 = vmatpush1.msra.mxu0 0.0
    %2771 = vmatprep.subr.mxu0 0.0
    %2772 = vmatpush1.msra.mxu0 0.0
    %2773 = vmatprep.subr.mxu0 0.0
    %2774 = vmatpush1.msra.mxu0 0.0
    %2775 = vmatprep.subr.mxu0 0.0
    %2776 = vmatpush1.msra.mxu0 0.0
    %2777 = vmatprep.subr.mxu0 0.0
    %2778 = vmatpush1.msra.mxu0 0.0
    %2779 = vmatprep.subr.mxu0 0.0
    %2780 = vmatpush1.msra.mxu0 0.0
    %2781 = vmatprep.mubr.f32.mxu0 0.0
    %2782 = vmatmul.mubr.f32.gmra.mrb[0].mxu0 %v2694
    %v2783 = vpop.f32.mrb[0].mxu0
    %v2784 = vadd.f32 0.0, %v2783
    %v2785 = vpop.f32.mrb[0].mxu0
    %2786 = vmatprep.mubr.f32.mxu0 0.0
    %2787 = vmatmul.mubr.f32.gmra.mrb[0].mxu0 %v2697
    %v2788 = vpop.f32.mrb[0].mxu0
    %v2789 = vadd.f32 0.0, %v2788
    %v2790 = vpop.f32.mrb[0].mxu0
    %2791 = vmatprep.mubr.f32.mxu0 0.0
    %2792 = vmatmul.mubr.f32.gmra.mrb[0].mxu0 %v2700
    %v2793 = vpop.f32.mrb[0].mxu0
    %v2794 = vadd.f32 0.0, %v2793
    %v2795 = vpop.f32.mrb[0].mxu0
    %2796 = vmatprep.mubr.f32.mxu0 0.0
    %2797 = vmatmul.mubr.f32.gmra.mrb[0].mxu0 %v2703
    %v2798 = vpop.f32.mrb[0].mxu0
    %v2799 = vadd.f32 0.0, %v2798
    %v2800 = vpop.f32.mrb[0].mxu0
    %2801 = vmatprep.mubr.f32.mxu0 0.0
    %2802 = vmatmul.mubr.f32.gmra.mrb[0].mxu0 %v2706
    %v2803 = vpop.f32.mrb[0].mxu0
    %v2804 = vadd.f32 0.0, %v2803
    %v2805 = vpop.f32.mrb[0].mxu0
    %2806 = vmatprep.mubr.f32.mxu0 0.0
    %2807 = vmatmul.mubr.f32.gmra.mrb[0].mxu0 %v2709
    %v2808 = vpop.f32.mrb[0].mxu0
    %v2809 = vadd.f32 0.0, %v2808
    %v2810 = vpop.f32.mrb[0].mxu0
    %2811 = vmatprep.mubr.f32.mxu0 0.0
    %2812 = vmatmul.mubr.f32.gmra.mrb[0].mxu0 %v2712
    %v2813 = vpop.f32.mrb[0].mxu0
    %v2814 = vadd.f32 0.0, %v2813
    %v2815 = vpop.f32.mrb[0].mxu0
    %2816 = vmatprep.mubr.f32.mxu0 0.0
    %2817 = vmatmul.mubr.f32.gmra.mrb[0].mxu0 %v2715
    %v2818 = vpop.f32.mrb[0].mxu0
    %v2819 = vadd.f32 0.0, %v2818
    %v2820 = vpop.f32.mrb[0].mxu0
    %2821 = vdwg.mxu0
    %2826 = vrot.lane.b32.xlu0 %v2241, 64
    %v2827 = vpop.permute.xlu0 %2826
    %2828 = vrot.lane.b32.xlu0 %v2242, 64
    %v2829 = vpop.permute.xlu0 %2828
    %2830 = vrot.lane.b32.xlu0 %v2243, 64
    %v2831 = vpop.permute.xlu0 %2830
    %2832 = vrot.lane.b32.xlu0 %v2244, 64
    %v2833 = vpop.permute.xlu0 %2832
    %v2839 = vsel %vm271, %v2784, 0
    %v2842 = vsel %vm271, %v2789, 0
    %v2845 = vsel %vm271, %v2794, 0
    %v2848 = vsel %vm271, %v2799, 0
    %v2851 = vsel %vm271, %v2804, 0
    %v2854 = vsel %vm271, %v2809, 0
    %v2857 = vsel %vm271, %v2814, 0
    %v2860 = vsel %vm271, %v2819, 0
    %2862 = vmatprep.subr.mxu0 0.0
    %2863 = vmatpush1.msra.mxu0 %v2827
    %2864 = vmatprep.subr.mxu0 0.0
    %2865 = vmatpush1.msra.mxu0 %v2829
    %2866 = vmatprep.subr.mxu0 0.0
    %2867 = vmatpush1.msra.mxu0 %v2831
    %2868 = vmatprep.subr.mxu0 0.0
    %2869 = vmatpush1.msra.mxu0 %v2833
    %2870 = vmatprep.subr.mxu0 0.0
    %2871 = vmatpush1.msra.mxu0 0.0
    %2872 = vmatprep.subr.mxu0 0.0
    %2873 = vmatpush1.msra.mxu0 0.0
    %2874 = vmatprep.subr.mxu0 0.0
    %2875 = vmatpush1.msra.mxu0 0.0
    %2876 = vmatprep.subr.mxu0 0.0
    %2877 = vmatpush1.msra.mxu0 0.0
    %2878 = vmatprep.subr.mxu0 0.0
    %2879 = vmatpush1.msra.mxu0 0.0
    %2880 = vmatprep.subr.mxu0 0.0
    %2881 = vmatpush1.msra.mxu0 0.0
    %2882 = vmatprep.subr.mxu0 0.0
    %2883 = vmatpush1.msra.mxu0 0.0
    %2884 = vmatprep.subr.mxu0 0.0
    %2885 = vmatpush1.msra.mxu0 0.0
    %2886 = vmatprep.subr.mxu0 0.0
    %2887 = vmatpush1.msra.mxu0 0.0
    %2888 = vmatprep.subr.mxu0 0.0
    %2889 = vmatpush1.msra.mxu0 0.0
    %2890 = vmatprep.subr.mxu0 0.0
    %2891 = vmatpush1.msra.mxu0 0.0
    %2892 = vmatprep.subr.mxu0 0.0
    %2893 = vmatpush1.msra.mxu0 0.0
    %2894 = vmatprep.subr.mxu0 0.0
    %2895 = vmatpush1.msra.mxu0 0.0
    %2896 = vmatprep.subr.mxu0 0.0
    %2897 = vmatpush1.msra.mxu0 0.0
    %2898 = vmatprep.subr.mxu0 0.0
    %2899 = vmatpush1.msra.mxu0 0.0
    %2900 = vmatprep.subr.mxu0 0.0
    %2901 = vmatpush1.msra.mxu0 0.0
    %2902 = vmatprep.subr.mxu0 0.0
    %2903 = vmatpush1.msra.mxu0 0.0
    %2904 = vmatprep.subr.mxu0 0.0
    %2905 = vmatpush1.msra.mxu0 0.0
    %2906 = vmatprep.subr.mxu0 0.0
    %2907 = vmatpush1.msra.mxu0 0.0
    %2908 = vmatprep.subr.mxu0 0.0
    %2909 = vmatpush1.msra.mxu0 0.0
    %2910 = vmatprep.subr.mxu0 0.0
    %2911 = vmatpush1.msra.mxu0 0.0
    %2912 = vmatprep.subr.mxu0 0.0
    %2913 = vmatpush1.msra.mxu0 0.0
    %2914 = vmatprep.subr.mxu0 0.0
    %2915 = vmatpush1.msra.mxu0 0.0
    %2916 = vmatprep.subr.mxu0 0.0
    %2917 = vmatpush1.msra.mxu0 0.0
    %2918 = vmatprep.subr.mxu0 0.0
    %2919 = vmatpush1.msra.mxu0 0.0
    %2920 = vmatprep.subr.mxu0 0.0
    %2921 = vmatpush1.msra.mxu0 0.0
    %2922 = vmatprep.subr.mxu0 0.0
    %2923 = vmatpush1.msra.mxu0 0.0
    %2924 = vmatprep.subr.mxu0 0.0
    %2925 = vmatpush1.msra.mxu0 0.0
    %2926 = vmatprep.mubr.f32.mxu0 0.0
    %2927 = vmatmul.mubr.f32.gmra.mrb[0].mxu0 %v2839
    %v2928 = vpop.f32.mrb[0].mxu0
    %v2929 = vadd.f32 0.0, %v2928
    %v2930 = vpop.f32.mrb[0].mxu0
    %2931 = vmatprep.mubr.f32.mxu0 0.0
    %2932 = vmatmul.mubr.f32.gmra.mrb[0].mxu0 %v2842
    %v2933 = vpop.f32.mrb[0].mxu0
    %v2934 = vadd.f32 0.0, %v2933
    %v2935 = vpop.f32.mrb[0].mxu0
    %2936 = vmatprep.mubr.f32.mxu0 0.0
    %2937 = vmatmul.mubr.f32.gmra.mrb[0].mxu0 %v2845
    %v2938 = vpop.f32.mrb[0].mxu0
    %v2939 = vadd.f32 0.0, %v2938
    %v2940 = vpop.f32.mrb[0].mxu0
    %2941 = vmatprep.mubr.f32.mxu0 0.0
    %2942 = vmatmul.mubr.f32.gmra.mrb[0].mxu0 %v2848
    %v2943 = vpop.f32.mrb[0].mxu0
    %v2944 = vadd.f32 0.0, %v2943
    %v2945 = vpop.f32.mrb[0].mxu0
    %2946 = vmatprep.mubr.f32.mxu0 0.0
    %2947 = vmatmul.mubr.f32.gmra.mrb[0].mxu0 %v2851
    %v2948 = vpop.f32.mrb[0].mxu0
    %v2949 = vadd.f32 0.0, %v2948
    %v2950 = vpop.f32.mrb[0].mxu0
    %2951 = vmatprep.mubr.f32.mxu0 0.0
    %2952 = vmatmul.mubr.f32.gmra.mrb[0].mxu0 %v2854
    %v2953 = vpop.f32.mrb[0].mxu0
    %v2954 = vadd.f32 0.0, %v2953
    %v2955 = vpop.f32.mrb[0].mxu0
    %2956 = vmatprep.mubr.f32.mxu0 0.0
    %2957 = vmatmul.mubr.f32.gmra.mrb[0].mxu0 %v2857
    %v2958 = vpop.f32.mrb[0].mxu0
    %v2959 = vadd.f32 0.0, %v2958
    %v2960 = vpop.f32.mrb[0].mxu0
    %2961 = vmatprep.mubr.f32.mxu0 0.0
    %2962 = vmatmul.mubr.f32.gmra.mrb[0].mxu0 %v2860
    %v2963 = vpop.f32.mrb[0].mxu0
    %v2964 = vadd.f32 0.0, %v2963
    %v2965 = vpop.f32.mrb[0].mxu0
    %2966 = vdwg.mxu0
    %2971 = vrot.lane.b32.xlu0 %v2237, 64
    %v2972 = vpop.permute.xlu0 %2971
    %2973 = vrot.lane.b32.xlu0 %v2238, 64
    %v2974 = vpop.permute.xlu0 %2973
    %2975 = vrot.lane.b32.xlu0 %v2239, 64
    %v2976 = vpop.permute.xlu0 %2975
    %2977 = vrot.lane.b32.xlu0 %v2240, 64
    %v2978 = vpop.permute.xlu0 %2977
    %v2984 = vsel %vm271, %v2229, 0
    %v2987 = vsel %vm271, %v2230, 0
    %v2990 = vsel %vm271, %v2231, 0
    %v2993 = vsel %vm271, %v2232, 0
    %v2996 = vsel %vm271, %v2233, 0
    %v2999 = vsel %vm271, %v2234, 0
    %v3002 = vsel %vm271, %v2235, 0
    %v3005 = vsel %vm271, %v2236, 0
    %3007 = vmatprep.subr.mxu0 0.0
    %3008 = vmatpush1.msra.mxu0 %v2972
    %3009 = vmatprep.subr.mxu0 0.0
    %3010 = vmatpush1.msra.mxu0 %v2974
    %3011 = vmatprep.subr.mxu0 0.0
    %3012 = vmatpush1.msra.mxu0 %v2976
    %3013 = vmatprep.subr.mxu0 0.0
    %3014 = vmatpush1.msra.mxu0 %v2978
    %3015 = vmatprep.subr.mxu0 0.0
    %3016 = vmatpush1.msra.mxu0 0.0
    %3017 = vmatprep.subr.mxu0 0.0
    %3018 = vmatpush1.msra.mxu0 0.0
    %3019 = vmatprep.subr.mxu0 0.0
    %3020 = vmatpush1.msra.mxu0 0.0
    %3021 = vmatprep.subr.mxu0 0.0
    %3022 = vmatpush1.msra.mxu0 0.0
    %3023 = vmatprep.subr.mxu0 0.0
    %3024 = vmatpush1.msra.mxu0 0.0
    %3025 = vmatprep.subr.mxu0 0.0
    %3026 = vmatpush1.msra.mxu0 0.0
    %3027 = vmatprep.subr.mxu0 0.0
    %3028 = vmatpush1.msra.mxu0 0.0
    %3029 = vmatprep.subr.mxu0 0.0
    %3030 = vmatpush1.msra.mxu0 0.0
    %3031 = vmatprep.subr.mxu0 0.0
    %3032 = vmatpush1.msra.mxu0 0.0
    %3033 = vmatprep.subr.mxu0 0.0
    %3034 = vmatpush1.msra.mxu0 0.0
    %3035 = vmatprep.subr.mxu0 0.0
    %3036 = vmatpush1.msra.mxu0 0.0
    %3037 = vmatprep.subr.mxu0 0.0
    %3038 = vmatpush1.msra.mxu0 0.0
    %3039 = vmatprep.subr.mxu0 0.0
    %3040 = vmatpush1.msra.mxu0 0.0
    %3041 = vmatprep.subr.mxu0 0.0
    %3042 = vmatpush1.msra.mxu0 0.0
    %3043 = vmatprep.subr.mxu0 0.0
    %3044 = vmatpush1.msra.mxu0 0.0
    %3045 = vmatprep.subr.mxu0 0.0
    %3046 = vmatpush1.msra.mxu0 0.0
    %3047 = vmatprep.subr.mxu0 0.0
    %3048 = vmatpush1.msra.mxu0 0.0
    %3049 = vmatprep.subr.mxu0 0.0
    %3050 = vmatpush1.msra.mxu0 0.0
    %3051 = vmatprep.subr.mxu0 0.0
    %3052 = vmatpush1.msra.mxu0 0.0
    %3053 = vmatprep.subr.mxu0 0.0
    %3054 = vmatpush1.msra.mxu0 0.0
    %3055 = vmatprep.subr.mxu0 0.0
    %3056 = vmatpush1.msra.mxu0 0.0
    %3057 = vmatprep.subr.mxu0 0.0
    %3058 = vmatpush1.msra.mxu0 0.0
    %3059 = vmatprep.subr.mxu0 0.0
    %3060 = vmatpush1.msra.mxu0 0.0
    %3061 = vmatprep.subr.mxu0 0.0
    %3062 = vmatpush1.msra.mxu0 0.0
    %3063 = vmatprep.subr.mxu0 0.0
    %3064 = vmatpush1.msra.mxu0 0.0
    %3065 = vmatprep.subr.mxu0 0.0
    %3066 = vmatpush1.msra.mxu0 0.0
    %3067 = vmatprep.subr.mxu0 0.0
    %3068 = vmatpush1.msra.mxu0 0.0
    %3069 = vmatprep.subr.mxu0 0.0
    %3070 = vmatpush1.msra.mxu0 0.0
    %3071 = vmatprep.mubr.f32.mxu0 0.0
    %3072 = vmatmul.mubr.f32.gmra.mrb[0].mxu0 %v2984
    %v3073 = vpop.f32.mrb[0].mxu0
    %v3074 = vadd.f32 %v2929, %v3073
    %v3075 = vpop.f32.mrb[0].mxu0
    %3076 = vmatprep.mubr.f32.mxu0 0.0
    %3077 = vmatmul.mubr.f32.gmra.mrb[0].mxu0 %v2987
    %v3078 = vpop.f32.mrb[0].mxu0
    %v3079 = vadd.f32 %v2934, %v3078
    %v3080 = vpop.f32.mrb[0].mxu0
    %3081 = vmatprep.mubr.f32.mxu0 0.0
    %3082 = vmatmul.mubr.f32.gmra.mrb[0].mxu0 %v2990
    %v3083 = vpop.f32.mrb[0].mxu0
    %v3084 = vadd.f32 %v2939, %v3083
    %v3085 = vpop.f32.mrb[0].mxu0
    %3086 = vmatprep.mubr.f32.mxu0 0.0
    %3087 = vmatmul.mubr.f32.gmra.mrb[0].mxu0 %v2993
    %v3088 = vpop.f32.mrb[0].mxu0
    %v3089 = vadd.f32 %v2944, %v3088
    %v3090 = vpop.f32.mrb[0].mxu0
    %3091 = vmatprep.mubr.f32.mxu0 0.0
    %3092 = vmatmul.mubr.f32.gmra.mrb[0].mxu0 %v2996
    %v3093 = vpop.f32.mrb[0].mxu0
    %v3094 = vadd.f32 %v2949, %v3093
    %v3095 = vpop.f32.mrb[0].mxu0
    %3096 = vmatprep.mubr.f32.mxu0 0.0
    %3097 = vmatmul.mubr.f32.gmra.mrb[0].mxu0 %v2999
    %v3098 = vpop.f32.mrb[0].mxu0
    %v3099 = vadd.f32 %v2954, %v3098
    %v3100 = vpop.f32.mrb[0].mxu0
    %3101 = vmatprep.mubr.f32.mxu0 0.0
    %3102 = vmatmul.mubr.f32.gmra.mrb[0].mxu0 %v3002
    %v3103 = vpop.f32.mrb[0].mxu0
    %v3104 = vadd.f32 %v2959, %v3103
    %v3105 = vpop.f32.mrb[0].mxu0
    %3106 = vmatprep.mubr.f32.mxu0 0.0
    %3107 = vmatmul.mubr.f32.gmra.mrb[0].mxu0 %v3005
    %v3108 = vpop.f32.mrb[0].mxu0
    %v3109 = vadd.f32 %v2964, %v3108
    %v3110 = vpop.f32.mrb[0].mxu0
    %3111 = vdwg.mxu0
    %3113 = vrot.lane.b32.xlu0 %v2280, 64
    %v3114 = vpop.permute.xlu0 %3113
    %v3116 = vadd.f32 %v3074, %v3114
    %v3117 = vadd.f32 %v3079, %v3114
    %v3118 = vadd.f32 %v3084, %v3114
    %v3119 = vadd.f32 %v3089, %v3114
    %v3120 = vadd.f32 %v3094, %v3114
    %v3121 = vadd.f32 %v3099, %v3114
    %v3122 = vadd.f32 %v3104, %v3114
    %v3123 = vadd.f32 %v3109, %v3114
    %v3124 = vmax.f32 %v3116, 0.0
    %v3125 = vmax.f32 %v3117, 0.0
    %v3126 = vmax.f32 %v3118, 0.0
    %v3127 = vmax.f32 %v3119, 0.0
    %v3128 = vmax.f32 %v3120, 0.0
    %v3129 = vmax.f32 %v3121, 0.0
    %v3130 = vmax.f32 %v3122, 0.0
    %v3131 = vmax.f32 %v3123, 0.0
    %s3132 = scalar_lea.vmem %s3, 128
    %v3133 = vld [vmem:[%s3132] sm:$0xff]
    %v3134 = vld [vmem:[%s3132 + $0x8] sm:$0xff]
    %v3135 = vld [vmem:[%s3132 + $0x10] sm:$0xff]
    %v3136 = vld [vmem:[%s3132 + $0x18] sm:$0xff]
    %v3137 = vld [vmem:[%s3132 + $0x20] sm:$0xff]
    %v3138 = vld [vmem:[%s3132 + $0x28] sm:$0xff]
    %v3139 = vld [vmem:[%s3132 + $0x30] sm:$0xff]
    %v3140 = vld [vmem:[%s3132 + $0x38] sm:$0xff]
    %s3141 = scalar_lea.vmem %s6, 16
    %v3142 = vld [vmem:[%s3141] sm:$0xff]
    %s3143 = scalar_lea.vmem %s6, 40
    %v3144 = vld [vmem:[%s3143] sm:$0xff]
    %v3145 = vlaneseq
    %v3146 = vshrl.u32 %v3145, 7
    %v3147 = vsub.s32 2, %v3146
    %v3148 = vrot.slane %v40, %v3147
    %v3150 = vsel %vm271, %v3124, 0
    %v3153 = vsel %vm271, %v3125, 0
    %v3156 = vsel %vm271, %v3126, 0
    %v3159 = vsel %vm271, %v3127, 0
    %v3162 = vsel %vm271, %v3128, 0
    %v3165 = vsel %vm271, %v3129, 0
    %v3168 = vsel %vm271, %v3130, 0
    %v3171 = vsel %vm271, %v3131, 0
    %3173 = vmatprep.subr.mxu0 0.0
    %3174 = vmatpush1.msra.mxu0 %v3133
    %3175 = vmatprep.subr.mxu0 0.0
    %3176 = vmatpush1.msra.mxu0 %v3134
    %3177 = vmatprep.subr.mxu0 0.0
    %3178 = vmatpush1.msra.mxu0 %v3135
    %3179 = vmatprep.subr.mxu0 0.0
    %3180 = vmatpush1.msra.mxu0 %v3136
    %3181 = vmatprep.subr.mxu0 0.0
    %3182 = vmatpush1.msra.mxu0 0.0
    %3183 = vmatprep.subr.mxu0 0.0
    %3184 = vmatpush1.msra.mxu0 0.0
    %3185 = vmatprep.subr.mxu0 0.0
    %3186 = vmatpush1.msra.mxu0 0.0
    %3187 = vmatprep.subr.mxu0 0.0
    %3188 = vmatpush1.msra.mxu0 0.0
    %3189 = vmatprep.subr.mxu0 0.0
    %3190 = vmatpush1.msra.mxu0 0.0
    %3191 = vmatprep.subr.mxu0 0.0
    %3192 = vmatpush1.msra.mxu0 0.0
    %3193 = vmatprep.subr.mxu0 0.0
    %3194 = vmatpush1.msra.mxu0 0.0
    %3195 = vmatprep.subr.mxu0 0.0
    %3196 = vmatpush1.msra.mxu0 0.0
    %3197 = vmatprep.subr.mxu0 0.0
    %3198 = vmatpush1.msra.mxu0 0.0
    %3199 = vmatprep.subr.mxu0 0.0
    %3200 = vmatpush1.msra.mxu0 0.0
    %3201 = vmatprep.subr.mxu0 0.0
    %3202 = vmatpush1.msra.mxu0 0.0
    %3203 = vmatprep.subr.mxu0 0.0
    %3204 = vmatpush1.msra.mxu0 0.0
    %3205 = vmatprep.subr.mxu0 0.0
    %3206 = vmatpush1.msra.mxu0 0.0
    %3207 = vmatprep.subr.mxu0 0.0
    %3208 = vmatpush1.msra.mxu0 0.0
    %3209 = vmatprep.subr.mxu0 0.0
    %3210 = vmatpush1.msra.mxu0 0.0
    %3211 = vmatprep.subr.mxu0 0.0
    %3212 = vmatpush1.msra.mxu0 0.0
    %3213 = vmatprep.subr.mxu0 0.0
    %3214 = vmatpush1.msra.mxu0 0.0
    %3215 = vmatprep.subr.mxu0 0.0
    %3216 = vmatpush1.msra.mxu0 0.0
    %3217 = vmatprep.subr.mxu0 0.0
    %3218 = vmatpush1.msra.mxu0 0.0
    %3219 = vmatprep.subr.mxu0 0.0
    %3220 = vmatpush1.msra.mxu0 0.0
    %3221 = vmatprep.subr.mxu0 0.0
    %3222 = vmatpush1.msra.mxu0 0.0
    %3223 = vmatprep.subr.mxu0 0.0
    %3224 = vmatpush1.msra.mxu0 0.0
    %3225 = vmatprep.subr.mxu0 0.0
    %3226 = vmatpush1.msra.mxu0 0.0
    %3227 = vmatprep.subr.mxu0 0.0
    %3228 = vmatpush1.msra.mxu0 0.0
    %3229 = vmatprep.subr.mxu0 0.0
    %3230 = vmatpush1.msra.mxu0 0.0
    %3231 = vmatprep.subr.mxu0 0.0
    %3232 = vmatpush1.msra.mxu0 0.0
    %3233 = vmatprep.subr.mxu0 0.0
    %3234 = vmatpush1.msra.mxu0 0.0
    %3235 = vmatprep.subr.mxu0 0.0
    %3236 = vmatpush1.msra.mxu0 0.0
    %3237 = vmatprep.mubr.f32.mxu0 0.0
    %3238 = vmatmul.mubr.f32.gmra.mrb[0].mxu0 %v3150
    %v3239 = vpop.f32.mrb[0].mxu0
    %v3240 = vadd.f32 %v3148, %v3239
    %v3241 = vpop.f32.mrb[0].mxu0
    %3242 = vmatprep.mubr.f32.mxu0 0.0
    %3243 = vmatmul.mubr.f32.gmra.mrb[0].mxu0 %v3153
    %v3244 = vpop.f32.mrb[0].mxu0
    %v3245 = vadd.f32 %v3148, %v3244
    %v3246 = vpop.f32.mrb[0].mxu0
    %3247 = vmatprep.mubr.f32.mxu0 0.0
    %3248 = vmatmul.mubr.f32.gmra.mrb[0].mxu0 %v3156
    %v3249 = vpop.f32.mrb[0].mxu0
    %v3250 = vadd.f32 %v3148, %v3249
    %v3251 = vpop.f32.mrb[0].mxu0
    %3252 = vmatprep.mubr.f32.mxu0 0.0
    %3253 = vmatmul.mubr.f32.gmra.mrb[0].mxu0 %v3159
    %v3254 = vpop.f32.mrb[0].mxu0
    %v3255 = vadd.f32 %v3148, %v3254
    %v3256 = vpop.f32.mrb[0].mxu0
    %3257 = vmatprep.mubr.f32.mxu0 0.0
    %3258 = vmatmul.mubr.f32.gmra.mrb[0].mxu0 %v3162
    %v3259 = vpop.f32.mrb[0].mxu0
    %v3260 = vadd.f32 %v3148, %v3259
    %v3261 = vpop.f32.mrb[0].mxu0
    %3262 = vmatprep.mubr.f32.mxu0 0.0
    %3263 = vmatmul.mubr.f32.gmra.mrb[0].mxu0 %v3165
    %v3264 = vpop.f32.mrb[0].mxu0
    %v3265 = vadd.f32 %v3148, %v3264
    %v3266 = vpop.f32.mrb[0].mxu0
    %3267 = vmatprep.mubr.f32.mxu0 0.0
    %3268 = vmatmul.mubr.f32.gmra.mrb[0].mxu0 %v3168
    %v3269 = vpop.f32.mrb[0].mxu0
    %v3270 = vadd.f32 %v3148, %v3269
    %v3271 = vpop.f32.mrb[0].mxu0
    %3272 = vmatprep.mubr.f32.mxu0 0.0
    %3273 = vmatmul.mubr.f32.gmra.mrb[0].mxu0 %v3171
    %v3274 = vpop.f32.mrb[0].mxu0
    %v3275 = vadd.f32 %v3148, %v3274
    %v3276 = vpop.f32.mrb[0].mxu0
    %3277 = vdwg.mxu0
    %v3279 = vsel %vm271, %v3142, 0
    %3281 = vmatprep.subr.mxu0 0.0
    %3282 = vmatpush1.msra.mxu0 %v3137
    %3283 = vmatprep.subr.mxu0 0.0
    %3284 = vmatpush1.msra.mxu0 %v3138
    %3285 = vmatprep.subr.mxu0 0.0
    %3286 = vmatpush1.msra.mxu0 %v3139
    %3287 = vmatprep.subr.mxu0 0.0
    %3288 = vmatpush1.msra.mxu0 %v3140
    %3289 = vmatprep.subr.mxu0 0.0
    %3290 = vmatpush1.msra.mxu0 0.0
    %3291 = vmatprep.subr.mxu0 0.0
    %3292 = vmatpush1.msra.mxu0 0.0
    %3293 = vmatprep.subr.mxu0 0.0
    %3294 = vmatpush1.msra.mxu0 0.0
    %3295 = vmatprep.subr.mxu0 0.0
    %3296 = vmatpush1.msra.mxu0 0.0
    %3297 = vmatprep.subr.mxu0 0.0
    %3298 = vmatpush1.msra.mxu0 0.0
    %3299 = vmatprep.subr.mxu0 0.0
    %3300 = vmatpush1.msra.mxu0 0.0
    %3301 = vmatprep.subr.mxu0 0.0
    %3302 = vmatpush1.msra.mxu0 0.0
    %3303 = vmatprep.subr.mxu0 0.0
    %3304 = vmatpush1.msra.mxu0 0.0
    %3305 = vmatprep.subr.mxu0 0.0
    %3306 = vmatpush1.msra.mxu0 0.0
    %3307 = vmatprep.subr.mxu0 0.0
    %3308 = vmatpush1.msra.mxu0 0.0
    %3309 = vmatprep.subr.mxu0 0.0
    %3310 = vmatpush1.msra.mxu0 0.0
    %3311 = vmatprep.subr.mxu0 0.0
    %3312 = vmatpush1.msra.mxu0 0.0
    %3313 = vmatprep.subr.mxu0 0.0
    %3314 = vmatpush1.msra.mxu0 0.0
    %3315 = vmatprep.subr.mxu0 0.0
    %3316 = vmatpush1.msra.mxu0 0.0
    %3317 = vmatprep.subr.mxu0 0.0
    %3318 = vmatpush1.msra.mxu0 0.0
    %3319 = vmatprep.subr.mxu0 0.0
    %3320 = vmatpush1.msra.mxu0 0.0
    %3321 = vmatprep.subr.mxu0 0.0
    %3322 = vmatpush1.msra.mxu0 0.0
    %3323 = vmatprep.subr.mxu0 0.0
    %3324 = vmatpush1.msra.mxu0 0.0
    %3325 = vmatprep.subr.mxu0 0.0
    %3326 = vmatpush1.msra.mxu0 0.0
    %3327 = vmatprep.subr.mxu0 0.0
    %3328 = vmatpush1.msra.mxu0 0.0
    %3329 = vmatprep.subr.mxu0 0.0
    %3330 = vmatpush1.msra.mxu0 0.0
    %3331 = vmatprep.subr.mxu0 0.0
    %3332 = vmatpush1.msra.mxu0 0.0
    %3333 = vmatprep.subr.mxu0 0.0
    %3334 = vmatpush1.msra.mxu0 0.0
    %3335 = vmatprep.subr.mxu0 0.0
    %3336 = vmatpush1.msra.mxu0 0.0
    %3337 = vmatprep.subr.mxu0 0.0
    %3338 = vmatpush1.msra.mxu0 0.0
    %3339 = vmatprep.subr.mxu0 0.0
    %3340 = vmatpush1.msra.mxu0 0.0
    %3341 = vmatprep.subr.mxu0 0.0
    %3342 = vmatpush1.msra.mxu0 0.0
    %3343 = vmatprep.subr.mxu0 0.0
    %3344 = vmatpush1.msra.mxu0 0.0
    %3345 = vmatprep.mubr.f32.mxu0 0.0
    %3346 = vmatmul.mubr.f32.gmra.mrb[0].mxu0 %v3279
    %v3347 = vpop.f32.mrb[0].mxu0
    %v3348 = vadd.f32 0.0, %v3347
    %v3349 = vpop.f32.mrb[0].mxu0
    %3350 = vdwg.mxu0
    %v3351 = vadd.f32 %v3240, %v3348
    %v3352 = vxor.u32 %v3351, 2147483648
    %v3353 = vmul.f32 %v3352, 1.442695
    %v3354 = vpow.pop %v3353
    %v3355 = vadd.f32 %v3354, 1.0
    %v3356 = vrcp.pop %v3355
    %v3357 = vmul.f32 1.0, %v3356
    %v3358 = vmul.f32 %v3357, 2.0
    %v3359 = vsub.f32 %v3358, 1.0
    %v3360 = vsel %vm45, %v3359, %v3357
    %3362 = vrot.lane.b32.xlu0 %v3144, 32
    %v3363 = vpop.permute.xlu0 %3362
    %v3365 = vmul.f32 %v3360, %v3363
    %3367 = vrot.lane.b32.xlu0 %v3360, 64
    %v3368 = vpop.permute.xlu0 %3367
    %v3370 = vmul.f32 %v3360, %v3368
    %3372 = vrot.lane.b32.xlu0 %v3370, 32
    %v3373 = vpop.permute.xlu0 %3372
    %v3375 = vadd.f32 %v3365, %v3373
    %v3376 = vtanh.pop %v3375
    %3378 = vrot.lane.b32.xlu0 %v3376, 64
    %v3379 = vpop.permute.xlu0 %3378
    %v3381 = vmul.f32 %v3360, %v3379
    %3383 = vrot.lane.b32.xlu0 %v3381, 32
    %v3384 = vpop.permute.xlu0 %3383
    %3386 = vst.msk [vmem:[#allocation4] sm:$0xff] %vm271, %v3384
    %v3387 = vsel %vm271, %v3384, 0
    %3389 = vmatprep.subr.mxu0 0.0
    %3390 = vmatpush1.msra.mxu0 %v3137
    %3391 = vmatprep.subr.mxu0 0.0
    %3392 = vmatpush1.msra.mxu0 %v3138
    %3393 = vmatprep.subr.mxu0 0.0
    %3394 = vmatpush1.msra.mxu0 %v3139
    %3395 = vmatprep.subr.mxu0 0.0
    %3396 = vmatpush1.msra.mxu0 %v3140
    %3397 = vmatprep.subr.mxu0 0.0
    %3398 = vmatpush1.msra.mxu0 0.0
    %3399 = vmatprep.subr.mxu0 0.0
    %3400 = vmatpush1.msra.mxu0 0.0
    %3401 = vmatprep.subr.mxu0 0.0
    %3402 = vmatpush1.msra.mxu0 0.0
    %3403 = vmatprep.subr.mxu0 0.0
    %3404 = vmatpush1.msra.mxu0 0.0
    %3405 = vmatprep.subr.mxu0 0.0
    %3406 = vmatpush1.msra.mxu0 0.0
    %3407 = vmatprep.subr.mxu0 0.0
    %3408 = vmatpush1.msra.mxu0 0.0
    %3409 = vmatprep.subr.mxu0 0.0
    %3410 = vmatpush1.msra.mxu0 0.0
    %3411 = vmatprep.subr.mxu0 0.0
    %3412 = vmatpush1.msra.mxu0 0.0
    %3413 = vmatprep.subr.mxu0 0.0
    %3414 = vmatpush1.msra.mxu0 0.0
    %3415 = vmatprep.subr.mxu0 0.0
    %3416 = vmatpush1.msra.mxu0 0.0
    %3417 = vmatprep.subr.mxu0 0.0
    %3418 = vmatpush1.msra.mxu0 0.0
    %3419 = vmatprep.subr.mxu0 0.0
    %3420 = vmatpush1.msra.mxu0 0.0
    %3421 = vmatprep.subr.mxu0 0.0
    %3422 = vmatpush1.msra.mxu0 0.0
    %3423 = vmatprep.subr.mxu0 0.0
    %3424 = vmatpush1.msra.mxu0 0.0
    %3425 = vmatprep.subr.mxu0 0.0
    %3426 = vmatpush1.msra.mxu0 0.0
    %3427 = vmatprep.subr.mxu0 0.0
    %3428 = vmatpush1.msra.mxu0 0.0
    %3429 = vmatprep.subr.mxu0 0.0
    %3430 = vmatpush1.msra.mxu0 0.0
    %3431 = vmatprep.subr.mxu0 0.0
    %3432 = vmatpush1.msra.mxu0 0.0
    %3433 = vmatprep.subr.mxu0 0.0
    %3434 = vmatpush1.msra.mxu0 0.0
    %3435 = vmatprep.subr.mxu0 0.0
    %3436 = vmatpush1.msra.mxu0 0.0
    %3437 = vmatprep.subr.mxu0 0.0
    %3438 = vmatpush1.msra.mxu0 0.0
    %3439 = vmatprep.subr.mxu0 0.0
    %3440 = vmatpush1.msra.mxu0 0.0
    %3441 = vmatprep.subr.mxu0 0.0
    %3442 = vmatpush1.msra.mxu0 0.0
    %3443 = vmatprep.subr.mxu0 0.0
    %3444 = vmatpush1.msra.mxu0 0.0
    %3445 = vmatprep.subr.mxu0 0.0
    %3446 = vmatpush1.msra.mxu0 0.0
    %3447 = vmatprep.subr.mxu0 0.0
    %3448 = vmatpush1.msra.mxu0 0.0
    %3449 = vmatprep.subr.mxu0 0.0
    %3450 = vmatpush1.msra.mxu0 0.0
    %3451 = vmatprep.subr.mxu0 0.0
    %3452 = vmatpush1.msra.mxu0 0.0
    %3453 = vmatprep.mubr.f32.mxu0 0.0
    %3454 = vmatmul.mubr.f32.gmra.mrb[0].mxu0 %v3387
    %v3455 = vpop.f32.mrb[0].mxu0
    %v3456 = vadd.f32 0.0, %v3455
    %v3457 = vpop.f32.mrb[0].mxu0
    %3458 = vdwg.mxu0
    %v3459 = vadd.f32 %v3245, %v3456
    %v3460 = vxor.u32 %v3459, 2147483648
    %v3461 = vmul.f32 %v3460, 1.442695
    %v3462 = vpow.pop %v3461
    %v3463 = vadd.f32 %v3462, 1.0
    %v3464 = vrcp.pop %v3463
    %v3465 = vmul.f32 1.0, %v3464
    %v3466 = vmul.f32 %v3465, 2.0
    %v3467 = vsub.f32 %v3466, 1.0
    %v3468 = vsel %vm45, %v3467, %v3465
    %v3469 = vmul.f32 %v3468, %v3375
    %3471 = vrot.lane.b32.xlu0 %v3468, 64
    %v3472 = vpop.permute.xlu0 %3471
    %v3474 = vmul.f32 %v3468, %v3472
    %3476 = vrot.lane.b32.xlu0 %v3474, 32
    %v3477 = vpop.permute.xlu0 %3476
    %v3479 = vadd.f32 %v3469, %v3477
    %v3480 = vtanh.pop %v3479
    %3482 = vrot.lane.b32.xlu0 %v3480, 64
    %v3483 = vpop.permute.xlu0 %3482
    %v3485 = vmul.f32 %v3468, %v3483
    %3487 = vrot.lane.b32.xlu0 %v3485, 32
    %v3488 = vpop.permute.xlu0 %3487
    %3490 = vst.msk [vmem:[#allocation4 + $0x8] sm:$0xff] %vm271, %v3488
    %v3491 = vsel %vm271, %v3488, 0
    %3493 = vmatprep.subr.mxu0 0.0
    %3494 = vmatpush1.msra.mxu0 %v3137
    %3495 = vmatprep.subr.mxu0 0.0
    %3496 = vmatpush1.msra.mxu0 %v3138
    %3497 = vmatprep.subr.mxu0 0.0
    %3498 = vmatpush1.msra.mxu0 %v3139
    %3499 = vmatprep.subr.mxu0 0.0
    %3500 = vmatpush1.msra.mxu0 %v3140
    %3501 = vmatprep.subr.mxu0 0.0
    %3502 = vmatpush1.msra.mxu0 0.0
    %3503 = vmatprep.subr.mxu0 0.0
    %3504 = vmatpush1.msra.mxu0 0.0
    %3505 = vmatprep.subr.mxu0 0.0
    %3506 = vmatpush1.msra.mxu0 0.0
    %3507 = vmatprep.subr.mxu0 0.0
    %3508 = vmatpush1.msra.mxu0 0.0
    %3509 = vmatprep.subr.mxu0 0.0
    %3510 = vmatpush1.msra.mxu0 0.0
    %3511 = vmatprep.subr.mxu0 0.0
    %3512 = vmatpush1.msra.mxu0 0.0
    %3513 = vmatprep.subr.mxu0 0.0
    %3514 = vmatpush1.msra.mxu0 0.0
    %3515 = vmatprep.subr.mxu0 0.0
    %3516 = vmatpush1.msra.mxu0 0.0
    %3517 = vmatprep.subr.mxu0 0.0
    %3518 = vmatpush1.msra.mxu0 0.0
    %3519 = vmatprep.subr.mxu0 0.0
    %3520 = vmatpush1.msra.mxu0 0.0
    %3521 = vmatprep.subr.mxu0 0.0
    %3522 = vmatpush1.msra.mxu0 0.0
    %3523 = vmatprep.subr.mxu0 0.0
    %3524 = vmatpush1.msra.mxu0 0.0
    %3525 = vmatprep.subr.mxu0 0.0
    %3526 = vmatpush1.msra.mxu0 0.0
    %3527 = vmatprep.subr.mxu0 0.0
    %3528 = vmatpush1.msra.mxu0 0.0
    %3529 = vmatprep.subr.mxu0 0.0
    %3530 = vmatpush1.msra.mxu0 0.0
    %3531 = vmatprep.subr.mxu0 0.0
    %3532 = vmatpush1.msra.mxu0 0.0
    %3533 = vmatprep.subr.mxu0 0.0
    %3534 = vmatpush1.msra.mxu0 0.0
    %3535 = vmatprep.subr.mxu0 0.0
    %3536 = vmatpush1.msra.mxu0 0.0
    %3537 = vmatprep.subr.mxu0 0.0
    %3538 = vmatpush1.msra.mxu0 0.0
    %3539 = vmatprep.subr.mxu0 0.0
    %3540 = vmatpush1.msra.mxu0 0.0
    %3541 = vmatprep.subr.mxu0 0.0
    %3542 = vmatpush1.msra.mxu0 0.0
    %3543 = vmatprep.subr.mxu0 0.0
    %3544 = vmatpush1.msra.mxu0 0.0
    %3545 = vmatprep.subr.mxu0 0.0
    %3546 = vmatpush1.msra.mxu0 0.0
    %3547 = vmatprep.subr.mxu0 0.0
    %3548 = vmatpush1.msra.mxu0 0.0
    %3549 = vmatprep.subr.mxu0 0.0
    %3550 = vmatpush1.msra.mxu0 0.0
    %3551 = vmatprep.subr.mxu0 0.0
    %3552 = vmatpush1.msra.mxu0 0.0
    %3553 = vmatprep.subr.mxu0 0.0
    %3554 = vmatpush1.msra.mxu0 0.0
    %3555 = vmatprep.subr.mxu0 0.0
    %3556 = vmatpush1.msra.mxu0 0.0
    %3557 = vmatprep.mubr.f32.mxu0 0.0
    %3558 = vmatmul.mubr.f32.gmra.mrb[0].mxu0 %v3491
    %v3559 = vpop.f32.mrb[0].mxu0
    %v3560 = vadd.f32 0.0, %v3559
    %v3561 = vpop.f32.mrb[0].mxu0
    %3562 = vdwg.mxu0
    %v3563 = vadd.f32 %v3250, %v3560
    %v3564 = vxor.u32 %v3563, 2147483648
    %v3565 = vmul.f32 %v3564, 1.442695
    %v3566 = vpow.pop %v3565
    %v3567 = vadd.f32 %v3566, 1.0
    %v3568 = vrcp.pop %v3567
    %v3569 = vmul.f32 1.0, %v3568
    %v3570 = vmul.f32 %v3569, 2.0
    %v3571 = vsub.f32 %v3570, 1.0
    %v3572 = vsel %vm45, %v3571, %v3569
    %v3573 = vmul.f32 %v3572, %v3479
    %3575 = vrot.lane.b32.xlu0 %v3572, 64
    %v3576 = vpop.permute.xlu0 %3575
    %v3578 = vmul.f32 %v3572, %v3576
    %3580 = vrot.lane.b32.xlu0 %v3578, 32
    %v3581 = vpop.permute.xlu0 %3580
    %v3583 = vadd.f32 %v3573, %v3581
    %v3584 = vtanh.pop %v3583
    %3586 = vrot.lane.b32.xlu0 %v3584, 64
    %v3587 = vpop.permute.xlu0 %3586
    %v3589 = vmul.f32 %v3572, %v3587
    %3591 = vrot.lane.b32.xlu0 %v3589, 32
    %v3592 = vpop.permute.xlu0 %3591
    %3594 = vst.msk [vmem:[#allocation4 + $0x10] sm:$0xff] %vm271, %v3592
    %v3595 = vsel %vm271, %v3592, 0
    %3597 = vmatprep.subr.mxu0 0.0
    %3598 = vmatpush1.msra.mxu0 %v3137
    %3599 = vmatprep.subr.mxu0 0.0
    %3600 = vmatpush1.msra.mxu0 %v3138
    %3601 = vmatprep.subr.mxu0 0.0
    %3602 = vmatpush1.msra.mxu0 %v3139
    %3603 = vmatprep.subr.mxu0 0.0
    %3604 = vmatpush1.msra.mxu0 %v3140
    %3605 = vmatprep.subr.mxu0 0.0
    %3606 = vmatpush1.msra.mxu0 0.0
    %3607 = vmatprep.subr.mxu0 0.0
    %3608 = vmatpush1.msra.mxu0 0.0
    %3609 = vmatprep.subr.mxu0 0.0
    %3610 = vmatpush1.msra.mxu0 0.0
    %3611 = vmatprep.subr.mxu0 0.0
    %3612 = vmatpush1.msra.mxu0 0.0
    %3613 = vmatprep.subr.mxu0 0.0
    %3614 = vmatpush1.msra.mxu0 0.0
    %3615 = vmatprep.subr.mxu0 0.0
    %3616 = vmatpush1.msra.mxu0 0.0
    %3617 = vmatprep.subr.mxu0 0.0
    %3618 = vmatpush1.msra.mxu0 0.0
    %3619 = vmatprep.subr.mxu0 0.0
    %3620 = vmatpush1.msra.mxu0 0.0
    %3621 = vmatprep.subr.mxu0 0.0
    %3622 = vmatpush1.msra.mxu0 0.0
    %3623 = vmatprep.subr.mxu0 0.0
    %3624 = vmatpush1.msra.mxu0 0.0
    %3625 = vmatprep.subr.mxu0 0.0
    %3626 = vmatpush1.msra.mxu0 0.0
    %3627 = vmatprep.subr.mxu0 0.0
    %3628 = vmatpush1.msra.mxu0 0.0
    %3629 = vmatprep.subr.mxu0 0.0
    %3630 = vmatpush1.msra.mxu0 0.0
    %3631 = vmatprep.subr.mxu0 0.0
    %3632 = vmatpush1.msra.mxu0 0.0
    %3633 = vmatprep.subr.mxu0 0.0
    %3634 = vmatpush1.msra.mxu0 0.0
    %3635 = vmatprep.subr.mxu0 0.0
    %3636 = vmatpush1.msra.mxu0 0.0
    %3637 = vmatprep.subr.mxu0 0.0
    %3638 = vmatpush1.msra.mxu0 0.0
    %3639 = vmatprep.subr.mxu0 0.0
    %3640 = vmatpush1.msra.mxu0 0.0
    %3641 = vmatprep.subr.mxu0 0.0
    %3642 = vmatpush1.msra.mxu0 0.0
    %3643 = vmatprep.subr.mxu0 0.0
    %3644 = vmatpush1.msra.mxu0 0.0
    %3645 = vmatprep.subr.mxu0 0.0
    %3646 = vmatpush1.msra.mxu0 0.0
    %3647 = vmatprep.subr.mxu0 0.0
    %3648 = vmatpush1.msra.mxu0 0.0
    %3649 = vmatprep.subr.mxu0 0.0
    %3650 = vmatpush1.msra.mxu0 0.0
    %3651 = vmatprep.subr.mxu0 0.0
    %3652 = vmatpush1.msra.mxu0 0.0
    %3653 = vmatprep.subr.mxu0 0.0
    %3654 = vmatpush1.msra.mxu0 0.0
    %3655 = vmatprep.subr.mxu0 0.0
    %3656 = vmatpush1.msra.mxu0 0.0
    %3657 = vmatprep.subr.mxu0 0.0
    %3658 = vmatpush1.msra.mxu0 0.0
    %3659 = vmatprep.subr.mxu0 0.0
    %3660 = vmatpush1.msra.mxu0 0.0
    %3661 = vmatprep.mubr.f32.mxu0 0.0
    %3662 = vmatmul.mubr.f32.gmra.mrb[0].mxu0 %v3595
    %v3663 = vpop.f32.mrb[0].mxu0
    %v3664 = vadd.f32 0.0, %v3663
    %v3665 = vpop.f32.mrb[0].mxu0
    %3666 = vdwg.mxu0
    %v3667 = vadd.f32 %v3255, %v3664
    %v3668 = vxor.u32 %v3667, 2147483648
    %v3669 = vmul.f32 %v3668, 1.442695
    %v3670 = vpow.pop %v3669
    %v3671 = vadd.f32 %v3670, 1.0
    %v3672 = vrcp.pop %v3671
    %v3673 = vmul.f32 1.0, %v3672
    %v3674 = vmul.f32 %v3673, 2.0
    %v3675 = vsub.f32 %v3674, 1.0
    %v3676 = vsel %vm45, %v3675, %v3673
    %v3677 = vmul.f32 %v3676, %v3583
    %3679 = vrot.lane.b32.xlu0 %v3676, 64
    %v3680 = vpop.permute.xlu0 %3679
    %v3682 = vmul.f32 %v3676, %v3680
    %3684 = vrot.lane.b32.xlu0 %v3682, 32
    %v3685 = vpop.permute.xlu0 %3684
    %v3687 = vadd.f32 %v3677, %v3685
    %v3688 = vtanh.pop %v3687
    %3690 = vrot.lane.b32.xlu0 %v3688, 64
    %v3691 = vpop.permute.xlu0 %3690
    %v3693 = vmul.f32 %v3676, %v3691
    %3695 = vrot.lane.b32.xlu0 %v3693, 32
    %v3696 = vpop.permute.xlu0 %3695
    %3698 = vst.msk [vmem:[#allocation4 + $0x18] sm:$0xff] %vm271, %v3696
    %v3699 = vsel %vm271, %v3696, 0
    %3701 = vmatprep.subr.mxu0 0.0
    %3702 = vmatpush1.msra.mxu0 %v3137
    %3703 = vmatprep.subr.mxu0 0.0
    %3704 = vmatpush1.msra.mxu0 %v3138
    %3705 = vmatprep.subr.mxu0 0.0
    %3706 = vmatpush1.msra.mxu0 %v3139
    %3707 = vmatprep.subr.mxu0 0.0
    %3708 = vmatpush1.msra.mxu0 %v3140
    %3709 = vmatprep.subr.mxu0 0.0
    %3710 = vmatpush1.msra.mxu0 0.0
    %3711 = vmatprep.subr.mxu0 0.0
    %3712 = vmatpush1.msra.mxu0 0.0
    %3713 = vmatprep.subr.mxu0 0.0
    %3714 = vmatpush1.msra.mxu0 0.0
    %3715 = vmatprep.subr.mxu0 0.0
    %3716 = vmatpush1.msra.mxu0 0.0
    %3717 = vmatprep.subr.mxu0 0.0
    %3718 = vmatpush1.msra.mxu0 0.0
    %3719 = vmatprep.subr.mxu0 0.0
    %3720 = vmatpush1.msra.mxu0 0.0
    %3721 = vmatprep.subr.mxu0 0.0
    %3722 = vmatpush1.msra.mxu0 0.0
    %3723 = vmatprep.subr.mxu0 0.0
    %3724 = vmatpush1.msra.mxu0 0.0
    %3725 = vmatprep.subr.mxu0 0.0
    %3726 = vmatpush1.msra.mxu0 0.0
    %3727 = vmatprep.subr.mxu0 0.0
    %3728 = vmatpush1.msra.mxu0 0.0
    %3729 = vmatprep.subr.mxu0 0.0
    %3730 = vmatpush1.msra.mxu0 0.0
    %3731 = vmatprep.subr.mxu0 0.0
    %3732 = vmatpush1.msra.mxu0 0.0
    %3733 = vmatprep.subr.mxu0 0.0
    %3734 = vmatpush1.msra.mxu0 0.0
    %3735 = vmatprep.subr.mxu0 0.0
    %3736 = vmatpush1.msra.mxu0 0.0
    %3737 = vmatprep.subr.mxu0 0.0
    %3738 = vmatpush1.msra.mxu0 0.0
    %3739 = vmatprep.subr.mxu0 0.0
    %3740 = vmatpush1.msra.mxu0 0.0
    %3741 = vmatprep.subr.mxu0 0.0
    %3742 = vmatpush1.msra.mxu0 0.0
    %3743 = vmatprep.subr.mxu0 0.0
    %3744 = vmatpush1.msra.mxu0 0.0
    %3745 = vmatprep.subr.mxu0 0.0
    %3746 = vmatpush1.msra.mxu0 0.0
    %3747 = vmatprep.subr.mxu0 0.0
    %3748 = vmatpush1.msra.mxu0 0.0
    %3749 = vmatprep.subr.mxu0 0.0
    %3750 = vmatpush1.msra.mxu0 0.0
    %3751 = vmatprep.subr.mxu0 0.0
    %3752 = vmatpush1.msra.mxu0 0.0
    %3753 = vmatprep.subr.mxu0 0.0
    %3754 = vmatpush1.msra.mxu0 0.0
    %3755 = vmatprep.subr.mxu0 0.0
    %3756 = vmatpush1.msra.mxu0 0.0
    %3757 = vmatprep.subr.mxu0 0.0
    %3758 = vmatpush1.msra.mxu0 0.0
    %3759 = vmatprep.subr.mxu0 0.0
    %3760 = vmatpush1.msra.mxu0 0.0
    %3761 = vmatprep.subr.mxu0 0.0
    %3762 = vmatpush1.msra.mxu0 0.0
    %3763 = vmatprep.subr.mxu0 0.0
    %3764 = vmatpush1.msra.mxu0 0.0
    %3765 = vmatprep.mubr.f32.mxu0 0.0
    %3766 = vmatmul.mubr.f32.gmra.mrb[0].mxu0 %v3699
    %v3767 = vpop.f32.mrb[0].mxu0
    %v3768 = vadd.f32 0.0, %v3767
    %v3769 = vpop.f32.mrb[0].mxu0
    %3770 = vdwg.mxu0
    %v3771 = vadd.f32 %v3260, %v3768
    %v3772 = vxor.u32 %v3771, 2147483648
    %v3773 = vmul.f32 %v3772, 1.442695
    %v3774 = vpow.pop %v3773
    %v3775 = vadd.f32 %v3774, 1.0
    %v3776 = vrcp.pop %v3775
    %v3777 = vmul.f32 1.0, %v3776
    %v3778 = vmul.f32 %v3777, 2.0
    %v3779 = vsub.f32 %v3778, 1.0
    %v3780 = vsel %vm45, %v3779, %v3777
    %v3781 = vmul.f32 %v3780, %v3687
    %3783 = vrot.lane.b32.xlu0 %v3780, 64
    %v3784 = vpop.permute.xlu0 %3783
    %v3786 = vmul.f32 %v3780, %v3784
    %3788 = vrot.lane.b32.xlu0 %v3786, 32
    %v3789 = vpop.permute.xlu0 %3788
    %v3791 = vadd.f32 %v3781, %v3789
    %v3792 = vtanh.pop %v3791
    %3794 = vrot.lane.b32.xlu0 %v3792, 64
    %v3795 = vpop.permute.xlu0 %3794
    %v3797 = vmul.f32 %v3780, %v3795
    %3799 = vrot.lane.b32.xlu0 %v3797, 32
    %v3800 = vpop.permute.xlu0 %3799
    %3802 = vst.msk [vmem:[#allocation4 + $0x20] sm:$0xff] %vm271, %v3800
    %v3803 = vsel %vm271, %v3800, 0
    %3805 = vmatprep.subr.mxu0 0.0
    %3806 = vmatpush1.msra.mxu0 %v3137
    %3807 = vmatprep.subr.mxu0 0.0
    %3808 = vmatpush1.msra.mxu0 %v3138
    %3809 = vmatprep.subr.mxu0 0.0
    %3810 = vmatpush1.msra.mxu0 %v3139
    %3811 = vmatprep.subr.mxu0 0.0
    %3812 = vmatpush1.msra.mxu0 %v3140
    %3813 = vmatprep.subr.mxu0 0.0
    %3814 = vmatpush1.msra.mxu0 0.0
    %3815 = vmatprep.subr.mxu0 0.0
    %3816 = vmatpush1.msra.mxu0 0.0
    %3817 = vmatprep.subr.mxu0 0.0
    %3818 = vmatpush1.msra.mxu0 0.0
    %3819 = vmatprep.subr.mxu0 0.0
    %3820 = vmatpush1.msra.mxu0 0.0
    %3821 = vmatprep.subr.mxu0 0.0
    %3822 = vmatpush1.msra.mxu0 0.0
    %3823 = vmatprep.subr.mxu0 0.0
    %3824 = vmatpush1.msra.mxu0 0.0
    %3825 = vmatprep.subr.mxu0 0.0
    %3826 = vmatpush1.msra.mxu0 0.0
    %3827 = vmatprep.subr.mxu0 0.0
    %3828 = vmatpush1.msra.mxu0 0.0
    %3829 = vmatprep.subr.mxu0 0.0
    %3830 = vmatpush1.msra.mxu0 0.0
    %3831 = vmatprep.subr.mxu0 0.0
    %3832 = vmatpush1.msra.mxu0 0.0
    %3833 = vmatprep.subr.mxu0 0.0
    %3834 = vmatpush1.msra.mxu0 0.0
    %3835 = vmatprep.subr.mxu0 0.0
    %3836 = vmatpush1.msra.mxu0 0.0
    %3837 = vmatprep.subr.mxu0 0.0
    %3838 = vmatpush1.msra.mxu0 0.0
    %3839 = vmatprep.subr.mxu0 0.0
    %3840 = vmatpush1.msra.mxu0 0.0
    %3841 = vmatprep.subr.mxu0 0.0
    %3842 = vmatpush1.msra.mxu0 0.0
    %3843 = vmatprep.subr.mxu0 0.0
    %3844 = vmatpush1.msra.mxu0 0.0
    %3845 = vmatprep.subr.mxu0 0.0
    %3846 = vmatpush1.msra.mxu0 0.0
    %3847 = vmatprep.subr.mxu0 0.0
    %3848 = vmatpush1.msra.mxu0 0.0
    %3849 = vmatprep.subr.mxu0 0.0
    %3850 = vmatpush1.msra.mxu0 0.0
    %3851 = vmatprep.subr.mxu0 0.0
    %3852 = vmatpush1.msra.mxu0 0.0
    %3853 = vmatprep.subr.mxu0 0.0
    %3854 = vmatpush1.msra.mxu0 0.0
    %3855 = vmatprep.subr.mxu0 0.0
    %3856 = vmatpush1.msra.mxu0 0.0
    %3857 = vmatprep.subr.mxu0 0.0
    %3858 = vmatpush1.msra.mxu0 0.0
    %3859 = vmatprep.subr.mxu0 0.0
    %3860 = vmatpush1.msra.mxu0 0.0
    %3861 = vmatprep.subr.mxu0 0.0
    %3862 = vmatpush1.msra.mxu0 0.0
    %3863 = vmatprep.subr.mxu0 0.0
    %3864 = vmatpush1.msra.mxu0 0.0
    %3865 = vmatprep.subr.mxu0 0.0
    %3866 = vmatpush1.msra.mxu0 0.0
    %3867 = vmatprep.subr.mxu0 0.0
    %3868 = vmatpush1.msra.mxu0 0.0
    %3869 = vmatprep.mubr.f32.mxu0 0.0
    %3870 = vmatmul.mubr.f32.gmra.mrb[0].mxu0 %v3803
    %v3871 = vpop.f32.mrb[0].mxu0
    %v3872 = vadd.f32 0.0, %v3871
    %v3873 = vpop.f32.mrb[0].mxu0
    %3874 = vdwg.mxu0
    %v3875 = vadd.f32 %v3265, %v3872
    %v3876 = vxor.u32 %v3875, 2147483648
    %v3877 = vmul.f32 %v3876, 1.442695
    %v3878 = vpow.pop %v3877
    %v3879 = vadd.f32 %v3878, 1.0
    %v3880 = vrcp.pop %v3879
    %v3881 = vmul.f32 1.0, %v3880
    %v3882 = vmul.f32 %v3881, 2.0
    %v3883 = vsub.f32 %v3882, 1.0
    %v3884 = vsel %vm45, %v3883, %v3881
    %v3885 = vmul.f32 %v3884, %v3791
    %3887 = vrot.lane.b32.xlu0 %v3884, 64
    %v3888 = vpop.permute.xlu0 %3887
    %v3890 = vmul.f32 %v3884, %v3888
    %3892 = vrot.lane.b32.xlu0 %v3890, 32
    %v3893 = vpop.permute.xlu0 %3892
    %v3895 = vadd.f32 %v3885, %v3893
    %v3896 = vtanh.pop %v3895
    %3898 = vrot.lane.b32.xlu0 %v3896, 64
    %v3899 = vpop.permute.xlu0 %3898
    %v3901 = vmul.f32 %v3884, %v3899
    %3903 = vrot.lane.b32.xlu0 %v3901, 32
    %v3904 = vpop.permute.xlu0 %3903
    %3906 = vst.msk [vmem:[#allocation4 + $0x28] sm:$0xff] %vm271, %v3904
    %v3907 = vsel %vm271, %v3904, 0
    %3909 = vmatprep.subr.mxu0 0.0
    %3910 = vmatpush1.msra.mxu0 %v3137
    %3911 = vmatprep.subr.mxu0 0.0
    %3912 = vmatpush1.msra.mxu0 %v3138
    %3913 = vmatprep.subr.mxu0 0.0
    %3914 = vmatpush1.msra.mxu0 %v3139
    %3915 = vmatprep.subr.mxu0 0.0
    %3916 = vmatpush1.msra.mxu0 %v3140
    %3917 = vmatprep.subr.mxu0 0.0
    %3918 = vmatpush1.msra.mxu0 0.0
    %3919 = vmatprep.subr.mxu0 0.0
    %3920 = vmatpush1.msra.mxu0 0.0
    %3921 = vmatprep.subr.mxu0 0.0
    %3922 = vmatpush1.msra.mxu0 0.0
    %3923 = vmatprep.subr.mxu0 0.0
    %3924 = vmatpush1.msra.mxu0 0.0
    %3925 = vmatprep.subr.mxu0 0.0
    %3926 = vmatpush1.msra.mxu0 0.0
    %3927 = vmatprep.subr.mxu0 0.0
    %3928 = vmatpush1.msra.mxu0 0.0
    %3929 = vmatprep.subr.mxu0 0.0
    %3930 = vmatpush1.msra.mxu0 0.0
    %3931 = vmatprep.subr.mxu0 0.0
    %3932 = vmatpush1.msra.mxu0 0.0
    %3933 = vmatprep.subr.mxu0 0.0
    %3934 = vmatpush1.msra.mxu0 0.0
    %3935 = vmatprep.subr.mxu0 0.0
    %3936 = vmatpush1.msra.mxu0 0.0
    %3937 = vmatprep.subr.mxu0 0.0
    %3938 = vmatpush1.msra.mxu0 0.0
    %3939 = vmatprep.subr.mxu0 0.0
    %3940 = vmatpush1.msra.mxu0 0.0
    %3941 = vmatprep.subr.mxu0 0.0
    %3942 = vmatpush1.msra.mxu0 0.0
    %3943 = vmatprep.subr.mxu0 0.0
    %3944 = vmatpush1.msra.mxu0 0.0
    %3945 = vmatprep.subr.mxu0 0.0
    %3946 = vmatpush1.msra.mxu0 0.0
    %3947 = vmatprep.subr.mxu0 0.0
    %3948 = vmatpush1.msra.mxu0 0.0
    %3949 = vmatprep.subr.mxu0 0.0
    %3950 = vmatpush1.msra.mxu0 0.0
    %3951 = vmatprep.subr.mxu0 0.0
    %3952 = vmatpush1.msra.mxu0 0.0
    %3953 = vmatprep.subr.mxu0 0.0
    %3954 = vmatpush1.msra.mxu0 0.0
    %3955 = vmatprep.subr.mxu0 0.0
    %3956 = vmatpush1.msra.mxu0 0.0
    %3957 = vmatprep.subr.mxu0 0.0
    %3958 = vmatpush1.msra.mxu0 0.0
    %3959 = vmatprep.subr.mxu0 0.0
    %3960 = vmatpush1.msra.mxu0 0.0
    %3961 = vmatprep.subr.mxu0 0.0
    %3962 = vmatpush1.msra.mxu0 0.0
    %3963 = vmatprep.subr.mxu0 0.0
    %3964 = vmatpush1.msra.mxu0 0.0
    %3965 = vmatprep.subr.mxu0 0.0
    %3966 = vmatpush1.msra.mxu0 0.0
    %3967 = vmatprep.subr.mxu0 0.0
    %3968 = vmatpush1.msra.mxu0 0.0
    %3969 = vmatprep.subr.mxu0 0.0
    %3970 = vmatpush1.msra.mxu0 0.0
    %3971 = vmatprep.subr.mxu0 0.0
    %3972 = vmatpush1.msra.mxu0 0.0
    %3973 = vmatprep.mubr.f32.mxu0 0.0
    %3974 = vmatmul.mubr.f32.gmra.mrb[0].mxu0 %v3907
    %v3975 = vpop.f32.mrb[0].mxu0
    %v3976 = vadd.f32 0.0, %v3975
    %v3977 = vpop.f32.mrb[0].mxu0
    %3978 = vdwg.mxu0
    %v3979 = vadd.f32 %v3270, %v3976
    %v3980 = vxor.u32 %v3979, 2147483648
    %v3981 = vmul.f32 %v3980, 1.442695
    %v3982 = vpow.pop %v3981
    %v3983 = vadd.f32 %v3982, 1.0
    %v3984 = vrcp.pop %v3983
    %v3985 = vmul.f32 1.0, %v3984
    %v3986 = vmul.f32 %v3985, 2.0
    %v3987 = vsub.f32 %v3986, 1.0
    %v3988 = vsel %vm45, %v3987, %v3985
    %v3989 = vmul.f32 %v3988, %v3895
    %3991 = vrot.lane.b32.xlu0 %v3988, 64
    %v3992 = vpop.permute.xlu0 %3991
    %v3994 = vmul.f32 %v3988, %v3992
    %3996 = vrot.lane.b32.xlu0 %v3994, 32
    %v3997 = vpop.permute.xlu0 %3996
    %v3999 = vadd.f32 %v3989, %v3997
    %v4000 = vtanh.pop %v3999
    %4002 = vrot.lane.b32.xlu0 %v4000, 64
    %v4003 = vpop.permute.xlu0 %4002
    %v4005 = vmul.f32 %v3988, %v4003
    %4007 = vrot.lane.b32.xlu0 %v4005, 32
    %v4008 = vpop.permute.xlu0 %4007
    %4010 = vst.msk [vmem:[#allocation4 + $0x30] sm:$0xff] %vm271, %v4008
    %v4011 = vsel %vm271, %v4008, 0
    %4013 = vmatprep.subr.mxu0 0.0
    %4014 = vmatpush1.msra.mxu0 %v3137
    %4015 = vmatprep.subr.mxu0 0.0
    %4016 = vmatpush1.msra.mxu0 %v3138
    %4017 = vmatprep.subr.mxu0 0.0
    %4018 = vmatpush1.msra.mxu0 %v3139
    %4019 = vmatprep.subr.mxu0 0.0
    %4020 = vmatpush1.msra.mxu0 %v3140
    %4021 = vmatprep.subr.mxu0 0.0
    %4022 = vmatpush1.msra.mxu0 0.0
    %4023 = vmatprep.subr.mxu0 0.0
    %4024 = vmatpush1.msra.mxu0 0.0
    %4025 = vmatprep.subr.mxu0 0.0
    %4026 = vmatpush1.msra.mxu0 0.0
    %4027 = vmatprep.subr.mxu0 0.0
    %4028 = vmatpush1.msra.mxu0 0.0
    %4029 = vmatprep.subr.mxu0 0.0
    %4030 = vmatpush1.msra.mxu0 0.0
    %4031 = vmatprep.subr.mxu0 0.0
    %4032 = vmatpush1.msra.mxu0 0.0
    %4033 = vmatprep.subr.mxu0 0.0
    %4034 = vmatpush1.msra.mxu0 0.0
    %4035 = vmatprep.subr.mxu0 0.0
    %4036 = vmatpush1.msra.mxu0 0.0
    %4037 = vmatprep.subr.mxu0 0.0
    %4038 = vmatpush1.msra.mxu0 0.0
    %4039 = vmatprep.subr.mxu0 0.0
    %4040 = vmatpush1.msra.mxu0 0.0
    %4041 = vmatprep.subr.mxu0 0.0
    %4042 = vmatpush1.msra.mxu0 0.0
    %4043 = vmatprep.subr.mxu0 0.0
    %4044 = vmatpush1.msra.mxu0 0.0
    %4045 = vmatprep.subr.mxu0 0.0
    %4046 = vmatpush1.msra.mxu0 0.0
    %4047 = vmatprep.subr.mxu0 0.0
    %4048 = vmatpush1.msra.mxu0 0.0
    %4049 = vmatprep.subr.mxu0 0.0
    %4050 = vmatpush1.msra.mxu0 0.0
    %4051 = vmatprep.subr.mxu0 0.0
    %4052 = vmatpush1.msra.mxu0 0.0
    %4053 = vmatprep.subr.mxu0 0.0
    %4054 = vmatpush1.msra.mxu0 0.0
    %4055 = vmatprep.subr.mxu0 0.0
    %4056 = vmatpush1.msra.mxu0 0.0
    %4057 = vmatprep.subr.mxu0 0.0
    %4058 = vmatpush1.msra.mxu0 0.0
    %4059 = vmatprep.subr.mxu0 0.0
    %4060 = vmatpush1.msra.mxu0 0.0
    %4061 = vmatprep.subr.mxu0 0.0
    %4062 = vmatpush1.msra.mxu0 0.0
    %4063 = vmatprep.subr.mxu0 0.0
    %4064 = vmatpush1.msra.mxu0 0.0
    %4065 = vmatprep.subr.mxu0 0.0
    %4066 = vmatpush1.msra.mxu0 0.0
    %4067 = vmatprep.subr.mxu0 0.0
    %4068 = vmatpush1.msra.mxu0 0.0
    %4069 = vmatprep.subr.mxu0 0.0
    %4070 = vmatpush1.msra.mxu0 0.0
    %4071 = vmatprep.subr.mxu0 0.0
    %4072 = vmatpush1.msra.mxu0 0.0
    %4073 = vmatprep.subr.mxu0 0.0
    %4074 = vmatpush1.msra.mxu0 0.0
    %4075 = vmatprep.subr.mxu0 0.0
    %4076 = vmatpush1.msra.mxu0 0.0
    %4077 = vmatprep.mubr.f32.mxu0 0.0
    %4078 = vmatmul.mubr.f32.gmra.mrb[0].mxu0 %v4011
    %v4079 = vpop.f32.mrb[0].mxu0
    %v4080 = vadd.f32 0.0, %v4079
    %v4081 = vpop.f32.mrb[0].mxu0
    %4082 = vdwg.mxu0
    %v4083 = vadd.f32 %v3275, %v4080
    %v4084 = vxor.u32 %v4083, 2147483648
    %v4085 = vmul.f32 %v4084, 1.442695
    %v4086 = vpow.pop %v4085
    %v4087 = vadd.f32 %v4086, 1.0
    %v4088 = vrcp.pop %v4087
    %v4089 = vmul.f32 1.0, %v4088
    %v4090 = vmul.f32 %v4089, 2.0
    %v4091 = vsub.f32 %v4090, 1.0
    %v4092 = vsel %vm45, %v4091, %v4089
    %v4093 = vmul.f32 %v4092, %v3999
    %4095 = vrot.lane.b32.xlu0 %v4092, 64
    %v4096 = vpop.permute.xlu0 %4095
    %v4098 = vmul.f32 %v4092, %v4096
    %4100 = vrot.lane.b32.xlu0 %v4098, 32
    %v4101 = vpop.permute.xlu0 %4100
    %v4103 = vadd.f32 %v4093, %v4101
    %v4104 = vtanh.pop %v4103
    %4106 = vrot.lane.b32.xlu0 %v4104, 64
    %v4107 = vpop.permute.xlu0 %4106
    %v4109 = vmul.f32 %v4092, %v4107
    %4111 = vrot.lane.b32.xlu0 %v4109, 32
    %v4112 = vpop.permute.xlu0 %4111
    %4114 = vst.msk [vmem:[#allocation4 + $0x38] sm:$0xff] %vm271, %v4112
    %v4115 = vld [vmem:[#allocation4] sm:$0xff]
    %v4116 = vld [vmem:[#allocation4 + $0x8] sm:$0xff]
    %v4117 = vld [vmem:[#allocation4 + $0x10] sm:$0xff]
    %v4118 = vld [vmem:[#allocation4 + $0x18] sm:$0xff]
    %v4119 = vld [vmem:[#allocation4 + $0x20] sm:$0xff]
    %v4120 = vld [vmem:[#allocation4 + $0x28] sm:$0xff]
    %v4121 = vld [vmem:[#allocation4 + $0x30] sm:$0xff]
    %v4122 = vld [vmem:[#allocation4 + $0x38] sm:$0xff]
    %v4123 = vld [vmem:[%s2] sm:$0xff]
    %v4124 = vld [vmem:[%s2 + $0x8] sm:$0xff]
    %v4125 = vld [vmem:[%s2 + $0x10] sm:$0xff]
    %v4126 = vld [vmem:[%s2 + $0x18] sm:$0xff]
    %v4128 = vsel %vm271, %v4115, 0
    %v4131 = vsel %vm271, %v4116, 0
    %v4134 = vsel %vm271, %v4117, 0
    %v4137 = vsel %vm271, %v4118, 0
    %v4140 = vsel %vm271, %v4119, 0
    %v4143 = vsel %vm271, %v4120, 0
    %v4146 = vsel %vm271, %v4121, 0
    %v4149 = vsel %vm271, %v4122, 0
    %4151 = vmatprep.subr.mxu0 0.0
    %4152 = vmatpush1.msra.mxu0 %v4123
    %4153 = vmatprep.subr.mxu0 0.0
    %4154 = vmatpush1.msra.mxu0 %v4124
    %4155 = vmatprep.subr.mxu0 0.0
    %4156 = vmatpush1.msra.mxu0 %v4125
    %4157 = vmatprep.subr.mxu0 0.0
    %4158 = vmatpush1.msra.mxu0 %v4126
    %4159 = vmatprep.subr.mxu0 0.0
    %4160 = vmatpush1.msra.mxu0 0.0
    %4161 = vmatprep.subr.mxu0 0.0
    %4162 = vmatpush1.msra.mxu0 0.0
    %4163 = vmatprep.subr.mxu0 0.0
    %4164 = vmatpush1.msra.mxu0 0.0
    %4165 = vmatprep.subr.mxu0 0.0
    %4166 = vmatpush1.msra.mxu0 0.0
    %4167 = vmatprep.subr.mxu0 0.0
    %4168 = vmatpush1.msra.mxu0 0.0
    %4169 = vmatprep.subr.mxu0 0.0
    %4170 = vmatpush1.msra.mxu0 0.0
    %4171 = vmatprep.subr.mxu0 0.0
    %4172 = vmatpush1.msra.mxu0 0.0
    %4173 = vmatprep.subr.mxu0 0.0
    %4174 = vmatpush1.msra.mxu0 0.0
    %4175 = vmatprep.subr.mxu0 0.0
    %4176 = vmatpush1.msra.mxu0 0.0
    %4177 = vmatprep.subr.mxu0 0.0
    %4178 = vmatpush1.msra.mxu0 0.0
    %4179 = vmatprep.subr.mxu0 0.0
    %4180 = vmatpush1.msra.mxu0 0.0
    %4181 = vmatprep.subr.mxu0 0.0
    %4182 = vmatpush1.msra.mxu0 0.0
    %4183 = vmatprep.subr.mxu0 0.0
    %4184 = vmatpush1.msra.mxu0 0.0
    %4185 = vmatprep.subr.mxu0 0.0
    %4186 = vmatpush1.msra.mxu0 0.0
    %4187 = vmatprep.subr.mxu0 0.0
    %4188 = vmatpush1.msra.mxu0 0.0
    %4189 = vmatprep.subr.mxu0 0.0
    %4190 = vmatpush1.msra.mxu0 0.0
    %4191 = vmatprep.subr.mxu0 0.0
    %4192 = vmatpush1.msra.mxu0 0.0
    %4193 = vmatprep.subr.mxu0 0.0
    %4194 = vmatpush1.msra.mxu0 0.0
    %4195 = vmatprep.subr.mxu0 0.0
    %4196 = vmatpush1.msra.mxu0 0.0
    %4197 = vmatprep.subr.mxu0 0.0
    %4198 = vmatpush1.msra.mxu0 0.0
    %4199 = vmatprep.subr.mxu0 0.0
    %4200 = vmatpush1.msra.mxu0 0.0
    %4201 = vmatprep.subr.mxu0 0.0
    %4202 = vmatpush1.msra.mxu0 0.0
    %4203 = vmatprep.subr.mxu0 0.0
    %4204 = vmatpush1.msra.mxu0 0.0
    %4205 = vmatprep.subr.mxu0 0.0
    %4206 = vmatpush1.msra.mxu0 0.0
    %4207 = vmatprep.subr.mxu0 0.0
    %4208 = vmatpush1.msra.mxu0 0.0
    %4209 = vmatprep.subr.mxu0 0.0
    %4210 = vmatpush1.msra.mxu0 0.0
    %4211 = vmatprep.subr.mxu0 0.0
    %4212 = vmatpush1.msra.mxu0 0.0
    %4213 = vmatprep.subr.mxu0 0.0
    %4214 = vmatpush1.msra.mxu0 0.0
    %4215 = vmatprep.mubr.f32.mxu0 0.0
    %4216 = vmatmul.mubr.f32.gmra.mrb[0].mxu0 %v4128
    %v4217 = vpop.f32.mrb[0].mxu0
    %v4218 = vadd.f32 0.0, %v4217
    %v4219 = vpop.f32.mrb[0].mxu0
    %4220 = vmatprep.mubr.f32.mxu0 0.0
    %4221 = vmatmul.mubr.f32.gmra.mrb[0].mxu0 %v4131
    %v4222 = vpop.f32.mrb[0].mxu0
    %v4223 = vadd.f32 0.0, %v4222
    %v4224 = vpop.f32.mrb[0].mxu0
    %4225 = vmatprep.mubr.f32.mxu0 0.0
    %4226 = vmatmul.mubr.f32.gmra.mrb[0].mxu0 %v4134
    %v4227 = vpop.f32.mrb[0].mxu0
    %v4228 = vadd.f32 0.0, %v4227
    %v4229 = vpop.f32.mrb[0].mxu0
    %4230 = vmatprep.mubr.f32.mxu0 0.0
    %4231 = vmatmul.mubr.f32.gmra.mrb[0].mxu0 %v4137
    %v4232 = vpop.f32.mrb[0].mxu0
    %v4233 = vadd.f32 0.0, %v4232
    %v4234 = vpop.f32.mrb[0].mxu0
    %4235 = vmatprep.mubr.f32.mxu0 0.0
    %4236 = vmatmul.mubr.f32.gmra.mrb[0].mxu0 %v4140
    %v4237 = vpop.f32.mrb[0].mxu0
    %v4238 = vadd.f32 0.0, %v4237
    %v4239 = vpop.f32.mrb[0].mxu0
    %4240 = vmatprep.mubr.f32.mxu0 0.0
    %4241 = vmatmul.mubr.f32.gmra.mrb[0].mxu0 %v4143
    %v4242 = vpop.f32.mrb[0].mxu0
    %v4243 = vadd.f32 0.0, %v4242
    %v4244 = vpop.f32.mrb[0].mxu0
    %4245 = vmatprep.mubr.f32.mxu0 0.0
    %4246 = vmatmul.mubr.f32.gmra.mrb[0].mxu0 %v4146
    %v4247 = vpop.f32.mrb[0].mxu0
    %v4248 = vadd.f32 0.0, %v4247
    %v4249 = vpop.f32.mrb[0].mxu0
    %4250 = vmatprep.mubr.f32.mxu0 0.0
    %4251 = vmatmul.mubr.f32.gmra.mrb[0].mxu0 %v4149
    %v4252 = vpop.f32.mrb[0].mxu0
    %v4253 = vadd.f32 0.0, %v4252
    %v4254 = vpop.f32.mrb[0].mxu0
    %4255 = vdwg.mxu0
    %vm4256 = vcmp.lt.s32.totalorder %v42, 64
    %v4257 = vsel %vm4256, %v4218, -1e+30
    %v4258 = vsel %vm4256, %v4223, -1e+30
    %v4259 = vsel %vm4256, %v4228, -1e+30
    %v4260 = vsel %vm4256, %v4233, -1e+30
    %v4261 = vsel %vm4256, %v4238, -1e+30
    %v4262 = vsel %vm4256, %v4243, -1e+30
    %v4263 = vsel %vm4256, %v4248, -1e+30
    %v4264 = vsel %vm4256, %v4253, -1e+30
    %4265 = vmax.xlane.f32.xlu0 %v4257
    %v4266 = vpop.xlane.xlu0 %4265
    %4267 = vmax.xlane.f32.xlu0 %v4258
    %v4268 = vpop.xlane.xlu0 %4267
    %4269 = vmax.xlane.f32.xlu0 %v4259
    %v4270 = vpop.xlane.xlu0 %4269
    %4271 = vmax.xlane.f32.xlu0 %v4260
    %v4272 = vpop.xlane.xlu0 %4271
    %4273 = vmax.xlane.f32.xlu0 %v4261
    %v4274 = vpop.xlane.xlu0 %4273
    %4275 = vmax.xlane.f32.xlu0 %v4262
    %v4276 = vpop.xlane.xlu0 %4275
    %4277 = vmax.xlane.f32.xlu0 %v4263
    %v4278 = vpop.xlane.xlu0 %4277
    %4279 = vmax.xlane.f32.xlu0 %v4264
    %v4280 = vpop.xlane.xlu0 %4279
    %v4281 = vsub.f32 %v4257, %v4266
    %v4282 = vsub.f32 %v4258, %v4268
    %v4283 = vsub.f32 %v4259, %v4270
    %v4284 = vsub.f32 %v4260, %v4272
    %v4285 = vsub.f32 %v4261, %v4274
    %v4286 = vsub.f32 %v4262, %v4276
    %v4287 = vsub.f32 %v4263, %v4278
    %v4288 = vsub.f32 %v4264, %v4280
    %v4289 = vmul.f32 %v4281, 1.442695
    %v4290 = vpow.pop %v4289
    %v4291 = vmul.f32 %v4282, 1.442695
    %v4292 = vpow.pop %v4291
    %v4293 = vmul.f32 %v4283, 1.442695
    %v4294 = vpow.pop %v4293
    %v4295 = vmul.f32 %v4284, 1.442695
    %v4296 = vpow.pop %v4295
    %v4297 = vmul.f32 %v4285, 1.442695
    %v4298 = vpow.pop %v4297
    %v4299 = vmul.f32 %v4286, 1.442695
    %v4300 = vpow.pop %v4299
    %v4301 = vmul.f32 %v4287, 1.442695
    %v4302 = vpow.pop %v4301
    %v4303 = vmul.f32 %v4288, 1.442695
    %v4304 = vpow.pop %v4303
    %4305 = vadd.xlane.f32.xlu0 %v4290
    %v4306 = vpop.xlane.xlu0 %4305
    %4307 = vadd.xlane.f32.xlu0 %v4292
    %v4308 = vpop.xlane.xlu0 %4307
    %4309 = vadd.xlane.f32.xlu0 %v4294
    %v4310 = vpop.xlane.xlu0 %4309
    %4311 = vadd.xlane.f32.xlu0 %v4296
    %v4312 = vpop.xlane.xlu0 %4311
    %4313 = vadd.xlane.f32.xlu0 %v4298
    %v4314 = vpop.xlane.xlu0 %4313
    %4315 = vadd.xlane.f32.xlu0 %v4300
    %v4316 = vpop.xlane.xlu0 %4315
    %4317 = vadd.xlane.f32.xlu0 %v4302
    %v4318 = vpop.xlane.xlu0 %4317
    %4319 = vadd.xlane.f32.xlu0 %v4304
    %v4320 = vpop.xlane.xlu0 %4319
    %v4321 = vlog2.pop %v4306
    %v4322 = vmul.f32 %v4321, 0.6931472
    %v4323 = vlog2.pop %v4308
    %v4324 = vmul.f32 %v4323, 0.6931472
    %v4325 = vlog2.pop %v4310
    %v4326 = vmul.f32 %v4325, 0.6931472
    %v4327 = vlog2.pop %v4312
    %v4328 = vmul.f32 %v4327, 0.6931472
    %v4329 = vlog2.pop %v4314
    %v4330 = vmul.f32 %v4329, 0.6931472
    %v4331 = vlog2.pop %v4316
    %v4332 = vmul.f32 %v4331, 0.6931472
    %v4333 = vlog2.pop %v4318
    %v4334 = vmul.f32 %v4333, 0.6931472
    %v4335 = vlog2.pop %v4320
    %v4336 = vmul.f32 %v4335, 0.6931472
    %v4337 = vsub.f32 %v4281, %v4322
    %v4338 = vsub.f32 %v4282, %v4324
    %v4339 = vsub.f32 %v4283, %v4326
    %v4340 = vsub.f32 %v4284, %v4328
    %v4341 = vsub.f32 %v4285, %v4330
    %v4342 = vsub.f32 %v4286, %v4332
    %v4343 = vsub.f32 %v4287, %v4334
    %v4344 = vsub.f32 %v4288, %v4336
    %4345 = vst [vmem:[%s7] sm:$0xff] %v4337
    %4346 = vst [vmem:[%s7 + $0x8] sm:$0xff] %v4338
    %4347 = vst [vmem:[%s7 + $0x10] sm:$0xff] %v4339
    %4348 = vst [vmem:[%s7 + $0x18] sm:$0xff] %v4340
    %4349 = vst [vmem:[%s7 + $0x20] sm:$0xff] %v4341
    %4350 = vst [vmem:[%s7 + $0x28] sm:$0xff] %v4342
    %4351 = vst [vmem:[%s7 + $0x30] sm:$0xff] %v4343
    %4352 = vst [vmem:[%s7 + $0x38] sm:$0xff] %v4344
    %4353 = vst.msk [vmem:[%s8] sm:$0xff] %vm271, %v1235
    %s4354 = scalar_lea.vmem %s8, 8
    %4355 = vst.msk [vmem:[%s4354] sm:$0xff] %vm271, %v2226
    %s4356 = scalar_lea.vmem %s8, 16
    %4357 = vst.msk [vmem:[%s4356] sm:$0xff] %vm271, %v4112
    %4359 = vrot.lane.b32.xlu0 %v1226, 96
    %v4360 = vpop.permute.xlu0 %4359
    %s4362 = scalar_lea.vmem %s8, 24
    %4363 = vst.msk [vmem:[%s4362] sm:$0xff] %vm271, %v4360
    %4365 = vrot.lane.b32.xlu0 %v2217, 96
    %v4366 = vpop.permute.xlu0 %4365
    %s4368 = scalar_lea.vmem %s8, 32
    %4369 = vst.msk [vmem:[%s4368] sm:$0xff] %vm271, %v4366
    %4371 = vrot.lane.b32.xlu0 %v4103, 96
    %v4372 = vpop.permute.xlu0 %4371
    %s4374 = scalar_lea.vmem %s8, 40
    %4375 = vst.msk [vmem:[%s4374] sm:$0xff] %vm271, %v4372
    // Predicated region
    $region34: #{rnn_model_forward.1} parent=1 // pred_check
      _
    $region35: #{rnn_model_forward.1} parent=1 // pred_check_branch
      %4377 = sbr.rel (0) target = $region37
    $region36: #{rnn_model_forward.1} parent=1 // pred_region
      _
    $region37: #{rnn_model_forward.1} parent=1 // pred_fallthru
      _
    // Predicated region
    $region38: #{rnn_model_forward.1} parent=1 // pred_check
      _
    $region39: #{rnn_model_forward.1} parent=1 // pred_check_branch
      %4379 = sbr.rel (0) target = $region41
    $region40: #{rnn_model_forward.1} parent=1 // pred_region
      _
    $region41: #{rnn_model_forward.1} parent=1 // pred_fallthru
      _
    // Predicated region
    $region42: #{rnn_model_forward.1} parent=1 // pred_check
      _
    $region43: #{rnn_model_forward.1} parent=1 // pred_check_branch
      %4381 = sbr.rel (0) target = $region45
    $region44: #{rnn_model_forward.1} parent=1 // pred_region
      _
    $region45: #{rnn_model_forward.1} parent=1 // pred_fallthru
      _
    // Predicated region
    $region46: #{rnn_model_forward.1} parent=1 // pred_check
      _
    $region47: #{rnn_model_forward.1} parent=1 // pred_check_branch
      %4383 = sbr.rel (0) target = $region49
    $region48: #{rnn_model_forward.1} parent=1 // pred_region
      _
    $region49: #{rnn_model_forward.1} parent=1 // pred_fallthru
      _
    %4384 = vsyncpa [#allocation6], 1

</llo_original>
